<compile_context>
chip_gen: v7x
topology: tpu7x:2x2x1
jax: 0.10.0
libtpu: 0.0.40
codegen_flags: <defaults>
</compile_context>

<pallas_src>
import jax
import jax.numpy as jnp
from jax import lax
from jax.experimental import pallas as pl
from jax.experimental.pallas import tpu as pltpu

EPS = 1e-5


def _dt_kernel(x_ref, t_ref, wqkv_ref, wo_ref, bo_ref, wtxt_ref, btxt_ref,
               mix_ref, out_ref, attmap_ref):
    N = x_ref.shape[1]
    C = x_ref.shape[2]
    n_heads = attmap_ref.shape[2] // N
    ch = C // n_heads

    x = x_ref[0]                      # (N, C) f32 original features, this batch elem
    t = t_ref[0]                      # (1, T) f32 text feature

    # ---- nn.InstanceNorm2d(feature_size): affine=False, biased var, eps=1e-5 ----
    mu = jnp.mean(x, axis=0, keepdims=True)                      # (1, C)
    xc = x - mu
    var = jnp.mean(xc * xc, axis=0, keepdims=True)               # biased
    normed_x = xc * lax.rsqrt(var + EPS)

    # ---- all text-side projections fused: one (1,T)x(T,6C) bf16 matmul ----
    # columns: [wt(module0) | wt(module1) | styler gate W | styler style W]
    tproj = jnp.dot(t.astype(jnp.bfloat16), wtxt_ref[...],
                    preferred_element_type=jnp.float32) + btxt_ref[...]   # (1, 6C)
    text_bias = (tproj[:, :C], tproj[:, C:2 * C])
    gate = jax.nn.sigmoid(tproj[:, 2 * C:4 * C])                 # (1, 2C)
    style = tproj[:, 4 * C:]                                     # (1, 2C)

    bo_all = bo_ref[...]                                         # (2, C)
    mix0 = mix_ref[0]
    mix1 = mix_ref[1]
    dn = (((1,), (1,)), ((), ()))                                # contract last dims
    scale = 1.0 / (ch ** 0.5)

    def attention(inp, idx, write_map):
        # fused QKV projection: single (N,C)x(C,3C) bf16 matmul, f32 accumulation
        qkv = jnp.dot(inp.astype(jnp.bfloat16), wqkv_ref[idx],
                      preferred_element_type=jnp.float32)        # (N, 3C)
        # fold the text bias into q:  (q + tb)·k^T == q·k^T + tb·k^T
        q = qkv[:, :C] + text_bias[idx]
        k = qkv[:, C:2 * C]
        v = qkv[:, 2 * C:]
        qb = q.astype(jnp.bfloat16)
        kb = k.astype(jnp.bfloat16)
        vb = v.astype(jnp.bfloat16)

        o_heads = []
        maps = []
        for h in range(n_heads):                                 # static unroll
            sl = slice(h * ch, (h + 1) * ch)
            logits = lax.dot_general(qb[:, sl], kb[:, sl], dn,
                                     preferred_element_type=jnp.float32) * scale
            logits = logits - jnp.max(logits, axis=-1, keepdims=True)
            p = jnp.exp(logits)
            # reciprocal on the EUP slot instead of a VPU divide over the (N,N) tile
            att = p * pl.reciprocal(jnp.sum(p, axis=-1, keepdims=True), approx=True)
            if write_map:
                maps.append(att)
            o_heads.append(jnp.dot(att.astype(jnp.bfloat16), vb[:, sl],
                                   preferred_element_type=jnp.float32))  # (N, ch)
        if write_map:
            # lane-dense (N, n_heads*N) store instead of n_heads masked (N, N) stores
            attmap_ref[0] = jnp.concatenate(maps, axis=-1)
        # single output projection: (N,C)x(C,C) instead of n_heads (N,ch)x(ch,C)
        o_cat = jnp.concatenate(o_heads, axis=-1).astype(jnp.bfloat16)   # (N, C)
        return (jnp.dot(o_cat, wo_ref[idx], preferred_element_type=jnp.float32)
                + bo_all[idx:idx + 1, :])

    out1 = normed_x + mix0 * attention(normed_x, 0, True)
    out2 = out1 + mix1 * attention(out1, 1, False)   # att_map2 computed but unused

    # ---- global_styler (GlobalStyleTransformer2): stats of ORIGINAL x ----
    # reuse the instance-norm variance: unbiased var = biased var * N/(N-1)
    x_std = jnp.sqrt(var * (N / (N - 1.0)) + EPS)                # (1, C)
    gamma = gate[:, :C] * x_std + style[:, :C]
    beta = gate[:, C:] * mu + style[:, C:]
    out_ref[0] = gamma * out2 + beta


def _pack_params(params):
    """Pack the module-style f32 params into the fused bf16/f32 kernel operands."""
    C = params["att_wq"].shape[-1]
    wqkv = jnp.concatenate([params["att_wq"], params["att_wk"], params["att_wv"]],
                           axis=-1)                                     # (2, C, 3C)
    wtxt = jnp.concatenate([params["att_wt"][0], params["att_wt"][1],
                            params["sty_wg"], params["sty_ws"]], axis=-1)  # (T, 6C)
    btxt = jnp.concatenate([jnp.zeros((1, 2 * C), jnp.float32),
                            params["sty_bg"], params["sty_bs"]], axis=-1)  # (1, 6C)
    return (wqkv.astype(jnp.bfloat16),
            params["att_wo"].astype(jnp.bfloat16),
            params["att_bo"].astype(jnp.float32),
            wtxt.astype(jnp.bfloat16),
            btxt.astype(jnp.float32),
            params["mix_w"].astype(jnp.float32))


def disentangled_transformer(x, t, params):
    """x: (B, C, H, W) float32 (NCHW like the PyTorch module), t: (B, T)."""
    B, C, H, W = x.shape
    T = t.shape[1]
    N = H * W
    nH = params["n_heads"]

    x_tok = jnp.transpose(x, (0, 2, 3, 1)).reshape(B, N, C)
    t3 = t.reshape(B, 1, T)
    wqkv, wo, bo, wtxt, btxt, mix = _pack_params(params)

    out_tok, att_packed = pl.pallas_call(
        _dt_kernel,
        grid=(B,),
        in_specs=[
            pl.BlockSpec((1, N, C), lambda b: (b, 0, 0)),          # x tokens
            pl.BlockSpec((1, 1, T), lambda b: (b, 0, 0)),          # text
            pl.BlockSpec((2, C, 3 * C), lambda b: (0, 0, 0)),      # packed Wq|Wk|Wv (bf16)
            pl.BlockSpec((2, C, C), lambda b: (0, 0, 0)),          # Wo (bf16)
            pl.BlockSpec((2, C), lambda b: (0, 0)),                # bo
            pl.BlockSpec((T, 6 * C), lambda b: (0, 0)),            # fused text-side W (bf16)
            pl.BlockSpec((1, 6 * C), lambda b: (0, 0)),            # fused text-side bias
            pl.BlockSpec(memory_space=pltpu.MemorySpace.SMEM),     # mix weights [w0, w1]
        ],
        out_specs=(
            pl.BlockSpec((1, N, C), lambda b: (b, 0, 0)),
            pl.BlockSpec((1, N, nH * N), lambda b: (b, 0, 0)),     # lane-dense packed map
        ),
        out_shape=(
            jax.ShapeDtypeStruct((B, N, C), jnp.float32),
            jax.ShapeDtypeStruct((B, N, nH * N), jnp.float32),
        ),
        compiler_params=pltpu.CompilerParams(
            dimension_semantics=("parallel",)),                    # megacore on v7x
    )(x_tok, t3, wqkv, wo, bo, wtxt, btxt, mix)

    out = out_tok.reshape(B, H, W, C).transpose(0, 3, 1, 2)
    att_map = att_packed.reshape(B, N, nH, N).transpose(0, 2, 1, 3)
    return out, att_map


def reference(x, t, params, *, bf16):
    """Pure-JAX reference.  bf16=True mirrors the kernel's mixed precision
    (bf16 MXU inputs, f32 accumulation) for a tight logic check; bf16=False is a
    full-f32 ground truth (precision=HIGHEST)."""
    B, C, H, W = x.shape
    N = H * W
    nH = params["n_heads"]
    ch = C // nH
    prec = None if bf16 else lax.Precision.HIGHEST
    cast = (lambda a: a.astype(jnp.bfloat16)) if bf16 else (lambda a: a)

    xt = jnp.transpose(x, (0, 2, 3, 1)).reshape(B, N, C)
    mu = xt.mean(1, keepdims=True)
    var = ((xt - mu) ** 2).mean(1, keepdims=True)
    normed = (xt - mu) * lax.rsqrt(var + EPS)

    wqkv = jnp.concatenate([params["att_wq"], params["att_wk"], params["att_wv"]], axis=-1)

    def att(inp, i):
        qkv = jnp.einsum("bnc,cd->bnd", cast(inp), cast(wqkv[i]),
                         precision=prec, preferred_element_type=jnp.float32)
        tb = jnp.einsum("bt,tc->bc", cast(t), cast(params["att_wt"][i]),
                        precision=prec, preferred_element_type=jnp.float32)
        q = qkv[..., :C] + tb[:, None, :]
        k = qkv[..., C:2 * C]
        v = qkv[..., 2 * C:]
        qh = cast(q).reshape(B, N, nH, ch).transpose(0, 2, 1, 3)
        kh = cast(k).reshape(B, N, nH, ch).transpose(0, 2, 1, 3)
        vh = cast(v).reshape(B, N, nH, ch).transpose(0, 2, 1, 3)
        logits = jnp.einsum("bhnc,bhmc->bhnm", qh, kh, precision=prec,
                            preferred_element_type=jnp.float32) / (ch ** 0.5)
        m = jax.nn.softmax(logits, axis=-1)
        o = jnp.einsum("bhnm,bhmc->bhnc", cast(m), vh, precision=prec,
                       preferred_element_type=jnp.float32)
        o = o.transpose(0, 2, 1, 3).reshape(B, N, C)
        o = jnp.einsum("bnc,cd->bnd", cast(o), cast(params["att_wo"][i]),
                       precision=prec, preferred_element_type=jnp.float32)
        return o + params["att_bo"][i][None, None, :], m

    a1, m1 = att(normed, 0)
    out = normed + params["mix_w"][0] * a1
    a2, _ = att(out, 1)
    out = out + params["mix_w"][1] * a2

    x_std = jnp.sqrt(var * (N / (N - 1.0)) + EPS)
    gate = jax.nn.sigmoid(
        jnp.einsum("bt,td->bd", cast(t), cast(params["sty_wg"]), precision=prec,
                   preferred_element_type=jnp.float32) + params["sty_bg"])
    style = jnp.einsum("bt,td->bd", cast(t), cast(params["sty_ws"]), precision=prec,
                       preferred_element_type=jnp.float32) + params["sty_bs"]
    gamma = gate[:, :C][:, None, :] * x_std + style[:, :C][:, None, :]
    beta = gate[:, C:][:, None, :] * mu + style[:, C:][:, None, :]
    out = gamma * out + beta
    out = out.reshape(B, H, W, C).transpose(0, 3, 1, 2)
    return out, m1


def init_params(key, C, T, nH):
    ks = jax.random.split(key, 8)
    s_cc = 1.0 / (C ** 0.5)
    s_tc = 1.0 / (T ** 0.5)
    return dict(
        n_heads=nH,
        att_wq=jax.random.normal(ks[0], (2, C, C), jnp.float32) * s_cc,
        att_wk=jax.random.normal(ks[1], (2, C, C), jnp.float32) * s_cc,
        att_wv=jax.random.normal(ks[2], (2, C, C), jnp.float32) * s_cc,
        att_wo=jax.random.normal(ks[3], (2, C, C), jnp.float32) * s_cc,
        att_bo=jax.random.normal(ks[4], (2, C), jnp.float32) * 0.01,
        att_wt=jax.random.normal(ks[5], (2, T, C), jnp.float32) * s_tc,
        sty_wg=jax.random.normal(ks[6], (T, 2 * C), jnp.float32) * s_tc,
        sty_bg=jnp.zeros((1, 2 * C), jnp.float32),
        sty_ws=jax.random.normal(ks[7], (T, 2 * C), jnp.float32) * s_tc,
        # CoSMo init_style_weights: gamma-bias = 1, beta-bias = 0
        sty_bs=jnp.concatenate([jnp.ones((1, C)), jnp.zeros((1, C))], axis=1).astype(jnp.float32),
        mix_w=jnp.array([1.0, 1.0], jnp.float32),                 # nn.Parameter([1., 1.])
    )


if __name__ == "__main__":
    B, C, H, W = 2, 32, 8, 8            # feature_size=32, spatial 8x8
    T, nH = 16, 4                        # text_feature_size=16, num_heads=4
    key = jax.random.PRNGKey(0)
    kx, kt, kp = jax.random.split(key, 3)
    x = jax.random.normal(kx, (B, C, H, W), jnp.float32)
    t = jax.random.normal(kt, (B, T), jnp.float32)
    params = init_params(kp, C, T, nH)

    out, att_map = disentangled_transformer(x, t, params)
    out = jax.block_until_ready(out)
    att_map = jax.block_until_ready(att_map)
    assert out.shape == (B, C, H, W)
    assert att_map.shape == (B, nH, H * W, H * W)

    # 1) tight check vs. a precision-matched (bf16-matmul) reference -> validates kernel logic
    m_out, m_map = reference(x, t, params, bf16=True)
    scale_m = max(1.0, float(jnp.max(jnp.abs(m_out))))
    err_out = float(jnp.max(jnp.abs(out - m_out)))
    err_map = float(jnp.max(jnp.abs(att_map - m_map)))
    assert err_out <= 2e-2 * scale_m, ("matched-precision out mismatch", err_out, scale_m)
    assert err_map <= 1e-2, ("matched-precision att_map mismatch", err_map)

    # 2) sanity check vs. the full-f32 ground truth (bf16 MXU inputs -> small % of scale)
    f_out, f_map = reference(x, t, params, bf16=False)
    scale_f = max(1.0, float(jnp.max(jnp.abs(f_out))))
    ferr_out = float(jnp.max(jnp.abs(out - f_out)))
    ferr_map = float(jnp.max(jnp.abs(att_map - f_map)))
    assert ferr_out <= 1e-1 * scale_f, ("f32 out mismatch", ferr_out, scale_f)
    assert ferr_map <= 5e-2, ("f32 att_map mismatch", ferr_map)

    print("KERNEL_OK")
</pallas_src>

<mosaic_0001>
module attributes {stable_mosaic.version = 11 : i64} {
  func.func @_dt_kernel(%arg0: i32, %arg1: memref<1x64x32xf32, #tpu.memory_space<vmem>>, %arg2: memref<1x1x16xf32, #tpu.memory_space<vmem>>, %arg3: memref<2x32x96xbf16, #tpu.memory_space<vmem>>, %arg4: memref<2x32x32xbf16, #tpu.memory_space<vmem>>, %arg5: memref<2x32xf32, #tpu.memory_space<vmem>>, %arg6: memref<16x192xbf16, #tpu.memory_space<vmem>>, %arg7: memref<1x192xf32, #tpu.memory_space<vmem>>, %arg8: memref<2xf32, #tpu.memory_space<smem>>, %arg9: memref<1x64x32xf32, #tpu.memory_space<vmem>>, %arg10: memref<1x64x256xf32, #tpu.memory_space<vmem>>) attributes {dimension_semantics = [#tpu.dimension_semantics<parallel>], iteration_bounds = array<i64: 2>, scalar_prefetch = 0 : i64, scratch_operands = 0 : i64, tpu.core_type = #tpu.core_type<tc>, window_params = [{transform_indices = @transform_0, window_bounds = array<i64: 1, 64, 32>}, {transform_indices = @transform_1, window_bounds = array<i64: 1, 1, 16>}, {pipeline_mode = #tpu.pipeline_mode<synchronous>, transform_indices = @transform_2, window_bounds = array<i64: 2, 32, 96>}, {pipeline_mode = #tpu.pipeline_mode<synchronous>, transform_indices = @transform_3, window_bounds = array<i64: 2, 32, 32>}, {pipeline_mode = #tpu.pipeline_mode<synchronous>, transform_indices = @transform_4, window_bounds = array<i64: 2, 32>}, {pipeline_mode = #tpu.pipeline_mode<synchronous>, transform_indices = @transform_5, window_bounds = array<i64: 16, 192>}, {pipeline_mode = #tpu.pipeline_mode<synchronous>, transform_indices = @transform_6, window_bounds = array<i64: 1, 192>}, {transform_indices = @transform_7, window_bounds = array<i64: 2>}, {transform_indices = @transform_8, window_bounds = array<i64: 1, 64, 32>}, {transform_indices = @transform_9, window_bounds = array<i64: 1, 64, 256>}]} {
    %c0 = arith.constant 0 : index
    %c0_0 = arith.constant 0 : index
    %c0_1 = arith.constant 0 : index
    %0 = vector.load %arg1[%c0, %c0_0, %c0_1] : memref<1x64x32xf32, #tpu.memory_space<vmem>>, vector<1x64x32xf32>
    %1 = vector.shape_cast %0 : vector<1x64x32xf32> to vector<64x32xf32>
    %c0_2 = arith.constant 0 : index
    %c0_3 = arith.constant 0 : index
    %c0_4 = arith.constant 0 : index
    %2 = vector.load %arg2[%c0_2, %c0_3, %c0_4] : memref<1x1x16xf32, #tpu.memory_space<vmem>>, vector<1x1x16xf32>
    %3 = vector.shape_cast %2 : vector<1x1x16xf32> to vector<1x16xf32>
    %cst = arith.constant dense<0.000000e+00> : vector<32xf32>
    %4 = vector.multi_reduction <add>, %1, %cst [0] : vector<64x32xf32> to vector<32xf32>
    %5 = vector.shape_cast %4 : vector<32xf32> to vector<1x32xf32>
    %cst_5 = arith.constant 6.400000e+01 : f32
    %6 = vector.broadcast %cst_5 : f32 to vector<1x32xf32>
    %7 = arith.divf %5, %6 : vector<1x32xf32>
    %8 = vector.broadcast %7 : vector<1x32xf32> to vector<64x32xf32>
    %9 = arith.subf %1, %8 : vector<64x32xf32>
    %10 = arith.mulf %9, %9 : vector<64x32xf32>
    %cst_6 = arith.constant dense<0.000000e+00> : vector<32xf32>
    %11 = vector.multi_reduction <add>, %10, %cst_6 [0] : vector<64x32xf32> to vector<32xf32>
    %12 = vector.shape_cast %11 : vector<32xf32> to vector<1x32xf32>
    %cst_7 = arith.constant 6.400000e+01 : f32
    %13 = vector.broadcast %cst_7 : f32 to vector<1x32xf32>
    %14 = arith.divf %12, %13 : vector<1x32xf32>
    %cst_8 = arith.constant 9.99999974E-6 : f32
    %15 = vector.broadcast %cst_8 : f32 to vector<1x32xf32>
    %16 = arith.addf %14, %15 : vector<1x32xf32>
    %17 = math.rsqrt %16 : vector<1x32xf32>
    %18 = vector.broadcast %17 : vector<1x32xf32> to vector<64x32xf32>
    %19 = arith.mulf %9, %18 : vector<64x32xf32>
    %20 = arith.truncf %3 : vector<1x16xf32> to vector<1x16xbf16>
    %c0_9 = arith.constant 0 : index
    %c0_10 = arith.constant 0 : index
    %21 = vector.load %arg6[%c0_9, %c0_10] : memref<16x192xbf16, #tpu.memory_space<vmem>>, vector<16x192xbf16>
    %cst_11 = arith.constant dense<0.000000e+00> : vector<1x192xf32>
    %22 = tpu.matmul %20, %21, %cst_11 {dimension_numbers = #tpu.dot_dimension_numbers<[1], [0], [0], [1], [0, 0, 1, 1], [], []>} : vector<1x16xbf16>, vector<16x192xbf16>, vector<1x192xf32> -> vector<1x192xf32>
    %c0_12 = arith.constant 0 : index
    %c0_13 = arith.constant 0 : index
    %23 = vector.load %arg7[%c0_12, %c0_13] : memref<1x192xf32, #tpu.memory_space<vmem>>, vector<1x192xf32>
    %24 = arith.addf %22, %23 : vector<1x192xf32>
    %25 = vector.extract_strided_slice %24 {offsets = [0, 0], sizes = [1, 32], strides = [1, 1]} : vector<1x192xf32> to vector<1x32xf32>
    %26 = vector.extract_strided_slice %24 {offsets = [0, 32], sizes = [1, 32], strides = [1, 1]} : vector<1x192xf32> to vector<1x32xf32>
    %27 = vector.extract_strided_slice %24 {offsets = [0, 64], sizes = [1, 64], strides = [1, 1]} : vector<1x192xf32> to vector<1x64xf32>
    %28 = arith.negf %27 : vector<1x64xf32>
    %29 = math.exp %28 : vector<1x64xf32>
    %cst_14 = arith.constant 1.000000e+00 : f32
    %30 = vector.broadcast %cst_14 : f32 to vector<1x64xf32>
    %31 = arith.addf %30, %29 : vector<1x64xf32>
    %32 = arith.divf %30, %31 : vector<1x64xf32>
    %33 = vector.extract_strided_slice %24 {offsets = [0, 128], sizes = [1, 64], strides = [1, 1]} : vector<1x192xf32> to vector<1x64xf32>
    %c0_15 = arith.constant 0 : index
    %c0_16 = arith.constant 0 : index
    %34 = vector.load %arg5[%c0_15, %c0_16] : memref<2x32xf32, #tpu.memory_space<vmem>>, vector<2x32xf32>
    %c0_17 = arith.constant 0 : index
    %35 = memref.load %arg8[%c0_17] : memref<2xf32, #tpu.memory_space<smem>>
    %c1 = arith.constant 1 : index
    %36 = memref.load %arg8[%c1] : memref<2xf32, #tpu.memory_space<smem>>
    %37 = arith.truncf %19 : vector<64x32xf32> to vector<64x32xbf16>
    %c0_18 = arith.constant 0 : index
    %c0_19 = arith.constant 0 : index
    %c0_20 = arith.constant 0 : index
    %38 = vector.load %arg3[%c0_18, %c0_19, %c0_20] : memref<2x32x96xbf16, #tpu.memory_space<vmem>>, vector<1x32x96xbf16>
    %39 = vector.shape_cast %38 : vector<1x32x96xbf16> to vector<32x96xbf16>
    %cst_21 = arith.constant dense<0.000000e+00> : vector<64x96xf32>
    %40 = tpu.matmul %37, %39, %cst_21 {dimension_numbers = #tpu.dot_dimension_numbers<[1], [0], [0], [1], [0, 0, 1, 1], [], []>} : vector<64x32xbf16>, vector<32x96xbf16>, vector<64x96xf32> -> vector<64x96xf32>
    %41 = vector.extract_strided_slice %40 {offsets = [0, 0], sizes = [64, 32], strides = [1, 1]} : vector<64x96xf32> to vector<64x32xf32>
    %42 = vector.broadcast %25 : vector<1x32xf32> to vector<64x32xf32>
    %43 = arith.addf %41, %42 : vector<64x32xf32>
    %44 = vector.extract_strided_slice %40 {offsets = [0, 32], sizes = [64, 32], strides = [1, 1]} : vector<64x96xf32> to vector<64x32xf32>
    %45 = vector.extract_strided_slice %40 {offsets = [0, 64], sizes = [64, 32], strides = [1, 1]} : vector<64x96xf32> to vector<64x32xf32>
    %46 = arith.truncf %43 : vector<64x32xf32> to vector<64x32xbf16>
    %47 = arith.truncf %44 : vector<64x32xf32> to vector<64x32xbf16>
    %48 = arith.truncf %45 : vector<64x32xf32> to vector<64x32xbf16>
    %49 = vector.extract_strided_slice %46 {offsets = [0, 0], sizes = [64, 8], strides = [1, 1]} : vector<64x32xbf16> to vector<64x8xbf16>
    %50 = vector.extract_strided_slice %47 {offsets = [0, 0], sizes = [64, 8], strides = [1, 1]} : vector<64x32xbf16> to vector<64x8xbf16>
    %cst_22 = arith.constant dense<0.000000e+00> : vector<64x64xf32>
    %51 = tpu.matmul %49, %50, %cst_22 {dimension_numbers = #tpu.dot_dimension_numbers<[1], [1], [0], [0], [0, 0, 1, 0], [], []>} : vector<64x8xbf16>, vector<64x8xbf16>, vector<64x64xf32> -> vector<64x64xf32>
    %cst_23 = arith.constant 0.353553385 : f32
    %52 = vector.broadcast %cst_23 : f32 to vector<64x64xf32>
    %53 = arith.mulf %51, %52 : vector<64x64xf32>
    %cst_24 = arith.constant dense<0xFF800000> : vector<64xf32>
    %54 = vector.multi_reduction <maximumf>, %53, %cst_24 [1] : vector<64x64xf32> to vector<64xf32>
    %55 = vector.shape_cast %54 : vector<64xf32> to vector<64x1xf32>
    %56 = vector.broadcast %55 : vector<64x1xf32> to vector<64x64xf32>
    %57 = arith.subf %53, %56 : vector<64x64xf32>
    %58 = math.exp %57 : vector<64x64xf32>
    %cst_25 = arith.constant dense<0.000000e+00> : vector<64xf32>
    %59 = vector.multi_reduction <add>, %58, %cst_25 [1] : vector<64x64xf32> to vector<64xf32>
    %60 = vector.shape_cast %59 : vector<64xf32> to vector<64x1xf32>
    %61 = tpu.reciprocal %60 {approx = true} : vector<64x1xf32> -> vector<64x1xf32>
    %62 = vector.broadcast %61 : vector<64x1xf32> to vector<64x64xf32>
    %63 = arith.mulf %58, %62 : vector<64x64xf32>
    %64 = arith.truncf %63 : vector<64x64xf32> to vector<64x64xbf16>
    %65 = vector.extract_strided_slice %48 {offsets = [0, 0], sizes = [64, 8], strides = [1, 1]} : vector<64x32xbf16> to vector<64x8xbf16>
    %cst_26 = arith.constant dense<0.000000e+00> : vector<64x8xf32>
    %66 = tpu.matmul %64, %65, %cst_26 {dimension_numbers = #tpu.dot_dimension_numbers<[1], [0], [0], [1], [0, 0, 1, 1], [], []>} : vector<64x64xbf16>, vector<64x8xbf16>, vector<64x8xf32> -> vector<64x8xf32>
    %67 = vector.extract_strided_slice %46 {offsets = [0, 8], sizes = [64, 8], strides = [1, 1]} : vector<64x32xbf16> to vector<64x8xbf16>
    %68 = vector.extract_strided_slice %47 {offsets = [0, 8], sizes = [64, 8], strides = [1, 1]} : vector<64x32xbf16> to vector<64x8xbf16>
    %cst_27 = arith.constant dense<0.000000e+00> : vector<64x64xf32>
    %69 = tpu.matmul %67, %68, %cst_27 {dimension_numbers = #tpu.dot_dimension_numbers<[1], [1], [0], [0], [0, 0, 1, 0], [], []>} : vector<64x8xbf16>, vector<64x8xbf16>, vector<64x64xf32> -> vector<64x64xf32>
    %cst_28 = arith.constant 0.353553385 : f32
    %70 = vector.broadcast %cst_28 : f32 to vector<64x64xf32>
    %71 = arith.mulf %69, %70 : vector<64x64xf32>
    %cst_29 = arith.constant dense<0xFF800000> : vector<64xf32>
    %72 = vector.multi_reduction <maximumf>, %71, %cst_29 [1] : vector<64x64xf32> to vector<64xf32>
    %73 = vector.shape_cast %72 : vector<64xf32> to vector<64x1xf32>
    %74 = vector.broadcast %73 : vector<64x1xf32> to vector<64x64xf32>
    %75 = arith.subf %71, %74 : vector<64x64xf32>
    %76 = math.exp %75 : vector<64x64xf32>
    %cst_30 = arith.constant dense<0.000000e+00> : vector<64xf32>
    %77 = vector.multi_reduction <add>, %76, %cst_30 [1] : vector<64x64xf32> to vector<64xf32>
    %78 = vector.shape_cast %77 : vector<64xf32> to vector<64x1xf32>
    %79 = tpu.reciprocal %78 {approx = true} : vector<64x1xf32> -> vector<64x1xf32>
    %80 = vector.broadcast %79 : vector<64x1xf32> to vector<64x64xf32>
    %81 = arith.mulf %76, %80 : vector<64x64xf32>
    %82 = arith.truncf %81 : vector<64x64xf32> to vector<64x64xbf16>
    %83 = vector.extract_strided_slice %48 {offsets = [0, 8], sizes = [64, 8], strides = [1, 1]} : vector<64x32xbf16> to vector<64x8xbf16>
    %cst_31 = arith.constant dense<0.000000e+00> : vector<64x8xf32>
    %84 = tpu.matmul %82, %83, %cst_31 {dimension_numbers = #tpu.dot_dimension_numbers<[1], [0], [0], [1], [0, 0, 1, 1], [], []>} : vector<64x64xbf16>, vector<64x8xbf16>, vector<64x8xf32> -> vector<64x8xf32>
    %85 = vector.extract_strided_slice %46 {offsets = [0, 16], sizes = [64, 8], strides = [1, 1]} : vector<64x32xbf16> to vector<64x8xbf16>
    %86 = vector.extract_strided_slice %47 {offsets = [0, 16], sizes = [64, 8], strides = [1, 1]} : vector<64x32xbf16> to vector<64x8xbf16>
    %cst_32 = arith.constant dense<0.000000e+00> : vector<64x64xf32>
    %87 = tpu.matmul %85, %86, %cst_32 {dimension_numbers = #tpu.dot_dimension_numbers<[1], [1], [0], [0], [0, 0, 1, 0], [], []>} : vector<64x8xbf16>, vector<64x8xbf16>, vector<64x64xf32> -> vector<64x64xf32>
    %cst_33 = arith.constant 0.353553385 : f32
    %88 = vector.broadcast %cst_33 : f32 to vector<64x64xf32>
    %89 = arith.mulf %87, %88 : vector<64x64xf32>
    %cst_34 = arith.constant dense<0xFF800000> : vector<64xf32>
    %90 = vector.multi_reduction <maximumf>, %89, %cst_34 [1] : vector<64x64xf32> to vector<64xf32>
    %91 = vector.shape_cast %90 : vector<64xf32> to vector<64x1xf32>
    %92 = vector.broadcast %91 : vector<64x1xf32> to vector<64x64xf32>
    %93 = arith.subf %89, %92 : vector<64x64xf32>
    %94 = math.exp %93 : vector<64x64xf32>
    %cst_35 = arith.constant dense<0.000000e+00> : vector<64xf32>
    %95 = vector.multi_reduction <add>, %94, %cst_35 [1] : vector<64x64xf32> to vector<64xf32>
    %96 = vector.shape_cast %95 : vector<64xf32> to vector<64x1xf32>
    %97 = tpu.reciprocal %96 {approx = true} : vector<64x1xf32> -> vector<64x1xf32>
    %98 = vector.broadcast %97 : vector<64x1xf32> to vector<64x64xf32>
    %99 = arith.mulf %94, %98 : vector<64x64xf32>
    %100 = arith.truncf %99 : vector<64x64xf32> to vector<64x64xbf16>
    %101 = vector.extract_strided_slice %48 {offsets = [0, 16], sizes = [64, 8], strides = [1, 1]} : vector<64x32xbf16> to vector<64x8xbf16>
    %cst_36 = arith.constant dense<0.000000e+00> : vector<64x8xf32>
    %102 = tpu.matmul %100, %101, %cst_36 {dimension_numbers = #tpu.dot_dimension_numbers<[1], [0], [0], [1], [0, 0, 1, 1], [], []>} : vector<64x64xbf16>, vector<64x8xbf16>, vector<64x8xf32> -> vector<64x8xf32>
    %103 = vector.extract_strided_slice %46 {offsets = [0, 24], sizes = [64, 8], strides = [1, 1]} : vector<64x32xbf16> to vector<64x8xbf16>
    %104 = vector.extract_strided_slice %47 {offsets = [0, 24], sizes = [64, 8], strides = [1, 1]} : vector<64x32xbf16> to vector<64x8xbf16>
    %cst_37 = arith.constant dense<0.000000e+00> : vector<64x64xf32>
    %105 = tpu.matmul %103, %104, %cst_37 {dimension_numbers = #tpu.dot_dimension_numbers<[1], [1], [0], [0], [0, 0, 1, 0], [], []>} : vector<64x8xbf16>, vector<64x8xbf16>, vector<64x64xf32> -> vector<64x64xf32>
    %cst_38 = arith.constant 0.353553385 : f32
    %106 = vector.broadcast %cst_38 : f32 to vector<64x64xf32>
    %107 = arith.mulf %105, %106 : vector<64x64xf32>
    %cst_39 = arith.constant dense<0xFF800000> : vector<64xf32>
    %108 = vector.multi_reduction <maximumf>, %107, %cst_39 [1] : vector<64x64xf32> to vector<64xf32>
    %109 = vector.shape_cast %108 : vector<64xf32> to vector<64x1xf32>
    %110 = vector.broadcast %109 : vector<64x1xf32> to vector<64x64xf32>
    %111 = arith.subf %107, %110 : vector<64x64xf32>
    %112 = math.exp %111 : vector<64x64xf32>
    %cst_40 = arith.constant dense<0.000000e+00> : vector<64xf32>
    %113 = vector.multi_reduction <add>, %112, %cst_40 [1] : vector<64x64xf32> to vector<64xf32>
    %114 = vector.shape_cast %113 : vector<64xf32> to vector<64x1xf32>
    %115 = tpu.reciprocal %114 {approx = true} : vector<64x1xf32> -> vector<64x1xf32>
    %116 = vector.broadcast %115 : vector<64x1xf32> to vector<64x64xf32>
    %117 = arith.mulf %112, %116 : vector<64x64xf32>
    %118 = arith.truncf %117 : vector<64x64xf32> to vector<64x64xbf16>
    %119 = vector.extract_strided_slice %48 {offsets = [0, 24], sizes = [64, 8], strides = [1, 1]} : vector<64x32xbf16> to vector<64x8xbf16>
    %cst_41 = arith.constant dense<0.000000e+00> : vector<64x8xf32>
    %120 = tpu.matmul %118, %119, %cst_41 {dimension_numbers = #tpu.dot_dimension_numbers<[1], [0], [0], [1], [0, 0, 1, 1], [], []>} : vector<64x64xbf16>, vector<64x8xbf16>, vector<64x8xf32> -> vector<64x8xf32>
    %121 = tpu.concatenate %63, %81, %99, %117 in 1 : vector<64x64xf32>, vector<64x64xf32>, vector<64x64xf32>, vector<64x64xf32> -> vector<64x256xf32>
    %c0_42 = arith.constant 0 : index
    %c0_43 = arith.constant 0 : index
    %c0_44 = arith.constant 0 : index
    %122 = vector.load %arg10[%c0_42, %c0_43, %c0_44] : memref<1x64x256xf32, #tpu.memory_space<vmem>>, vector<1x64x256xf32>
    %123 = vector.shape_cast %122 : vector<1x64x256xf32> to vector<64x256xf32>
    %124 = vector.shape_cast %121 : vector<64x256xf32> to vector<1x64x256xf32>
    tpu.vector_store %arg10[%c0_42, %c0_43, %c0_44], %124 {strides = array<i32>} : memref<1x64x256xf32, #tpu.memory_space<vmem>>, vector<1x64x256xf32>,
    %125 = tpu.concatenate %66, %84, %102, %120 in 1 : vector<64x8xf32>, vector<64x8xf32>, vector<64x8xf32>, vector<64x8xf32> -> vector<64x32xf32>
    %126 = arith.truncf %125 : vector<64x32xf32> to vector<64x32xbf16>
    %c0_45 = arith.constant 0 : index
    %c0_46 = arith.constant 0 : index
    %c0_47 = arith.constant 0 : index
    %127 = vector.load %arg4[%c0_45, %c0_46, %c0_47] : memref<2x32x32xbf16, #tpu.memory_space<vmem>>, vector<1x32x32xbf16>
    %128 = vector.shape_cast %127 : vector<1x32x32xbf16> to vector<32x32xbf16>
    %cst_48 = arith.constant dense<0.000000e+00> : vector<64x32xf32>
    %129 = tpu.matmul %126, %128, %cst_48 {dimension_numbers = #tpu.dot_dimension_numbers<[1], [0], [0], [1], [0, 0, 1, 1], [], []>} : vector<64x32xbf16>, vector<32x32xbf16>, vector<64x32xf32> -> vector<64x32xf32>
    %130 = vector.extract_strided_slice %34 {offsets = [0, 0], sizes = [1, 32], strides = [1, 1]} : vector<2x32xf32> to vector<1x32xf32>
    %131 = vector.broadcast %130 : vector<1x32xf32> to vector<64x32xf32>
    %132 = arith.addf %129, %131 : vector<64x32xf32>
    %133 = vector.broadcast %35 : f32 to vector<64x32xf32>
    %134 = arith.mulf %133, %132 : vector<64x32xf32>
    %135 = arith.addf %19, %134 : vector<64x32xf32>
    %136 = arith.truncf %135 : vector<64x32xf32> to vector<64x32xbf16>
    %c1_49 = arith.constant 1 : index
    %c0_50 = arith.constant 0 : index
    %c0_51 = arith.constant 0 : index
    %137 = vector.load %arg3[%c1_49, %c0_50, %c0_51] : memref<2x32x96xbf16, #tpu.memory_space<vmem>>, vector<1x32x96xbf16>
    %138 = vector.shape_cast %137 : vector<1x32x96xbf16> to vector<32x96xbf16>
    %cst_52 = arith.constant dense<0.000000e+00> : vector<64x96xf32>
    %139 = tpu.matmul %136, %138, %cst_52 {dimension_numbers = #tpu.dot_dimension_numbers<[1], [0], [0], [1], [0, 0, 1, 1], [], []>} : vector<64x32xbf16>, vector<32x96xbf16>, vector<64x96xf32> -> vector<64x96xf32>
    %140 = vector.extract_strided_slice %139 {offsets = [0, 0], sizes = [64, 32], strides = [1, 1]} : vector<64x96xf32> to vector<64x32xf32>
    %141 = vector.broadcast %26 : vector<1x32xf32> to vector<64x32xf32>
    %142 = arith.addf %140, %141 : vector<64x32xf32>
    %143 = vector.extract_strided_slice %139 {offsets = [0, 32], sizes = [64, 32], strides = [1, 1]} : vector<64x96xf32> to vector<64x32xf32>
    %144 = vector.extract_strided_slice %139 {offsets = [0, 64], sizes = [64, 32], strides = [1, 1]} : vector<64x96xf32> to vector<64x32xf32>
    %145 = arith.truncf %142 : vector<64x32xf32> to vector<64x32xbf16>
    %146 = arith.truncf %143 : vector<64x32xf32> to vector<64x32xbf16>
    %147 = arith.truncf %144 : vector<64x32xf32> to vector<64x32xbf16>
    %148 = vector.extract_strided_slice %145 {offsets = [0, 0], sizes = [64, 8], strides = [1, 1]} : vector<64x32xbf16> to vector<64x8xbf16>
    %149 = vector.extract_strided_slice %146 {offsets = [0, 0], sizes = [64, 8], strides = [1, 1]} : vector<64x32xbf16> to vector<64x8xbf16>
    %cst_53 = arith.constant dense<0.000000e+00> : vector<64x64xf32>
    %150 = tpu.matmul %148, %149, %cst_53 {dimension_numbers = #tpu.dot_dimension_numbers<[1], [1], [0], [0], [0, 0, 1, 0], [], []>} : vector<64x8xbf16>, vector<64x8xbf16>, vector<64x64xf32> -> vector<64x64xf32>
    %cst_54 = arith.constant 0.353553385 : f32
    %151 = vector.broadcast %cst_54 : f32 to vector<64x64xf32>
    %152 = arith.mulf %150, %151 : vector<64x64xf32>
    %cst_55 = arith.constant dense<0xFF800000> : vector<64xf32>
    %153 = vector.multi_reduction <maximumf>, %152, %cst_55 [1] : vector<64x64xf32> to vector<64xf32>
    %154 = vector.shape_cast %153 : vector<64xf32> to vector<64x1xf32>
    %155 = vector.broadcast %154 : vector<64x1xf32> to vector<64x64xf32>
    %156 = arith.subf %152, %155 : vector<64x64xf32>
    %157 = math.exp %156 : vector<64x64xf32>
    %cst_56 = arith.constant dense<0.000000e+00> : vector<64xf32>
    %158 = vector.multi_reduction <add>, %157, %cst_56 [1] : vector<64x64xf32> to vector<64xf32>
    %159 = vector.shape_cast %158 : vector<64xf32> to vector<64x1xf32>
    %160 = tpu.reciprocal %159 {approx = true} : vector<64x1xf32> -> vector<64x1xf32>
    %161 = vector.broadcast %160 : vector<64x1xf32> to vector<64x64xf32>
    %162 = arith.mulf %157, %161 : vector<64x64xf32>
    %163 = arith.truncf %162 : vector<64x64xf32> to vector<64x64xbf16>
    %164 = vector.extract_strided_slice %147 {offsets = [0, 0], sizes = [64, 8], strides = [1, 1]} : vector<64x32xbf16> to vector<64x8xbf16>
    %cst_57 = arith.constant dense<0.000000e+00> : vector<64x8xf32>
    %165 = tpu.matmul %163, %164, %cst_57 {dimension_numbers = #tpu.dot_dimension_numbers<[1], [0], [0], [1], [0, 0, 1, 1], [], []>} : vector<64x64xbf16>, vector<64x8xbf16>, vector<64x8xf32> -> vector<64x8xf32>
    %166 = vector.extract_strided_slice %145 {offsets = [0, 8], sizes = [64, 8], strides = [1, 1]} : vector<64x32xbf16> to vector<64x8xbf16>
    %167 = vector.extract_strided_slice %146 {offsets = [0, 8], sizes = [64, 8], strides = [1, 1]} : vector<64x32xbf16> to vector<64x8xbf16>
    %cst_58 = arith.constant dense<0.000000e+00> : vector<64x64xf32>
    %168 = tpu.matmul %166, %167, %cst_58 {dimension_numbers = #tpu.dot_dimension_numbers<[1], [1], [0], [0], [0, 0, 1, 0], [], []>} : vector<64x8xbf16>, vector<64x8xbf16>, vector<64x64xf32> -> vector<64x64xf32>
    %cst_59 = arith.constant 0.353553385 : f32
    %169 = vector.broadcast %cst_59 : f32 to vector<64x64xf32>
    %170 = arith.mulf %168, %169 : vector<64x64xf32>
    %cst_60 = arith.constant dense<0xFF800000> : vector<64xf32>
    %171 = vector.multi_reduction <maximumf>, %170, %cst_60 [1] : vector<64x64xf32> to vector<64xf32>
    %172 = vector.shape_cast %171 : vector<64xf32> to vector<64x1xf32>
    %173 = vector.broadcast %172 : vector<64x1xf32> to vector<64x64xf32>
    %174 = arith.subf %170, %173 : vector<64x64xf32>
    %175 = math.exp %174 : vector<64x64xf32>
    %cst_61 = arith.constant dense<0.000000e+00> : vector<64xf32>
    %176 = vector.multi_reduction <add>, %175, %cst_61 [1] : vector<64x64xf32> to vector<64xf32>
    %177 = vector.shape_cast %176 : vector<64xf32> to vector<64x1xf32>
    %178 = tpu.reciprocal %177 {approx = true} : vector<64x1xf32> -> vector<64x1xf32>
    %179 = vector.broadcast %178 : vector<64x1xf32> to vector<64x64xf32>
    %180 = arith.mulf %175, %179 : vector<64x64xf32>
    %181 = arith.truncf %180 : vector<64x64xf32> to vector<64x64xbf16>
    %182 = vector.extract_strided_slice %147 {offsets = [0, 8], sizes = [64, 8], strides = [1, 1]} : vector<64x32xbf16> to vector<64x8xbf16>
    %cst_62 = arith.constant dense<0.000000e+00> : vector<64x8xf32>
    %183 = tpu.matmul %181, %182, %cst_62 {dimension_numbers = #tpu.dot_dimension_numbers<[1], [0], [0], [1], [0, 0, 1, 1], [], []>} : vector<64x64xbf16>, vector<64x8xbf16>, vector<64x8xf32> -> vector<64x8xf32>
    %184 = vector.extract_strided_slice %145 {offsets = [0, 16], sizes = [64, 8], strides = [1, 1]} : vector<64x32xbf16> to vector<64x8xbf16>
    %185 = vector.extract_strided_slice %146 {offsets = [0, 16], sizes = [64, 8], strides = [1, 1]} : vector<64x32xbf16> to vector<64x8xbf16>
    %cst_63 = arith.constant dense<0.000000e+00> : vector<64x64xf32>
    %186 = tpu.matmul %184, %185, %cst_63 {dimension_numbers = #tpu.dot_dimension_numbers<[1], [1], [0], [0], [0, 0, 1, 0], [], []>} : vector<64x8xbf16>, vector<64x8xbf16>, vector<64x64xf32> -> vector<64x64xf32>
    %cst_64 = arith.constant 0.353553385 : f32
    %187 = vector.broadcast %cst_64 : f32 to vector<64x64xf32>
    %188 = arith.mulf %186, %187 : vector<64x64xf32>
    %cst_65 = arith.constant dense<0xFF800000> : vector<64xf32>
    %189 = vector.multi_reduction <maximumf>, %188, %cst_65 [1] : vector<64x64xf32> to vector<64xf32>
    %190 = vector.shape_cast %189 : vector<64xf32> to vector<64x1xf32>
    %191 = vector.broadcast %190 : vector<64x1xf32> to vector<64x64xf32>
    %192 = arith.subf %188, %191 : vector<64x64xf32>
    %193 = math.exp %192 : vector<64x64xf32>
    %cst_66 = arith.constant dense<0.000000e+00> : vector<64xf32>
    %194 = vector.multi_reduction <add>, %193, %cst_66 [1] : vector<64x64xf32> to vector<64xf32>
    %195 = vector.shape_cast %194 : vector<64xf32> to vector<64x1xf32>
    %196 = tpu.reciprocal %195 {approx = true} : vector<64x1xf32> -> vector<64x1xf32>
    %197 = vector.broadcast %196 : vector<64x1xf32> to vector<64x64xf32>
    %198 = arith.mulf %193, %197 : vector<64x64xf32>
    %199 = arith.truncf %198 : vector<64x64xf32> to vector<64x64xbf16>
    %200 = vector.extract_strided_slice %147 {offsets = [0, 16], sizes = [64, 8], strides = [1, 1]} : vector<64x32xbf16> to vector<64x8xbf16>
    %cst_67 = arith.constant dense<0.000000e+00> : vector<64x8xf32>
    %201 = tpu.matmul %199, %200, %cst_67 {dimension_numbers = #tpu.dot_dimension_numbers<[1], [0], [0], [1], [0, 0, 1, 1], [], []>} : vector<64x64xbf16>, vector<64x8xbf16>, vector<64x8xf32> -> vector<64x8xf32>
    %202 = vector.extract_strided_slice %145 {offsets = [0, 24], sizes = [64, 8], strides = [1, 1]} : vector<64x32xbf16> to vector<64x8xbf16>
    %203 = vector.extract_strided_slice %146 {offsets = [0, 24], sizes = [64, 8], strides = [1, 1]} : vector<64x32xbf16> to vector<64x8xbf16>
    %cst_68 = arith.constant dense<0.000000e+00> : vector<64x64xf32>
    %204 = tpu.matmul %202, %203, %cst_68 {dimension_numbers = #tpu.dot_dimension_numbers<[1], [1], [0], [0], [0, 0, 1, 0], [], []>} : vector<64x8xbf16>, vector<64x8xbf16>, vector<64x64xf32> -> vector<64x64xf32>
    %cst_69 = arith.constant 0.353553385 : f32
    %205 = vector.broadcast %cst_69 : f32 to vector<64x64xf32>
    %206 = arith.mulf %204, %205 : vector<64x64xf32>
    %cst_70 = arith.constant dense<0xFF800000> : vector<64xf32>
    %207 = vector.multi_reduction <maximumf>, %206, %cst_70 [1] : vector<64x64xf32> to vector<64xf32>
    %208 = vector.shape_cast %207 : vector<64xf32> to vector<64x1xf32>
    %209 = vector.broadcast %208 : vector<64x1xf32> to vector<64x64xf32>
    %210 = arith.subf %206, %209 : vector<64x64xf32>
    %211 = math.exp %210 : vector<64x64xf32>
    %cst_71 = arith.constant dense<0.000000e+00> : vector<64xf32>
    %212 = vector.multi_reduction <add>, %211, %cst_71 [1] : vector<64x64xf32> to vector<64xf32>
    %213 = vector.shape_cast %212 : vector<64xf32> to vector<64x1xf32>
    %214 = tpu.reciprocal %213 {approx = true} : vector<64x1xf32> -> vector<64x1xf32>
    %215 = vector.broadcast %214 : vector<64x1xf32> to vector<64x64xf32>
    %216 = arith.mulf %211, %215 : vector<64x64xf32>
    %217 = arith.truncf %216 : vector<64x64xf32> to vector<64x64xbf16>
    %218 = vector.extract_strided_slice %147 {offsets = [0, 24], sizes = [64, 8], strides = [1, 1]} : vector<64x32xbf16> to vector<64x8xbf16>
    %cst_72 = arith.constant dense<0.000000e+00> : vector<64x8xf32>
    %219 = tpu.matmul %217, %218, %cst_72 {dimension_numbers = #tpu.dot_dimension_numbers<[1], [0], [0], [1], [0, 0, 1, 1], [], []>} : vector<64x64xbf16>, vector<64x8xbf16>, vector<64x8xf32> -> vector<64x8xf32>
    %220 = tpu.concatenate %165, %183, %201, %219 in 1 : vector<64x8xf32>, vector<64x8xf32>, vector<64x8xf32>, vector<64x8xf32> -> vector<64x32xf32>
    %221 = arith.truncf %220 : vector<64x32xf32> to vector<64x32xbf16>
    %c1_73 = arith.constant 1 : index
    %c0_74 = arith.constant 0 : index
    %c0_75 = arith.constant 0 : index
    %222 = vector.load %arg4[%c1_73, %c0_74, %c0_75] : memref<2x32x32xbf16, #tpu.memory_space<vmem>>, vector<1x32x32xbf16>
    %223 = vector.shape_cast %222 : vector<1x32x32xbf16> to vector<32x32xbf16>
    %cst_76 = arith.constant dense<0.000000e+00> : vector<64x32xf32>
    %224 = tpu.matmul %221, %223, %cst_76 {dimension_numbers = #tpu.dot_dimension_numbers<[1], [0], [0], [1], [0, 0, 1, 1], [], []>} : vector<64x32xbf16>, vector<32x32xbf16>, vector<64x32xf32> -> vector<64x32xf32>
    %225 = vector.extract_strided_slice %34 {offsets = [1, 0], sizes = [1, 32], strides = [1, 1]} : vector<2x32xf32> to vector<1x32xf32>
    %226 = vector.broadcast %225 : vector<1x32xf32> to vector<64x32xf32>
    %227 = arith.addf %224, %226 : vector<64x32xf32>
    %228 = vector.broadcast %36 : f32 to vector<64x32xf32>
    %229 = arith.mulf %228, %227 : vector<64x32xf32>
    %230 = arith.addf %135, %229 : vector<64x32xf32>
    %cst_77 = arith.constant 1.01587307 : f32
    %231 = vector.broadcast %cst_77 : f32 to vector<1x32xf32>
    %232 = arith.mulf %14, %231 : vector<1x32xf32>
    %cst_78 = arith.constant 9.99999974E-6 : f32
    %233 = vector.broadcast %cst_78 : f32 to vector<1x32xf32>
    %234 = arith.addf %232, %233 : vector<1x32xf32>
    %235 = math.sqrt %234 : vector<1x32xf32>
    %236 = vector.extract_strided_slice %32 {offsets = [0, 0], sizes = [1, 32], strides = [1, 1]} : vector<1x64xf32> to vector<1x32xf32>
    %237 = arith.mulf %236, %235 : vector<1x32xf32>
    %238 = vector.extract_strided_slice %33 {offsets = [0, 0], sizes = [1, 32], strides = [1, 1]} : vector<1x64xf32> to vector<1x32xf32>
    %239 = arith.addf %237, %238 : vector<1x32xf32>
    %240 = vector.extract_strided_slice %32 {offsets = [0, 32], sizes = [1, 32], strides = [1, 1]} : vector<1x64xf32> to vector<1x32xf32>
    %241 = arith.mulf %240, %7 : vector<1x32xf32>
    %242 = vector.extract_strided_slice %33 {offsets = [0, 32], sizes = [1, 32], strides = [1, 1]} : vector<1x64xf32> to vector<1x32xf32>
    %243 = arith.addf %241, %242 : vector<1x32xf32>
    %244 = vector.broadcast %239 : vector<1x32xf32> to vector<64x32xf32>
    %245 = arith.mulf %244, %230 : vector<64x32xf32>
    %246 = vector.broadcast %243 : vector<1x32xf32> to vector<64x32xf32>
    %247 = arith.addf %245, %246 : vector<64x32xf32>
    %c0_79 = arith.constant 0 : index
    %c0_80 = arith.constant 0 : index
    %c0_81 = arith.constant 0 : index
    %248 = vector.load %arg9[%c0_79, %c0_80, %c0_81] : memref<1x64x32xf32, #tpu.memory_space<vmem>>, vector<1x64x32xf32>
    %249 = vector.shape_cast %248 : vector<1x64x32xf32> to vector<64x32xf32>
    %250 = vector.shape_cast %247 : vector<64x32xf32> to vector<1x64x32xf32>
    tpu.vector_store %arg9[%c0_79, %c0_80, %c0_81], %250 {strides = array<i32>} : memref<1x64x32xf32, #tpu.memory_space<vmem>>, vector<1x64x32xf32>,
    return
  }
  func.func @transform_0(%arg0: i32) -> (i32, i32, i32) {
    %c0_i32 = arith.constant 0 : i32
    %c0_i32_0 = arith.constant 0 : i32
    %c0_i32_1 = arith.constant 0 : i32
    return %arg0, %c0_i32, %c0_i32_0 : i32, i32, i32
  }
  func.func @transform_1(%arg0: i32) -> (i32, i32, i32) {
    %c0_i32 = arith.constant 0 : i32
    %c0_i32_0 = arith.constant 0 : i32
    %c0_i32_1 = arith.constant 0 : i32
    return %arg0, %c0_i32, %c0_i32_0 : i32, i32, i32
  }
  func.func @transform_2(%arg0: i32) -> (i32, i32, i32) {
    %c0_i32 = arith.constant 0 : i32
    %c0_i32_0 = arith.constant 0 : i32
    %c0_i32_1 = arith.constant 0 : i32
    %c0_i32_2 = arith.constant 0 : i32
    return %c0_i32, %c0_i32_0, %c0_i32_1 : i32, i32, i32
  }
  func.func @transform_3(%arg0: i32) -> (i32, i32, i32) {
    %c0_i32 = arith.constant 0 : i32
    %c0_i32_0 = arith.constant 0 : i32
    %c0_i32_1 = arith.constant 0 : i32
    %c0_i32_2 = arith.constant 0 : i32
    return %c0_i32, %c0_i32_0, %c0_i32_1 : i32, i32, i32
  }
  func.func @transform_4(%arg0: i32) -> (i32, i32) {
    %c0_i32 = arith.constant 0 : i32
    %c0_i32_0 = arith.constant 0 : i32
    %c0_i32_1 = arith.constant 0 : i32
    return %c0_i32, %c0_i32_0 : i32, i32
  }
  func.func @transform_5(%arg0: i32) -> (i32, i32) {
    %c0_i32 = arith.constant 0 : i32
    %c0_i32_0 = arith.constant 0 : i32
    %c0_i32_1 = arith.constant 0 : i32
    return %c0_i32, %c0_i32_0 : i32, i32
  }
  func.func @transform_6(%arg0: i32) -> (i32, i32) {
    %c0_i32 = arith.constant 0 : i32
    %c0_i32_0 = arith.constant 0 : i32
    %c0_i32_1 = arith.constant 0 : i32
    return %c0_i32, %c0_i32_0 : i32, i32
  }
  func.func @transform_7(%arg0: i32) -> i32 {
    %c0_i32 = arith.constant 0 : i32
    %c0_i32_0 = arith.constant 0 : i32
    return %c0_i32 : i32
  }
  func.func @transform_8(%arg0: i32) -> (i32, i32, i32) {
    %c0_i32 = arith.constant 0 : i32
    %c0_i32_0 = arith.constant 0 : i32
    %c0_i32_1 = arith.constant 0 : i32
    return %arg0, %c0_i32, %c0_i32_0 : i32, i32, i32
  }
  func.func @transform_9(%arg0: i32) -> (i32, i32, i32) {
    %c0_i32 = arith.constant 0 : i32
    %c0_i32_0 = arith.constant 0 : i32
    %c0_i32_1 = arith.constant 0 : i32
    return %arg0, %c0_i32, %c0_i32_0 : i32, i32, i32
  }
}

</mosaic_0001>

<llo_original>
// kernel: tpu_custom_call.1
$region0: #{tpu_custom_call.1}
  #allocation0 [shape = 'u32[]', space=smem, size = 0x4, offset = 0x4, fixed_abs, tag = 'smem constant byte address 0x4 - core index']
  #allocation1 [shape = 'u32[144,128]{1,0:T(1,128)}', space=vmem, size = 0x12000, scoped, tag = 'internal scratch']
  %s0 = inlined_call_operand.vmem [shape: f32[2,64,32], index: 0, kind: input, shape index: {}]
  %s1 = inlined_call_operand.vmem [shape: f32[2,1,16], index: 1, kind: input, shape index: {}]
  %s2 = inlined_call_operand.vmem [shape: bf16[2,32,96], index: 2, kind: input, shape index: {}]
  %s3 = inlined_call_operand.vmem [shape: bf16[2,32,32], index: 3, kind: input, shape index: {}]
  %s4 = inlined_call_operand.vmem [shape: f32[2,32], index: 4, kind: input, shape index: {}]
  %s5 = inlined_call_operand.vmem [shape: bf16[16,192], index: 5, kind: input, shape index: {}]
  %s6 = inlined_call_operand.vmem [shape: f32[1,192], index: 6, kind: input, shape index: {}]
  %s7 = inlined_call_operand.vmem [shape: f32[2], index: 7, kind: input, shape index: {}]
  %s8 = inlined_call_operand.vmem [shape: f32[2,64,32], index: 8, kind: output, shape index: {0}]
  %s9 = inlined_call_operand.hbm [shape: f32[2,64,256], index: 9, kind: output, shape index: {1}]
  %10 = xla_tuple %s8, %s9
  %s11 = sld [smem:[#allocation0]]
  $region77: #{tpu_custom_call.1} parent=0
    _
  %s13 = ssub.s32 1, %s11
  %s14 = scalar_select 0, %s13, %s11
  $region1: #{tpu_custom_call.1} parent=0
    #allocation2 [shape = 'u8[512]{0}', space=smem, size = 0x200, scoped, tag = 'input window, operand 7, single buffered']
    #allocation3 [shape = 's32[2]{0}', space=sflag, size = 0x8, scoped, tag = 'scoped memory for tpu_custom_call.1']
    #allocation4 [shape = 's32[2]{0}', space=sflag, size = 0x8, scoped, tag = 'scoped memory for tpu_custom_call.1']
    #allocation5 [shape = 'u8[131072]{0}', space=vmem, size = 0x20000, scoped, tag = 'output window, operand 1']
    %15 = vsyncpa [#allocation4], 0
    %16 = vsyncpa [#allocation3], 0
    %s17 = scalar_lea.sflag [#allocation3], 1
    %18 = vsyncpa %s17, 0
    loop: start=0, step=1, limit=4
    $region2: #{tpu_custom_call.1} parent=1 // loop_pre_header
      _
    $region3: #{tpu_custom_call.1} parent=1 // loop_header
      %s20 = sphi 0, %s24
      %p21 = scmp.ge.s32.totalorder %s20, 4
      %s30 = sphi 0, %s32
      %s33 = sphi 0, %s30
      %s34 = sphi 0, %s33
      %s50 = sphi 0, %s34
      %s56 = sphi 0, %s58
      %s59 = sphi 0, %s56
      %s60 = sphi 0, %s59
      %s76 = sphi 0, %s60
      %s80 = sphi 0, %s80
      %s82 = sphi 0, %s80
      %s83 = sphi 0, %s82
      %s97 = sphi 0, %s83
      %s101 = sphi 0, %s101
      %s103 = sphi 0, %s101
      %s104 = sphi 0, %s103
      %s118 = sphi 0, %s104
      %s122 = sphi 0, %s122
      %s124 = sphi 0, %s122
      %s125 = sphi 0, %s124
      %s139 = sphi 0, %s125
      %s143 = sphi 0, %s143
      %s145 = sphi 0, %s143
      %s146 = sphi 0, %s145
      %s160 = sphi 0, %s146
      %s164 = sphi 0, %s164
      %s166 = sphi 0, %s164
      %s167 = sphi 0, %s166
      %s181 = sphi 0, %s167
      %s185 = sphi 0, %s185
      %s187 = sphi 0, %s185
      %s188 = sphi 0, %s187
      %s202 = sphi 0, %s188
      %s208 = sphi 0, %s210
      %s211 = sphi 0, %s208
      %s212 = sphi 0, %s211
      %s228 = sphi 0, %s212
      %s234 = sphi 0, %s236
      %s237 = sphi 0, %s234
      %s238 = sphi 0, %s237
      %s254 = sphi 0, %s238
    $region4: #{tpu_custom_call.1} parent=1 // loop_header_branch
      %23 = sbr.rel (%p21) target = $region8
    $region5: #{tpu_custom_call.1} parent=1 // loop_body
      %s25 = ssub.s32 %s20, 1
      %s26 = ssub.s32 %s20, 2
      %s27 = sadd.s32 %s20, 1
      %s28 = ssub.s32 %s20, %s27
      %p29 = scmp.eq.s32.totalorder %s28, 0
      %s31 = sadd.s32 %s30, 1
      %s32 = scalar_select %p29, %s30, %s31
      %p35 = pneg %p29
      %p36 = scmp.eq.s32.totalorder %s20, 1
      %p37 = por %p35, %p36
      %p38 = scmp.ne.s32.totalorder %s30, %s33
      %p39 = scmp.eq.s32.totalorder %s20, 0
      %p40 = por %p38, %p39
      %p41 = scmp.ne.s32.totalorder %s30, %s33
      %p42 = scmp.eq.s32.totalorder %s25, 1
      %p43 = por %p41, %p42
      %p44 = scmp.ne.s32.totalorder %s33, %s34
      %p45 = scmp.eq.s32.totalorder %s25, 0
      %p46 = por %p44, %p45
      %p47 = scmp.ne.s32.totalorder %s33, %s34
      %p48 = scmp.eq.s32.totalorder %s26, 1
      %p49 = por %p47, %p48
      %p51 = scmp.ne.s32.totalorder %s34, %s50
      %p52 = scmp.eq.s32.totalorder %s26, 0
      %p53 = por %p51, %p52
      %s54 = ssub.s32 %s20, %s27
      %p55 = scmp.eq.s32.totalorder %s54, 0
      %s57 = sadd.s32 %s56, 1
      %s58 = scalar_select %p55, %s56, %s57
      %p61 = pneg %p55
      %p62 = scmp.eq.s32.totalorder %s20, 1
      %p63 = por %p61, %p62
      %p64 = scmp.ne.s32.totalorder %s56, %s59
      %p65 = scmp.eq.s32.totalorder %s20, 0
      %p66 = por %p64, %p65
      %p67 = scmp.ne.s32.totalorder %s56, %s59
      %p68 = scmp.eq.s32.totalorder %s25, 1
      %p69 = por %p67, %p68
      %p70 = scmp.ne.s32.totalorder %s59, %s60
      %p71 = scmp.eq.s32.totalorder %s25, 0
      %p72 = por %p70, %p71
      %p73 = scmp.ne.s32.totalorder %s59, %s60
      %p74 = scmp.eq.s32.totalorder %s26, 1
      %p75 = por %p73, %p74
      %p77 = scmp.ne.s32.totalorder %s60, %s76
      %p78 = scmp.eq.s32.totalorder %s26, 0
      %p79 = por %p77, %p78
      %s81 = sadd.s32 %s80, 1
      %p84 = scmp.eq.s32.totalorder %s20, 1
      %p85 = scmp.ne.s32.totalorder %s80, %s82
      %p86 = scmp.eq.s32.totalorder %s20, 0
      %p87 = por %p85, %p86
      %p88 = scmp.ne.s32.totalorder %s80, %s82
      %p89 = scmp.eq.s32.totalorder %s25, 1
      %p90 = por %p88, %p89
      %p91 = scmp.ne.s32.totalorder %s82, %s83
      %p92 = scmp.eq.s32.totalorder %s25, 0
      %p93 = por %p91, %p92
      %p94 = scmp.ne.s32.totalorder %s82, %s83
      %p95 = scmp.eq.s32.totalorder %s26, 1
      %p96 = por %p94, %p95
      %p98 = scmp.ne.s32.totalorder %s83, %s97
      %p99 = scmp.eq.s32.totalorder %s26, 0
      %p100 = por %p98, %p99
      %s102 = sadd.s32 %s101, 1
      %p105 = scmp.eq.s32.totalorder %s20, 1
      %p106 = scmp.ne.s32.totalorder %s101, %s103
      %p107 = scmp.eq.s32.totalorder %s20, 0
      %p108 = por %p106, %p107
      %p109 = scmp.ne.s32.totalorder %s101, %s103
      %p110 = scmp.eq.s32.totalorder %s25, 1
      %p111 = por %p109, %p110
      %p112 = scmp.ne.s32.totalorder %s103, %s104
      %p113 = scmp.eq.s32.totalorder %s25, 0
      %p114 = por %p112, %p113
      %p115 = scmp.ne.s32.totalorder %s103, %s104
      %p116 = scmp.eq.s32.totalorder %s26, 1
      %p117 = por %p115, %p116
      %p119 = scmp.ne.s32.totalorder %s104, %s118
      %p120 = scmp.eq.s32.totalorder %s26, 0
      %p121 = por %p119, %p120
      %s123 = sadd.s32 %s122, 1
      %p126 = scmp.eq.s32.totalorder %s20, 1
      %p127 = scmp.ne.s32.totalorder %s122, %s124
      %p128 = scmp.eq.s32.totalorder %s20, 0
      %p129 = por %p127, %p128
      %p130 = scmp.ne.s32.totalorder %s122, %s124
      %p131 = scmp.eq.s32.totalorder %s25, 1
      %p132 = por %p130, %p131
      %p133 = scmp.ne.s32.totalorder %s124, %s125
      %p134 = scmp.eq.s32.totalorder %s25, 0
      %p135 = por %p133, %p134
      %p136 = scmp.ne.s32.totalorder %s124, %s125
      %p137 = scmp.eq.s32.totalorder %s26, 1
      %p138 = por %p136, %p137
      %p140 = scmp.ne.s32.totalorder %s125, %s139
      %p141 = scmp.eq.s32.totalorder %s26, 0
      %p142 = por %p140, %p141
      %s144 = sadd.s32 %s143, 1
      %p147 = scmp.eq.s32.totalorder %s20, 1
      %p148 = scmp.ne.s32.totalorder %s143, %s145
      %p149 = scmp.eq.s32.totalorder %s20, 0
      %p150 = por %p148, %p149
      %p151 = scmp.ne.s32.totalorder %s143, %s145
      %p152 = scmp.eq.s32.totalorder %s25, 1
      %p153 = por %p151, %p152
      %p154 = scmp.ne.s32.totalorder %s145, %s146
      %p155 = scmp.eq.s32.totalorder %s25, 0
      %p156 = por %p154, %p155
      %p157 = scmp.ne.s32.totalorder %s145, %s146
      %p158 = scmp.eq.s32.totalorder %s26, 1
      %p159 = por %p157, %p158
      %p161 = scmp.ne.s32.totalorder %s146, %s160
      %p162 = scmp.eq.s32.totalorder %s26, 0
      %p163 = por %p161, %p162
      %s165 = sadd.s32 %s164, 1
      %p168 = scmp.eq.s32.totalorder %s20, 1
      %p169 = scmp.ne.s32.totalorder %s164, %s166
      %p170 = scmp.eq.s32.totalorder %s20, 0
      %p171 = por %p169, %p170
      %p172 = scmp.ne.s32.totalorder %s164, %s166
      %p173 = scmp.eq.s32.totalorder %s25, 1
      %p174 = por %p172, %p173
      %p175 = scmp.ne.s32.totalorder %s166, %s167
      %p176 = scmp.eq.s32.totalorder %s25, 0
      %p177 = por %p175, %p176
      %p178 = scmp.ne.s32.totalorder %s166, %s167
      %p179 = scmp.eq.s32.totalorder %s26, 1
      %p180 = por %p178, %p179
      %p182 = scmp.ne.s32.totalorder %s167, %s181
      %p183 = scmp.eq.s32.totalorder %s26, 0
      %p184 = por %p182, %p183
      %s186 = sadd.s32 %s185, 1
      %p189 = scmp.eq.s32.totalorder %s20, 1
      %p190 = scmp.ne.s32.totalorder %s185, %s187
      %p191 = scmp.eq.s32.totalorder %s20, 0
      %p192 = por %p190, %p191
      %p193 = scmp.ne.s32.totalorder %s185, %s187
      %p194 = scmp.eq.s32.totalorder %s25, 1
      %p195 = por %p193, %p194
      %p196 = scmp.ne.s32.totalorder %s187, %s188
      %p197 = scmp.eq.s32.totalorder %s25, 0
      %p198 = por %p196, %p197
      %p199 = scmp.ne.s32.totalorder %s187, %s188
      %p200 = scmp.eq.s32.totalorder %s26, 1
      %p201 = por %p199, %p200
      %p203 = scmp.ne.s32.totalorder %s188, %s202
      %p204 = scmp.eq.s32.totalorder %s26, 0
      %p205 = por %p203, %p204
      %s206 = ssub.s32 %s20, %s27
      %p207 = scmp.eq.s32.totalorder %s206, 0
      %s209 = sadd.s32 %s208, 1
      %s210 = scalar_select %p207, %s208, %s209
      %p213 = pneg %p207
      %p214 = scmp.eq.s32.totalorder %s20, 1
      %p215 = por %p213, %p214
      %p216 = scmp.ne.s32.totalorder %s208, %s211
      %p217 = scmp.eq.s32.totalorder %s20, 0
      %p218 = por %p216, %p217
      %p219 = scmp.ne.s32.totalorder %s208, %s211
      %p220 = scmp.eq.s32.totalorder %s25, 1
      %p221 = por %p219, %p220
      %p222 = scmp.ne.s32.totalorder %s211, %s212
      %p223 = scmp.eq.s32.totalorder %s25, 0
      %p224 = por %p222, %p223
      %p225 = scmp.ne.s32.totalorder %s211, %s212
      %p226 = scmp.eq.s32.totalorder %s26, 1
      %p227 = por %p225, %p226
      %p229 = scmp.ne.s32.totalorder %s212, %s228
      %p230 = scmp.eq.s32.totalorder %s26, 0
      %p231 = por %p229, %p230
      %s232 = ssub.s32 %s20, %s27
      %p233 = scmp.eq.s32.totalorder %s232, 0
      %s235 = sadd.s32 %s234, 1
      %s236 = scalar_select %p233, %s234, %s235
      %p239 = pneg %p233
      %p240 = scmp.eq.s32.totalorder %s20, 1
      %p241 = por %p239, %p240
      %p242 = scmp.ne.s32.totalorder %s234, %s237
      %p243 = scmp.eq.s32.totalorder %s20, 0
      %p244 = por %p242, %p243
      %p245 = scmp.ne.s32.totalorder %s234, %s237
      %p246 = scmp.eq.s32.totalorder %s25, 1
      %p247 = por %p245, %p246
      %p248 = scmp.ne.s32.totalorder %s237, %s238
      %p249 = scmp.eq.s32.totalorder %s25, 0
      %p250 = por %p248, %p249
      %p251 = scmp.ne.s32.totalorder %s237, %s238
      %p252 = scmp.eq.s32.totalorder %s26, 1
      %p253 = por %p251, %p252
      %p255 = scmp.ne.s32.totalorder %s238, %s254
      %p256 = scmp.eq.s32.totalorder %s26, 0
      %p257 = por %p255, %p256
      %p258 = scmp.le.s32.totalorder 1, %s20
      %p259 = scmp.lt.s32.totalorder %s20, 3
      %p260 = pnand %p258, %p259
      %p261 = pneg %p260
      // Predicated region
      $region9: #{tpu_custom_call.1} parent=5 // pred_check
        _
      $region10: #{tpu_custom_call.1} parent=5 // pred_check_branch
        %263 = sbr.rel (%p260) target = $region12
      $region11: #{tpu_custom_call.1} parent=5 // pred_region
        %s264 = ssub.s32 %s20, 1
        // Predicated region
        $region13: #{tpu_custom_call.1} parent=11 // pred_check
          %p265 = pneg %p93
        $region14: #{tpu_custom_call.1} parent=11 // pred_check_branch
          %267 = sbr.rel (%p265) target = $region16
        $region15: #{tpu_custom_call.1} parent=11 // pred_region
          _
        $region16: #{tpu_custom_call.1} parent=11 // pred_fallthru
          _
        // Predicated region
        $region17: #{tpu_custom_call.1} parent=11 // pred_check
          %p268 = pneg %p114
        $region18: #{tpu_custom_call.1} parent=11 // pred_check_branch
          %270 = sbr.rel (%p268) target = $region20
        $region19: #{tpu_custom_call.1} parent=11 // pred_region
          _
        $region20: #{tpu_custom_call.1} parent=11 // pred_fallthru
          _
        // Predicated region
        $region21: #{tpu_custom_call.1} parent=11 // pred_check
          %p271 = pneg %p135
        $region22: #{tpu_custom_call.1} parent=11 // pred_check_branch
          %273 = sbr.rel (%p271) target = $region24
        $region23: #{tpu_custom_call.1} parent=11 // pred_region
          _
        $region24: #{tpu_custom_call.1} parent=11 // pred_fallthru
          _
        // Predicated region
        $region25: #{tpu_custom_call.1} parent=11 // pred_check
          %p274 = pneg %p156
        $region26: #{tpu_custom_call.1} parent=11 // pred_check_branch
          %276 = sbr.rel (%p274) target = $region28
        $region27: #{tpu_custom_call.1} parent=11 // pred_region
          _
        $region28: #{tpu_custom_call.1} parent=11 // pred_fallthru
          _
        // Predicated region
        $region29: #{tpu_custom_call.1} parent=11 // pred_check
          %p277 = pneg %p177
        $region30: #{tpu_custom_call.1} parent=11 // pred_check_branch
          %279 = sbr.rel (%p277) target = $region32
        $region31: #{tpu_custom_call.1} parent=11 // pred_region
          _
        $region32: #{tpu_custom_call.1} parent=11 // pred_fallthru
          _
        // Predicated region
        $region33: #{tpu_custom_call.1} parent=11 // pred_check
          %p280 = pneg %p198
        $region34: #{tpu_custom_call.1} parent=11 // pred_check_branch
          %282 = sbr.rel (%p280) target = $region36
        $region35: #{tpu_custom_call.1} parent=11 // pred_region
          %s284 = ssub.s32 16, 16
          %285 = vsyncadd [#allocation4], %s284
          %s287 = sshll.u32 %s7, 4
          %s288 = int_to_ptr.vmem [resolvable:$true] %s287
          %290 = dma.vmem_to_smem %s288, 16, [#allocation2], [#allocation4]
        $region36: #{tpu_custom_call.1} parent=11 // pred_fallthru
          _
      $region12: #{tpu_custom_call.1} parent=5 // pred_fallthru
        _
      %p291 = scmp.lt.s32.totalorder %s20, 2
      // Predicated region
      $region37: #{tpu_custom_call.1} parent=5 // pred_check
        %p292 = pneg %p291
      $region38: #{tpu_custom_call.1} parent=5 // pred_check_branch
        %294 = sbr.rel (%p292) target = $region40
      $region39: #{tpu_custom_call.1} parent=5 // pred_region
        // Predicated region
        $region41: #{tpu_custom_call.1} parent=39 // pred_check
          %p295 = pneg %p40
        $region42: #{tpu_custom_call.1} parent=39 // pred_check_branch
          %297 = sbr.rel (%p295) target = $region44
        $region43: #{tpu_custom_call.1} parent=39 // pred_region
          %p298 = scmp.lt.s32.totalorder %s20, 1
          %s299 = scalar_select %p298, %s20, 1
          %s300 = smul.addr %s299, 8
          %s301 = smul.addr %s300, 8
          %s302 = scalar_lea.vmem %s0, %s301
        $region44: #{tpu_custom_call.1} parent=39 // pred_fallthru
          _
        // Predicated region
        $region45: #{tpu_custom_call.1} parent=39 // pred_check
          %p303 = pneg %p66
        $region46: #{tpu_custom_call.1} parent=39 // pred_check_branch
          %305 = sbr.rel (%p303) target = $region48
        $region47: #{tpu_custom_call.1} parent=39 // pred_region
          %p306 = scmp.lt.s32.totalorder %s20, 1
          %s307 = scalar_select %p306, %s20, 1
          %s308 = scalar_lea.vmem %s1, %s307
        $region48: #{tpu_custom_call.1} parent=39 // pred_fallthru
          _
      $region40: #{tpu_custom_call.1} parent=5 // pred_fallthru
        _
      %p309 = scmp.le.s32.totalorder 1, %s20
      %p310 = scmp.lt.s32.totalorder %s20, 3
      %p311 = pnand %p309, %p310
      %p312 = pneg %p311
      // Predicated region
      $region49: #{tpu_custom_call.1} parent=5 // pred_check
        _
      $region50: #{tpu_custom_call.1} parent=5 // pred_check_branch
        %314 = sbr.rel (%p311) target = $region52
      $region51: #{tpu_custom_call.1} parent=5 // pred_region
        %s315 = ssub.s32 %s20, 1
        // Predicated region
        $region53: #{tpu_custom_call.1} parent=51 // pred_check
          %p316 = pneg %p198
        $region54: #{tpu_custom_call.1} parent=51 // pred_check_branch
          %318 = sbr.rel (%p316) target = $region56
        $region55: #{tpu_custom_call.1} parent=51 // pred_region
          %319 = dma.done [#allocation4], 16
        $region56: #{tpu_custom_call.1} parent=51 // pred_fallthru
          _
        %320 = sfence
        %p321 = scmp.lt.s32.totalorder %s25, 1
        %s322 = scalar_select %p321, %s25, 1
        %s323 = smul.addr %s322, 8
        %s324 = smul.addr %s323, 8
        %s325 = scalar_lea.vmem %s0, %s324
        %p326 = pneg %p46
        %p327 = pneg %p43
        %p328 = scmp.lt.s32.totalorder %s25, 1
        %s329 = scalar_select %p328, %s25, 1
        %s330 = scalar_lea.vmem %s1, %s329
        %p331 = pneg %p72
        %p332 = pneg %p69
        %p333 = pneg %p93
        %p334 = pneg %p90
        %p335 = pneg %p114
        %p336 = pneg %p111
        %p337 = pneg %p135
        %p338 = pneg %p132
        %p339 = pneg %p156
        %p340 = pneg %p153
        %p341 = pneg %p177
        %p342 = pneg %p174
        %p343 = pneg %p198
        %p344 = pneg %p195
        %p345 = pneg %p224
        %p346 = pneg %p221
        %p347 = scmp.lt.s32.totalorder %s25, 1
        %s348 = scalar_select %p347, %s25, 1
        %s349 = smul.addr %s348, 8
        %s350 = smul.addr %s349, 8
        %s351 = scalar_lea.vmem %s8, %s350
        %p352 = pneg %p250
        %p353 = pneg %p247
        %s354 = sand.u32 %s237, 1
        %s355 = scalar_lea.sflag [#allocation3], %s354
        %s356 = sand.u32 %s237, 1
        %s357 = smul.addr %s356, 128
        %s358 = scalar_lea.vmem [#allocation5], %s357
        %p359 = scmp.lt.s32.totalorder %s25, 1
        %s360 = scalar_select %p359, %s25, 1
        %s361 = smul.addr %s360, 8
        %s362 = smul.addr %s361, 8
        %s363 = scalar_lea.vmem %s0, %s362
        %p364 = scmp.lt.s32.totalorder %s25, 1
        %s365 = scalar_select %p364, %s25, 1
        %s366 = scalar_lea.vmem %s1, %s365
        %p367 = scmp.lt.s32.totalorder %s25, 1
        %s368 = scalar_select %p367, %s25, 1
        %s369 = smul.addr %s368, 8
        %s370 = smul.addr %s369, 8
        %s371 = scalar_lea.vmem %s8, %s370
        %v373 = vld [vmem:[%s363] sm:$0xff]
        %v374 = vld [vmem:[%s363 + $0x8] sm:$0xff]
        %v375 = vld [vmem:[%s363 + $0x10] sm:$0xff]
        %v376 = vld [vmem:[%s363 + $0x18] sm:$0xff]
        %v377 = vld [vmem:[%s363 + $0x20] sm:$0xff]
        %v378 = vld [vmem:[%s363 + $0x28] sm:$0xff]
        %v379 = vld [vmem:[%s363 + $0x30] sm:$0xff]
        %v380 = vld [vmem:[%s363 + $0x38] sm:$0xff]
        %v381 = vld [vmem:[%s366] sm:$0x1]
        %vm382 = vcmask 261120
        %v383 = vsel %vm382, %v373, 0.0
        %v384 = vsel %vm382, %v374, 0.0
        %v385 = vadd.f32 %v383, %v384
        %v386 = vsel %vm382, %v375, 0.0
        %v387 = vadd.f32 %v385, %v386
        %v388 = vsel %vm382, %v376, 0.0
        %v389 = vadd.f32 %v387, %v388
        %v390 = vsel %vm382, %v377, 0.0
        %v391 = vadd.f32 %v389, %v390
        %v392 = vsel %vm382, %v378, 0.0
        %v393 = vadd.f32 %v391, %v392
        %v394 = vsel %vm382, %v379, 0.0
        %v395 = vadd.f32 %v393, %v394
        %v396 = vsel %vm382, %v380, 0.0
        %v397 = vadd.f32 %v395, %v396
        %v398 = vrot.slane %v397, 4
        %v399 = vadd.f32 %v397, %v398
        %v400 = vrot.slane %v399, 2
        %v401 = vadd.f32 %v399, %v400
        %v402 = vrot.slane %v401, 1
        %v403 = vadd.f32 %v401, %v402
        %v404 = vrcp.pop 64.0
        %v405 = vmul.f32 %v403, %v404
        %v406 = vsub.f32 %v373, %v405
        %v407 = vsub.f32 %v374, %v405
        %v408 = vsub.f32 %v375, %v405
        %v409 = vsub.f32 %v376, %v405
        %v410 = vsub.f32 %v377, %v405
        %v411 = vsub.f32 %v378, %v405
        %v412 = vsub.f32 %v379, %v405
        %v413 = vsub.f32 %v380, %v405
        %v414 = vmul.f32 %v406, %v406
        %v415 = vmul.f32 %v407, %v407
        %v416 = vmul.f32 %v408, %v408
        %v417 = vmul.f32 %v409, %v409
        %v418 = vmul.f32 %v410, %v410
        %v419 = vmul.f32 %v411, %v411
        %v420 = vmul.f32 %v412, %v412
        %v421 = vmul.f32 %v413, %v413
        %v422 = vsel %vm382, %v414, 0.0
        %v423 = vsel %vm382, %v415, 0.0
        %v424 = vadd.f32 %v422, %v423
        %v425 = vsel %vm382, %v416, 0.0
        %v426 = vadd.f32 %v424, %v425
        %v427 = vsel %vm382, %v417, 0.0
        %v428 = vadd.f32 %v426, %v427
        %v429 = vsel %vm382, %v418, 0.0
        %v430 = vadd.f32 %v428, %v429
        %v431 = vsel %vm382, %v419, 0.0
        %v432 = vadd.f32 %v430, %v431
        %v433 = vsel %vm382, %v420, 0.0
        %v434 = vadd.f32 %v432, %v433
        %v435 = vsel %vm382, %v421, 0.0
        %v436 = vadd.f32 %v434, %v435
        %v437 = vrot.slane %v436, 4
        %v438 = vadd.f32 %v436, %v437
        %v439 = vrot.slane %v438, 2
        %v440 = vadd.f32 %v438, %v439
        %v441 = vrot.slane %v440, 1
        %v442 = vadd.f32 %v440, %v441
        %v443 = vmul.f32 %v442, %v404
        %v444 = vadd.f32 %v443, 1e-05
        %v445 = vrsqrt.pop %v444
        %v446 = vmul.f32 %v406, %v445
        %v447 = vmul.f32 %v407, %v445
        %v448 = vmul.f32 %v408, %v445
        %v449 = vmul.f32 %v409, %v445
        %v450 = vmul.f32 %v410, %v445
        %v451 = vmul.f32 %v411, %v445
        %v452 = vmul.f32 %v412, %v445
        %v453 = vmul.f32 %v413, %v445
        %v454 = vpack.c.bf16 %v381, %v381
        %v455 = vld [vmem:[%s5] sm:$0xff]
        %v456 = vld [vmem:[%s5 + $0x8] sm:$0xff]
        %v457 = vld [vmem:[%s6] sm:$0x3]
        %v460 = vunpack.c.l.b16 %v455
        %v461 = vunpack.c.h.b16 %v455
        %v462 = vunpack.c.l.b16 %v456
        %v463 = vunpack.c.h.b16 %v456
        %v464 = vpack.c.b16 %v462, %v460
        %v465 = vpack.c.b16 %v463, %v461
        %v469 = vlaneseq
        %v470 = vshrl.u32 %v469, 7
        %v471 = vsub.s32 0, %v470
        %v472 = vrot.slane %v457, %v471
        %v473 = vlaneseq
        %v474 = vshrl.u32 %v473, 7
        %v475 = vsub.s32 1, %v474
        %v476 = vrot.slane %v457, %v475
        %vm479 = vcmask 130048
        %v481 = vsel %vm479, %v454, 0
        %483 = vmatprep.subr.bf16.mxu0 %v465
        %484 = vmatpush1.bf16.msra.mxu0 %v464
        %485 = vmatprep.subr.bf16.mxu0 0
        %486 = vmatpush1.bf16.msra.mxu0 0
        %487 = vmatprep.subr.bf16.mxu0 0
        %488 = vmatpush1.bf16.msra.mxu0 0
        %489 = vmatprep.subr.bf16.mxu0 0
        %490 = vmatpush1.bf16.msra.mxu0 0
        %491 = vmatprep.subr.bf16.mxu0 0
        %492 = vmatpush1.bf16.msra.mxu0 0
        %493 = vmatprep.subr.bf16.mxu0 0
        %494 = vmatpush1.bf16.msra.mxu0 0
        %495 = vmatprep.subr.bf16.mxu0 0
        %496 = vmatpush1.bf16.msra.mxu0 0
        %497 = vmatprep.subr.bf16.mxu0 0
        %498 = vmatpush1.bf16.msra.mxu0 0
        %499 = vmatprep.subr.bf16.mxu0 0
        %500 = vmatpush1.bf16.msra.mxu0 0
        %501 = vmatprep.subr.bf16.mxu0 0
        %502 = vmatpush1.bf16.msra.mxu0 0
        %503 = vmatprep.subr.bf16.mxu0 0
        %504 = vmatpush1.bf16.msra.mxu0 0
        %505 = vmatprep.subr.bf16.mxu0 0
        %506 = vmatpush1.bf16.msra.mxu0 0
        %507 = vmatprep.subr.bf16.mxu0 0
        %508 = vmatpush1.bf16.msra.mxu0 0
        %509 = vmatprep.subr.bf16.mxu0 0
        %510 = vmatpush1.bf16.msra.mxu0 0
        %511 = vmatprep.subr.bf16.mxu0 0
        %512 = vmatpush1.bf16.msra.mxu0 0
        %513 = vmatprep.subr.bf16.mxu0 0
        %514 = vmatpush1.bf16.msra.mxu0 0
        %515 = vmatprep.mubr.bf16.mxu0 0
        %516 = vmatmul.mubr.bf16.gmra.mrb[0].mxu0 %v481
        %v517 = vpop.f32.mrb[0].mxu0
        %v518 = vadd.f32 %v472, %v517
        %v519 = vpop.f32.mrb[0].mxu0
        %v520 = vadd.f32 %v476, %v519
        %v521 = vpop.f32.mrb[0].mxu0
        %v522 = vpop.f32.mrb[0].mxu0
        %523 = vdwg.mxu0
        %v524 = vxor.u32 %v518, 2147483648
        %v525 = vmul.f32 %v524, 1.442695
        %v526 = vpow.pop %v525
        %v527 = vadd.f32 %v526, 1.0
        %v528 = vrcp.pop %v527
        %v529 = vmul.f32 1.0, %v528
        %v530 = vld [vmem:[%s4] sm:$0x3]
        %s531 = sld [smem:[#allocation2]]
        %s532 = sld [smem:[#allocation2 + $0x1]]
        %v533 = vpack.c.bf16 %v447, %v446
        %v534 = vpack.c.bf16 %v449, %v448
        %v535 = vpack.c.bf16 %v451, %v450
        %v536 = vpack.c.bf16 %v453, %v452
        %v537 = vld [vmem:[%s2] sm:$0xf]
        %v538 = vld [vmem:[%s2 + $0x4] sm:$0xf]
        %v539 = vld [vmem:[%s2 + $0x8] sm:$0xf]
        %v540 = vld [vmem:[%s2 + $0xc] sm:$0xf]
        %v545 = vunpack.c.l.b16 %v537
        %v546 = vunpack.c.l.b16 %v538
        %v547 = vunpack.c.l.b16 %v539
        %v548 = vunpack.c.l.b16 %v540
        %v549 = vpack.c.b16 %v546, %v545
        %v550 = vpack.c.b16 %v548, %v547
        %v554 = vsel %vm382, %v533, 0
        %v557 = vsel %vm382, %v534, 0
        %v560 = vsel %vm382, %v535, 0
        %v563 = vsel %vm382, %v536, 0
        %565 = vmatprep.subr.bf16.mxu0 0
        %566 = vmatpush1.bf16.msra.mxu0 %v549
        %567 = vmatprep.subr.bf16.mxu0 0
        %568 = vmatpush1.bf16.msra.mxu0 %v550
        %569 = vmatprep.subr.bf16.mxu0 0
        %570 = vmatpush1.bf16.msra.mxu0 0
        %571 = vmatprep.subr.bf16.mxu0 0
        %572 = vmatpush1.bf16.msra.mxu0 0
        %573 = vmatprep.subr.bf16.mxu0 0
        %574 = vmatpush1.bf16.msra.mxu0 0
        %575 = vmatprep.subr.bf16.mxu0 0
        %576 = vmatpush1.bf16.msra.mxu0 0
        %577 = vmatprep.subr.bf16.mxu0 0
        %578 = vmatpush1.bf16.msra.mxu0 0
        %579 = vmatprep.subr.bf16.mxu0 0
        %580 = vmatpush1.bf16.msra.mxu0 0
        %581 = vmatprep.subr.bf16.mxu0 0
        %582 = vmatpush1.bf16.msra.mxu0 0
        %583 = vmatprep.subr.bf16.mxu0 0
        %584 = vmatpush1.bf16.msra.mxu0 0
        %585 = vmatprep.subr.bf16.mxu0 0
        %586 = vmatpush1.bf16.msra.mxu0 0
        %587 = vmatprep.subr.bf16.mxu0 0
        %588 = vmatpush1.bf16.msra.mxu0 0
        %589 = vmatprep.subr.bf16.mxu0 0
        %590 = vmatpush1.bf16.msra.mxu0 0
        %591 = vmatprep.subr.bf16.mxu0 0
        %592 = vmatpush1.bf16.msra.mxu0 0
        %593 = vmatprep.subr.bf16.mxu0 0
        %594 = vmatpush1.bf16.msra.mxu0 0
        %595 = vmatprep.subr.bf16.mxu0 0
        %596 = vmatpush1.bf16.msra.mxu0 0
        %597 = vmatprep.mubr.bf16.mxu0 0
        %598 = vmatmul.mubr.bf16.gmra.mrb[0].mxu0 %v554
        %v599 = vpop.f32.mrb[0].mxu0
        %v600 = vadd.f32 0.0, %v599
        %v601 = vpop.f32.mrb[0].mxu0
        %v602 = vpop.f32.mrb[0].mxu0
        %v603 = vadd.f32 0.0, %v602
        %v604 = vpop.f32.mrb[0].mxu0
        %605 = vmatprep.mubr.bf16.mxu0 0
        %606 = vmatmul.mubr.bf16.gmra.mrb[0].mxu0 %v557
        %v607 = vpop.f32.mrb[0].mxu0
        %v608 = vadd.f32 0.0, %v607
        %v609 = vpop.f32.mrb[0].mxu0
        %v610 = vpop.f32.mrb[0].mxu0
        %v611 = vadd.f32 0.0, %v610
        %v612 = vpop.f32.mrb[0].mxu0
        %613 = vmatprep.mubr.bf16.mxu0 0
        %614 = vmatmul.mubr.bf16.gmra.mrb[0].mxu0 %v560
        %v615 = vpop.f32.mrb[0].mxu0
        %v616 = vadd.f32 0.0, %v615
        %v617 = vpop.f32.mrb[0].mxu0
        %v618 = vpop.f32.mrb[0].mxu0
        %v619 = vadd.f32 0.0, %v618
        %v620 = vpop.f32.mrb[0].mxu0
        %621 = vmatprep.mubr.bf16.mxu0 0
        %622 = vmatmul.mubr.bf16.gmra.mrb[0].mxu0 %v563
        %v623 = vpop.f32.mrb[0].mxu0
        %v624 = vadd.f32 0.0, %v623
        %v625 = vpop.f32.mrb[0].mxu0
        %v626 = vpop.f32.mrb[0].mxu0
        %v627 = vadd.f32 0.0, %v626
        %v628 = vpop.f32.mrb[0].mxu0
        %629 = vdwg.mxu0
        %v630 = vlaneseq
        %v631 = vshrl.u32 %v630, 7
        %v632 = vsub.s32 0, %v631
        %v633 = vrot.slane %v518, %v632
        %v634 = vadd.f32 %v600, %v633
        %v635 = vadd.f32 %v603, %v633
        %v636 = vadd.f32 %v608, %v633
        %v637 = vadd.f32 %v611, %v633
        %v638 = vadd.f32 %v616, %v633
        %v639 = vadd.f32 %v619, %v633
        %v640 = vadd.f32 %v624, %v633
        %v641 = vadd.f32 %v627, %v633
        %v642 = vpack.c.bf16 %v635, %v634
        %v643 = vpack.c.bf16 %v637, %v636
        %v644 = vpack.c.bf16 %v639, %v638
        %v645 = vpack.c.bf16 %v641, %v640
        %v646 = vpack.c.bf16 %v603, %v600
        %v647 = vpack.c.bf16 %v611, %v608
        %v648 = vpack.c.bf16 %v619, %v616
        %v649 = vpack.c.bf16 %v627, %v624
        %654 = vrot.lane.b32.xlu0 %v646, 96
        %v655 = vpop.permute.xlu0 %654
        %656 = vrot.lane.b32.xlu0 %v647, 96
        %v657 = vpop.permute.xlu0 %656
        %658 = vrot.lane.b32.xlu0 %v648, 96
        %v659 = vpop.permute.xlu0 %658
        %660 = vrot.lane.b32.xlu0 %v649, 96
        %v661 = vpop.permute.xlu0 %660
        %vm662 = vcmask 64512
        %v664 = vsel %vm662, %v642, 0
        %v667 = vsel %vm662, %v643, 0
        %v670 = vsel %vm662, %v644, 0
        %v673 = vsel %vm662, %v645, 0
        %v676 = vsel %vm662, %v655, 0
        %v679 = vsel %vm662, %v657, 0
        %v682 = vsel %vm662, %v659, 0
        %v685 = vsel %vm662, %v661, 0
        %687 = vmatprep.subr.bf16.mxu0 0
        %688 = vmatpush1.bf16.xpose.msra.mxu0 %v676
        %689 = vmatprep.subr.bf16.mxu0 0
        %690 = vmatpush1.bf16.xpose.msra.mxu0 %v679
        %691 = vmatprep.subr.bf16.mxu0 0
        %692 = vmatpush1.bf16.xpose.msra.mxu0 %v682
        %693 = vmatprep.subr.bf16.mxu0 0
        %694 = vmatpush1.bf16.xpose.msra.mxu0 %v685
        %695 = vmatprep.subr.bf16.mxu0 0
        %696 = vmatpush1.bf16.xpose.msra.mxu0 0
        %697 = vmatprep.subr.bf16.mxu0 0
        %698 = vmatpush1.bf16.xpose.msra.mxu0 0
        %699 = vmatprep.subr.bf16.mxu0 0
        %700 = vmatpush1.bf16.xpose.msra.mxu0 0
        %701 = vmatprep.subr.bf16.mxu0 0
        %702 = vmatpush1.bf16.xpose.msra.mxu0 0
        %703 = vmatprep.subr.bf16.mxu0 0
        %704 = vmatpush1.bf16.xpose.msra.mxu0 0
        %705 = vmatprep.subr.bf16.mxu0 0
        %706 = vmatpush1.bf16.xpose.msra.mxu0 0
        %707 = vmatprep.subr.bf16.mxu0 0
        %708 = vmatpush1.bf16.xpose.msra.mxu0 0
        %709 = vmatprep.subr.bf16.mxu0 0
        %710 = vmatpush1.bf16.xpose.msra.mxu0 0
        %711 = vmatprep.subr.bf16.mxu0 0
        %712 = vmatpush1.bf16.xpose.msra.mxu0 0
        %713 = vmatprep.subr.bf16.mxu0 0
        %714 = vmatpush1.bf16.xpose.msra.mxu0 0
        %715 = vmatprep.subr.bf16.mxu0 0
        %716 = vmatpush1.bf16.xpose.msra.mxu0 0
        %717 = vmatprep.subr.bf16.mxu0 0
        %718 = vmatpush1.bf16.xpose.msra.mxu0 0
        %719 = vmatprep.mubr.bf16.mxu0 0
        %720 = vmatmul.mubr.bf16.gmra.mrb[0].mxu0 %v664
        %v721 = vpop.f32.mrb[0].mxu0
        %v722 = vadd.f32 0.0, %v721
        %v723 = vpop.f32.mrb[0].mxu0
        %v724 = vpop.f32.mrb[0].mxu0
        %v725 = vadd.f32 0.0, %v724
        %v726 = vpop.f32.mrb[0].mxu0
        %727 = vmatprep.mubr.bf16.mxu0 0
        %728 = vmatmul.mubr.bf16.gmra.mrb[0].mxu0 %v667
        %v729 = vpop.f32.mrb[0].mxu0
        %v730 = vadd.f32 0.0, %v729
        %v731 = vpop.f32.mrb[0].mxu0
        %v732 = vpop.f32.mrb[0].mxu0
        %v733 = vadd.f32 0.0, %v732
        %v734 = vpop.f32.mrb[0].mxu0
        %735 = vmatprep.mubr.bf16.mxu0 0
        %736 = vmatmul.mubr.bf16.gmra.mrb[0].mxu0 %v670
        %v737 = vpop.f32.mrb[0].mxu0
        %v738 = vadd.f32 0.0, %v737
        %v739 = vpop.f32.mrb[0].mxu0
        %v740 = vpop.f32.mrb[0].mxu0
        %v741 = vadd.f32 0.0, %v740
        %v742 = vpop.f32.mrb[0].mxu0
        %743 = vmatprep.mubr.bf16.mxu0 0
        %744 = vmatmul.mubr.bf16.gmra.mrb[0].mxu0 %v673
        %v745 = vpop.f32.mrb[0].mxu0
        %v746 = vadd.f32 0.0, %v745
        %v747 = vpop.f32.mrb[0].mxu0
        %v748 = vpop.f32.mrb[0].mxu0
        %v749 = vadd.f32 0.0, %v748
        %v750 = vpop.f32.mrb[0].mxu0
        %751 = vdwg.mxu0
        %v752 = vmul.f32 %v722, 0.35355338
        %v753 = vmul.f32 %v725, 0.35355338
        %v754 = vmul.f32 %v730, 0.35355338
        %v755 = vmul.f32 %v733, 0.35355338
        %v756 = vmul.f32 %v738, 0.35355338
        %v757 = vmul.f32 %v741, 0.35355338
        %v758 = vmul.f32 %v746, 0.35355338
        %v759 = vmul.f32 %v749, 0.35355338
        %vm760 = vcmask 523264
        %v761 = vsel %vm760, %v752, -inf
        %762 = vmax.xlane.f32.xlu0 %v761
        %v763 = vpop.xlane.xlu0 %762
        %v764 = vsel %vm760, %v753, -inf
        %765 = vmax.xlane.f32.xlu0 %v764
        %v766 = vpop.xlane.xlu0 %765
        %v767 = vsel %vm760, %v754, -inf
        %768 = vmax.xlane.f32.xlu0 %v767
        %v769 = vpop.xlane.xlu0 %768
        %v770 = vsel %vm760, %v755, -inf
        %771 = vmax.xlane.f32.xlu0 %v770
        %v772 = vpop.xlane.xlu0 %771
        %v773 = vsel %vm760, %v756, -inf
        %774 = vmax.xlane.f32.xlu0 %v773
        %v775 = vpop.xlane.xlu0 %774
        %v776 = vsel %vm760, %v757, -inf
        %777 = vmax.xlane.f32.xlu0 %v776
        %v778 = vpop.xlane.xlu0 %777
        %v779 = vsel %vm760, %v758, -inf
        %780 = vmax.xlane.f32.xlu0 %v779
        %v781 = vpop.xlane.xlu0 %780
        %v782 = vsel %vm760, %v759, -inf
        %783 = vmax.xlane.f32.xlu0 %v782
        %v784 = vpop.xlane.xlu0 %783
        %v785 = vsub.f32 %v752, %v763
        %v786 = vsub.f32 %v753, %v766
        %v787 = vsub.f32 %v754, %v769
        %v788 = vsub.f32 %v755, %v772
        %v789 = vsub.f32 %v756, %v775
        %v790 = vsub.f32 %v757, %v778
        %v791 = vsub.f32 %v758, %v781
        %v792 = vsub.f32 %v759, %v784
        %v793 = vmul.f32 %v785, 1.442695
        %v794 = vpow.pop %v793
        %v795 = vmul.f32 %v786, 1.442695
        %v796 = vpow.pop %v795
        %v797 = vmul.f32 %v787, 1.442695
        %v798 = vpow.pop %v797
        %v799 = vmul.f32 %v788, 1.442695
        %v800 = vpow.pop %v799
        %v801 = vmul.f32 %v789, 1.442695
        %v802 = vpow.pop %v801
        %v803 = vmul.f32 %v790, 1.442695
        %v804 = vpow.pop %v803
        %v805 = vmul.f32 %v791, 1.442695
        %v806 = vpow.pop %v805
        %v807 = vmul.f32 %v792, 1.442695
        %v808 = vpow.pop %v807
        %v809 = vsel %vm760, %v794, 0.0
        %810 = vadd.xlane.f32.xlu0 %v809
        %v811 = vpop.xlane.xlu0 %810
        %v812 = vsel %vm760, %v796, 0.0
        %813 = vadd.xlane.f32.xlu0 %v812
        %v814 = vpop.xlane.xlu0 %813
        %v815 = vsel %vm760, %v798, 0.0
        %816 = vadd.xlane.f32.xlu0 %v815
        %v817 = vpop.xlane.xlu0 %816
        %v818 = vsel %vm760, %v800, 0.0
        %819 = vadd.xlane.f32.xlu0 %v818
        %v820 = vpop.xlane.xlu0 %819
        %v821 = vsel %vm760, %v802, 0.0
        %822 = vadd.xlane.f32.xlu0 %v821
        %v823 = vpop.xlane.xlu0 %822
        %v824 = vsel %vm760, %v804, 0.0
        %825 = vadd.xlane.f32.xlu0 %v824
        %v826 = vpop.xlane.xlu0 %825
        %v827 = vsel %vm760, %v806, 0.0
        %828 = vadd.xlane.f32.xlu0 %v827
        %v829 = vpop.xlane.xlu0 %828
        %v830 = vsel %vm760, %v808, 0.0
        %831 = vadd.xlane.f32.xlu0 %v830
        %v832 = vpop.xlane.xlu0 %831
        %v833 = vrcp.pop %v811
        %v834 = vrcp.pop %v814
        %v835 = vrcp.pop %v817
        %v836 = vrcp.pop %v820
        %v837 = vrcp.pop %v823
        %v838 = vrcp.pop %v826
        %v839 = vrcp.pop %v829
        %v840 = vrcp.pop %v832
        %v841 = vmul.f32 %v794, %v833
        %v842 = vmul.f32 %v796, %v834
        %v843 = vmul.f32 %v798, %v835
        %v844 = vmul.f32 %v800, %v836
        %v845 = vmul.f32 %v802, %v837
        %v846 = vmul.f32 %v804, %v838
        %v847 = vmul.f32 %v806, %v839
        %v848 = vmul.f32 %v808, %v840
        %v849 = vpack.c.bf16 %v842, %v841
        %v850 = vpack.c.bf16 %v844, %v843
        %v851 = vpack.c.bf16 %v846, %v845
        %v852 = vpack.c.bf16 %v848, %v847
        %853 = vrot.lane.b32.xlu0 %v646, 64
        %v854 = vpop.permute.xlu0 %853
        %855 = vrot.lane.b32.xlu0 %v647, 64
        %v856 = vpop.permute.xlu0 %855
        %857 = vrot.lane.b32.xlu0 %v648, 64
        %v858 = vpop.permute.xlu0 %857
        %859 = vrot.lane.b32.xlu0 %v649, 64
        %v860 = vpop.permute.xlu0 %859
        %v866 = vsel %vm760, %v849, 0
        %v869 = vsel %vm760, %v850, 0
        %v872 = vsel %vm760, %v851, 0
        %v875 = vsel %vm760, %v852, 0
        %877 = vmatprep.subr.bf16.mxu0 0
        %878 = vmatpush1.bf16.msra.mxu0 %v854
        %879 = vmatprep.subr.bf16.mxu0 0
        %880 = vmatpush1.bf16.msra.mxu0 %v856
        %881 = vmatprep.subr.bf16.mxu0 0
        %882 = vmatpush1.bf16.msra.mxu0 %v858
        %883 = vmatprep.subr.bf16.mxu0 0
        %884 = vmatpush1.bf16.msra.mxu0 %v860
        %885 = vmatprep.subr.bf16.mxu0 0
        %886 = vmatpush1.bf16.msra.mxu0 0
        %887 = vmatprep.subr.bf16.mxu0 0
        %888 = vmatpush1.bf16.msra.mxu0 0
        %889 = vmatprep.subr.bf16.mxu0 0
        %890 = vmatpush1.bf16.msra.mxu0 0
        %891 = vmatprep.subr.bf16.mxu0 0
        %892 = vmatpush1.bf16.msra.mxu0 0
        %893 = vmatprep.subr.bf16.mxu0 0
        %894 = vmatpush1.bf16.msra.mxu0 0
        %895 = vmatprep.subr.bf16.mxu0 0
        %896 = vmatpush1.bf16.msra.mxu0 0
        %897 = vmatprep.subr.bf16.mxu0 0
        %898 = vmatpush1.bf16.msra.mxu0 0
        %899 = vmatprep.subr.bf16.mxu0 0
        %900 = vmatpush1.bf16.msra.mxu0 0
        %901 = vmatprep.subr.bf16.mxu0 0
        %902 = vmatpush1.bf16.msra.mxu0 0
        %903 = vmatprep.subr.bf16.mxu0 0
        %904 = vmatpush1.bf16.msra.mxu0 0
        %905 = vmatprep.subr.bf16.mxu0 0
        %906 = vmatpush1.bf16.msra.mxu0 0
        %907 = vmatprep.subr.bf16.mxu0 0
        %908 = vmatpush1.bf16.msra.mxu0 0
        %909 = vmatprep.mubr.bf16.mxu0 0
        %910 = vmatmul.mubr.bf16.gmra.mrb[0].mxu0 %v866
        %v911 = vpop.f32.mrb[0].mxu0
        %v912 = vadd.f32 0.0, %v911
        %v913 = vpop.f32.mrb[0].mxu0
        %v914 = vpop.f32.mrb[0].mxu0
        %v915 = vadd.f32 0.0, %v914
        %v916 = vpop.f32.mrb[0].mxu0
        %917 = vmatprep.mubr.bf16.mxu0 0
        %918 = vmatmul.mubr.bf16.gmra.mrb[0].mxu0 %v869
        %v919 = vpop.f32.mrb[0].mxu0
        %v920 = vadd.f32 0.0, %v919
        %v921 = vpop.f32.mrb[0].mxu0
        %v922 = vpop.f32.mrb[0].mxu0
        %v923 = vadd.f32 0.0, %v922
        %v924 = vpop.f32.mrb[0].mxu0
        %925 = vmatprep.mubr.bf16.mxu0 0
        %926 = vmatmul.mubr.bf16.gmra.mrb[0].mxu0 %v872
        %v927 = vpop.f32.mrb[0].mxu0
        %v928 = vadd.f32 0.0, %v927
        %v929 = vpop.f32.mrb[0].mxu0
        %v930 = vpop.f32.mrb[0].mxu0
        %v931 = vadd.f32 0.0, %v930
        %v932 = vpop.f32.mrb[0].mxu0
        %933 = vmatprep.mubr.bf16.mxu0 0
        %934 = vmatmul.mubr.bf16.gmra.mrb[0].mxu0 %v875
        %v935 = vpop.f32.mrb[0].mxu0
        %v936 = vadd.f32 0.0, %v935
        %v937 = vpop.f32.mrb[0].mxu0
        %v938 = vpop.f32.mrb[0].mxu0
        %v939 = vadd.f32 0.0, %v938
        %v940 = vpop.f32.mrb[0].mxu0
        %941 = vdwg.mxu0
        %946 = vrot.lane.b32.xlu0 %v642, 120
        %v947 = vpop.permute.xlu0 %946
        %948 = vrot.lane.b32.xlu0 %v643, 120
        %v949 = vpop.permute.xlu0 %948
        %950 = vrot.lane.b32.xlu0 %v644, 120
        %v951 = vpop.permute.xlu0 %950
        %952 = vrot.lane.b32.xlu0 %v645, 120
        %v953 = vpop.permute.xlu0 %952
        %954 = vrot.lane.b32.xlu0 %v646, 88
        %v955 = vpop.permute.xlu0 %954
        %956 = vrot.lane.b32.xlu0 %v647, 88
        %v957 = vpop.permute.xlu0 %956
        %958 = vrot.lane.b32.xlu0 %v648, 88
        %v959 = vpop.permute.xlu0 %958
        %960 = vrot.lane.b32.xlu0 %v649, 88
        %v961 = vpop.permute.xlu0 %960
        %v963 = vsel %vm662, %v947, 0
        %v966 = vsel %vm662, %v949, 0
        %v969 = vsel %vm662, %v951, 0
        %v972 = vsel %vm662, %v953, 0
        %v975 = vsel %vm662, %v955, 0
        %v978 = vsel %vm662, %v957, 0
        %v981 = vsel %vm662, %v959, 0
        %v984 = vsel %vm662, %v961, 0
        %986 = vmatprep.subr.bf16.mxu0 0
        %987 = vmatpush1.bf16.xpose.msra.mxu0 %v975
        %988 = vmatprep.subr.bf16.mxu0 0
        %989 = vmatpush1.bf16.xpose.msra.mxu0 %v978
        %990 = vmatprep.subr.bf16.mxu0 0
        %991 = vmatpush1.bf16.xpose.msra.mxu0 %v981
        %992 = vmatprep.subr.bf16.mxu0 0
        %993 = vmatpush1.bf16.xpose.msra.mxu0 %v984
        %994 = vmatprep.subr.bf16.mxu0 0
        %995 = vmatpush1.bf16.xpose.msra.mxu0 0
        %996 = vmatprep.subr.bf16.mxu0 0
        %997 = vmatpush1.bf16.xpose.msra.mxu0 0
        %998 = vmatprep.subr.bf16.mxu0 0
        %999 = vmatpush1.bf16.xpose.msra.mxu0 0
        %1000 = vmatprep.subr.bf16.mxu0 0
        %1001 = vmatpush1.bf16.xpose.msra.mxu0 0
        %1002 = vmatprep.subr.bf16.mxu0 0
        %1003 = vmatpush1.bf16.xpose.msra.mxu0 0
        %1004 = vmatprep.subr.bf16.mxu0 0
        %1005 = vmatpush1.bf16.xpose.msra.mxu0 0
        %1006 = vmatprep.subr.bf16.mxu0 0
        %1007 = vmatpush1.bf16.xpose.msra.mxu0 0
        %1008 = vmatprep.subr.bf16.mxu0 0
        %1009 = vmatpush1.bf16.xpose.msra.mxu0 0
        %1010 = vmatprep.subr.bf16.mxu0 0
        %1011 = vmatpush1.bf16.xpose.msra.mxu0 0
        %1012 = vmatprep.subr.bf16.mxu0 0
        %1013 = vmatpush1.bf16.xpose.msra.mxu0 0
        %1014 = vmatprep.subr.bf16.mxu0 0
        %1015 = vmatpush1.bf16.xpose.msra.mxu0 0
        %1016 = vmatprep.subr.bf16.mxu0 0
        %1017 = vmatpush1.bf16.xpose.msra.mxu0 0
        %1018 = vmatprep.mubr.bf16.mxu0 0
        %1019 = vmatmul.mubr.bf16.gmra.mrb[0].mxu0 %v963
        %v1020 = vpop.f32.mrb[0].mxu0
        %v1021 = vadd.f32 0.0, %v1020
        %v1022 = vpop.f32.mrb[0].mxu0
        %v1023 = vpop.f32.mrb[0].mxu0
        %v1024 = vadd.f32 0.0, %v1023
        %v1025 = vpop.f32.mrb[0].mxu0
        %1026 = vmatprep.mubr.bf16.mxu0 0
        %1027 = vmatmul.mubr.bf16.gmra.mrb[0].mxu0 %v966
        %v1028 = vpop.f32.mrb[0].mxu0
        %v1029 = vadd.f32 0.0, %v1028
        %v1030 = vpop.f32.mrb[0].mxu0
        %v1031 = vpop.f32.mrb[0].mxu0
        %v1032 = vadd.f32 0.0, %v1031
        %v1033 = vpop.f32.mrb[0].mxu0
        %1034 = vmatprep.mubr.bf16.mxu0 0
        %1035 = vmatmul.mubr.bf16.gmra.mrb[0].mxu0 %v969
        %v1036 = vpop.f32.mrb[0].mxu0
        %v1037 = vadd.f32 0.0, %v1036
        %v1038 = vpop.f32.mrb[0].mxu0
        %v1039 = vpop.f32.mrb[0].mxu0
        %v1040 = vadd.f32 0.0, %v1039
        %v1041 = vpop.f32.mrb[0].mxu0
        %1042 = vmatprep.mubr.bf16.mxu0 0
        %1043 = vmatmul.mubr.bf16.gmra.mrb[0].mxu0 %v972
        %v1044 = vpop.f32.mrb[0].mxu0
        %v1045 = vadd.f32 0.0, %v1044
        %v1046 = vpop.f32.mrb[0].mxu0
        %v1047 = vpop.f32.mrb[0].mxu0
        %v1048 = vadd.f32 0.0, %v1047
        %v1049 = vpop.f32.mrb[0].mxu0
        %1050 = vdwg.mxu0
        %v1051 = vmul.f32 %v1021, 0.35355338
        %v1052 = vmul.f32 %v1024, 0.35355338
        %v1053 = vmul.f32 %v1029, 0.35355338
        %v1054 = vmul.f32 %v1032, 0.35355338
        %v1055 = vmul.f32 %v1037, 0.35355338
        %v1056 = vmul.f32 %v1040, 0.35355338
        %v1057 = vmul.f32 %v1045, 0.35355338
        %v1058 = vmul.f32 %v1048, 0.35355338
        %v1059 = vsel %vm760, %v1051, -inf
        %1060 = vmax.xlane.f32.xlu0 %v1059
        %v1061 = vpop.xlane.xlu0 %1060
        %v1062 = vsel %vm760, %v1052, -inf
        %1063 = vmax.xlane.f32.xlu0 %v1062
        %v1064 = vpop.xlane.xlu0 %1063
        %v1065 = vsel %vm760, %v1053, -inf
        %1066 = vmax.xlane.f32.xlu0 %v1065
        %v1067 = vpop.xlane.xlu0 %1066
        %v1068 = vsel %vm760, %v1054, -inf
        %1069 = vmax.xlane.f32.xlu0 %v1068
        %v1070 = vpop.xlane.xlu0 %1069
        %v1071 = vsel %vm760, %v1055, -inf
        %1072 = vmax.xlane.f32.xlu0 %v1071
        %v1073 = vpop.xlane.xlu0 %1072
        %v1074 = vsel %vm760, %v1056, -inf
        %1075 = vmax.xlane.f32.xlu0 %v1074
        %v1076 = vpop.xlane.xlu0 %1075
        %v1077 = vsel %vm760, %v1057, -inf
        %1078 = vmax.xlane.f32.xlu0 %v1077
        %v1079 = vpop.xlane.xlu0 %1078
        %v1080 = vsel %vm760, %v1058, -inf
        %1081 = vmax.xlane.f32.xlu0 %v1080
        %v1082 = vpop.xlane.xlu0 %1081
        %v1083 = vsub.f32 %v1051, %v1061
        %v1084 = vsub.f32 %v1052, %v1064
        %v1085 = vsub.f32 %v1053, %v1067
        %v1086 = vsub.f32 %v1054, %v1070
        %v1087 = vsub.f32 %v1055, %v1073
        %v1088 = vsub.f32 %v1056, %v1076
        %v1089 = vsub.f32 %v1057, %v1079
        %v1090 = vsub.f32 %v1058, %v1082
        %v1091 = vmul.f32 %v1083, 1.442695
        %v1092 = vpow.pop %v1091
        %v1093 = vmul.f32 %v1084, 1.442695
        %v1094 = vpow.pop %v1093
        %v1095 = vmul.f32 %v1085, 1.442695
        %v1096 = vpow.pop %v1095
        %v1097 = vmul.f32 %v1086, 1.442695
        %v1098 = vpow.pop %v1097
        %v1099 = vmul.f32 %v1087, 1.442695
        %v1100 = vpow.pop %v1099
        %v1101 = vmul.f32 %v1088, 1.442695
        %v1102 = vpow.pop %v1101
        %v1103 = vmul.f32 %v1089, 1.442695
        %v1104 = vpow.pop %v1103
        %v1105 = vmul.f32 %v1090, 1.442695
        %v1106 = vpow.pop %v1105
        %v1107 = vsel %vm760, %v1092, 0.0
        %1108 = vadd.xlane.f32.xlu0 %v1107
        %v1109 = vpop.xlane.xlu0 %1108
        %v1110 = vsel %vm760, %v1094, 0.0
        %1111 = vadd.xlane.f32.xlu0 %v1110
        %v1112 = vpop.xlane.xlu0 %1111
        %v1113 = vsel %vm760, %v1096, 0.0
        %1114 = vadd.xlane.f32.xlu0 %v1113
        %v1115 = vpop.xlane.xlu0 %1114
        %v1116 = vsel %vm760, %v1098, 0.0
        %1117 = vadd.xlane.f32.xlu0 %v1116
        %v1118 = vpop.xlane.xlu0 %1117
        %v1119 = vsel %vm760, %v1100, 0.0
        %1120 = vadd.xlane.f32.xlu0 %v1119
        %v1121 = vpop.xlane.xlu0 %1120
        %v1122 = vsel %vm760, %v1102, 0.0
        %1123 = vadd.xlane.f32.xlu0 %v1122
        %v1124 = vpop.xlane.xlu0 %1123
        %v1125 = vsel %vm760, %v1104, 0.0
        %1126 = vadd.xlane.f32.xlu0 %v1125
        %v1127 = vpop.xlane.xlu0 %1126
        %v1128 = vsel %vm760, %v1106, 0.0
        %1129 = vadd.xlane.f32.xlu0 %v1128
        %v1130 = vpop.xlane.xlu0 %1129
        %v1131 = vrcp.pop %v1109
        %v1132 = vrcp.pop %v1112
        %v1133 = vrcp.pop %v1115
        %v1134 = vrcp.pop %v1118
        %v1135 = vrcp.pop %v1121
        %v1136 = vrcp.pop %v1124
        %v1137 = vrcp.pop %v1127
        %v1138 = vrcp.pop %v1130
        %v1139 = vmul.f32 %v1092, %v1131
        %v1140 = vmul.f32 %v1094, %v1132
        %v1141 = vmul.f32 %v1096, %v1133
        %v1142 = vmul.f32 %v1098, %v1134
        %v1143 = vmul.f32 %v1100, %v1135
        %v1144 = vmul.f32 %v1102, %v1136
        %v1145 = vmul.f32 %v1104, %v1137
        %v1146 = vmul.f32 %v1106, %v1138
        %v1147 = vpack.c.bf16 %v1140, %v1139
        %v1148 = vpack.c.bf16 %v1142, %v1141
        %v1149 = vpack.c.bf16 %v1144, %v1143
        %v1150 = vpack.c.bf16 %v1146, %v1145
        %1151 = vrot.lane.b32.xlu0 %v646, 56
        %v1152 = vpop.permute.xlu0 %1151
        %1153 = vrot.lane.b32.xlu0 %v647, 56
        %v1154 = vpop.permute.xlu0 %1153
        %1155 = vrot.lane.b32.xlu0 %v648, 56
        %v1156 = vpop.permute.xlu0 %1155
        %1157 = vrot.lane.b32.xlu0 %v649, 56
        %v1158 = vpop.permute.xlu0 %1157
        %v1164 = vsel %vm760, %v1147, 0
        %v1167 = vsel %vm760, %v1148, 0
        %v1170 = vsel %vm760, %v1149, 0
        %v1173 = vsel %vm760, %v1150, 0
        %1175 = vmatprep.subr.bf16.mxu0 0
        %1176 = vmatpush1.bf16.msra.mxu0 %v1152
        %1177 = vmatprep.subr.bf16.mxu0 0
        %1178 = vmatpush1.bf16.msra.mxu0 %v1154
        %1179 = vmatprep.subr.bf16.mxu0 0
        %1180 = vmatpush1.bf16.msra.mxu0 %v1156
        %1181 = vmatprep.subr.bf16.mxu0 0
        %1182 = vmatpush1.bf16.msra.mxu0 %v1158
        %1183 = vmatprep.subr.bf16.mxu0 0
        %1184 = vmatpush1.bf16.msra.mxu0 0
        %1185 = vmatprep.subr.bf16.mxu0 0
        %1186 = vmatpush1.bf16.msra.mxu0 0
        %1187 = vmatprep.subr.bf16.mxu0 0
        %1188 = vmatpush1.bf16.msra.mxu0 0
        %1189 = vmatprep.subr.bf16.mxu0 0
        %1190 = vmatpush1.bf16.msra.mxu0 0
        %1191 = vmatprep.subr.bf16.mxu0 0
        %1192 = vmatpush1.bf16.msra.mxu0 0
        %1193 = vmatprep.subr.bf16.mxu0 0
        %1194 = vmatpush1.bf16.msra.mxu0 0
        %1195 = vmatprep.subr.bf16.mxu0 0
        %1196 = vmatpush1.bf16.msra.mxu0 0
        %1197 = vmatprep.subr.bf16.mxu0 0
        %1198 = vmatpush1.bf16.msra.mxu0 0
        %1199 = vmatprep.subr.bf16.mxu0 0
        %1200 = vmatpush1.bf16.msra.mxu0 0
        %1201 = vmatprep.subr.bf16.mxu0 0
        %1202 = vmatpush1.bf16.msra.mxu0 0
        %1203 = vmatprep.subr.bf16.mxu0 0
        %1204 = vmatpush1.bf16.msra.mxu0 0
        %1205 = vmatprep.subr.bf16.mxu0 0
        %1206 = vmatpush1.bf16.msra.mxu0 0
        %1207 = vmatprep.mubr.bf16.mxu0 0
        %1208 = vmatmul.mubr.bf16.gmra.mrb[0].mxu0 %v1164
        %v1209 = vpop.f32.mrb[0].mxu0
        %v1210 = vadd.f32 0.0, %v1209
        %v1211 = vpop.f32.mrb[0].mxu0
        %v1212 = vpop.f32.mrb[0].mxu0
        %v1213 = vadd.f32 0.0, %v1212
        %v1214 = vpop.f32.mrb[0].mxu0
        %1215 = vmatprep.mubr.bf16.mxu0 0
        %1216 = vmatmul.mubr.bf16.gmra.mrb[0].mxu0 %v1167
        %v1217 = vpop.f32.mrb[0].mxu0
        %v1218 = vadd.f32 0.0, %v1217
        %v1219 = vpop.f32.mrb[0].mxu0
        %v1220 = vpop.f32.mrb[0].mxu0
        %v1221 = vadd.f32 0.0, %v1220
        %v1222 = vpop.f32.mrb[0].mxu0
        %1223 = vmatprep.mubr.bf16.mxu0 0
        %1224 = vmatmul.mubr.bf16.gmra.mrb[0].mxu0 %v1170
        %v1225 = vpop.f32.mrb[0].mxu0
        %v1226 = vadd.f32 0.0, %v1225
        %v1227 = vpop.f32.mrb[0].mxu0
        %v1228 = vpop.f32.mrb[0].mxu0
        %v1229 = vadd.f32 0.0, %v1228
        %v1230 = vpop.f32.mrb[0].mxu0
        %1231 = vmatprep.mubr.bf16.mxu0 0
        %1232 = vmatmul.mubr.bf16.gmra.mrb[0].mxu0 %v1173
        %v1233 = vpop.f32.mrb[0].mxu0
        %v1234 = vadd.f32 0.0, %v1233
        %v1235 = vpop.f32.mrb[0].mxu0
        %v1236 = vpop.f32.mrb[0].mxu0
        %v1237 = vadd.f32 0.0, %v1236
        %v1238 = vpop.f32.mrb[0].mxu0
        %1239 = vdwg.mxu0
        %1240 = vrot.lane.b32.xlu0 %v642, 112
        %v1241 = vpop.permute.xlu0 %1240
        %1242 = vrot.lane.b32.xlu0 %v643, 112
        %v1243 = vpop.permute.xlu0 %1242
        %1244 = vrot.lane.b32.xlu0 %v644, 112
        %v1245 = vpop.permute.xlu0 %1244
        %1246 = vrot.lane.b32.xlu0 %v645, 112
        %v1247 = vpop.permute.xlu0 %1246
        %1248 = vrot.lane.b32.xlu0 %v646, 80
        %v1249 = vpop.permute.xlu0 %1248
        %1250 = vrot.lane.b32.xlu0 %v647, 80
        %v1251 = vpop.permute.xlu0 %1250
        %1252 = vrot.lane.b32.xlu0 %v648, 80
        %v1253 = vpop.permute.xlu0 %1252
        %1254 = vrot.lane.b32.xlu0 %v649, 80
        %v1255 = vpop.permute.xlu0 %1254
        %v1257 = vsel %vm662, %v1241, 0
        %v1260 = vsel %vm662, %v1243, 0
        %v1263 = vsel %vm662, %v1245, 0
        %v1266 = vsel %vm662, %v1247, 0
        %v1269 = vsel %vm662, %v1249, 0
        %v1272 = vsel %vm662, %v1251, 0
        %v1275 = vsel %vm662, %v1253, 0
        %v1278 = vsel %vm662, %v1255, 0
        %1280 = vmatprep.subr.bf16.mxu0 0
        %1281 = vmatpush1.bf16.xpose.msra.mxu0 %v1269
        %1282 = vmatprep.subr.bf16.mxu0 0
        %1283 = vmatpush1.bf16.xpose.msra.mxu0 %v1272
        %1284 = vmatprep.subr.bf16.mxu0 0
        %1285 = vmatpush1.bf16.xpose.msra.mxu0 %v1275
        %1286 = vmatprep.subr.bf16.mxu0 0
        %1287 = vmatpush1.bf16.xpose.msra.mxu0 %v1278
        %1288 = vmatprep.subr.bf16.mxu0 0
        %1289 = vmatpush1.bf16.xpose.msra.mxu0 0
        %1290 = vmatprep.subr.bf16.mxu0 0
        %1291 = vmatpush1.bf16.xpose.msra.mxu0 0
        %1292 = vmatprep.subr.bf16.mxu0 0
        %1293 = vmatpush1.bf16.xpose.msra.mxu0 0
        %1294 = vmatprep.subr.bf16.mxu0 0
        %1295 = vmatpush1.bf16.xpose.msra.mxu0 0
        %1296 = vmatprep.subr.bf16.mxu0 0
        %1297 = vmatpush1.bf16.xpose.msra.mxu0 0
        %1298 = vmatprep.subr.bf16.mxu0 0
        %1299 = vmatpush1.bf16.xpose.msra.mxu0 0
        %1300 = vmatprep.subr.bf16.mxu0 0
        %1301 = vmatpush1.bf16.xpose.msra.mxu0 0
        %1302 = vmatprep.subr.bf16.mxu0 0
        %1303 = vmatpush1.bf16.xpose.msra.mxu0 0
        %1304 = vmatprep.subr.bf16.mxu0 0
        %1305 = vmatpush1.bf16.xpose.msra.mxu0 0
        %1306 = vmatprep.subr.bf16.mxu0 0
        %1307 = vmatpush1.bf16.xpose.msra.mxu0 0
        %1308 = vmatprep.subr.bf16.mxu0 0
        %1309 = vmatpush1.bf16.xpose.msra.mxu0 0
        %1310 = vmatprep.subr.bf16.mxu0 0
        %1311 = vmatpush1.bf16.xpose.msra.mxu0 0
        %1312 = vmatprep.mubr.bf16.mxu0 0
        %1313 = vmatmul.mubr.bf16.gmra.mrb[0].mxu0 %v1257
        %v1314 = vpop.f32.mrb[0].mxu0
        %v1315 = vadd.f32 0.0, %v1314
        %v1316 = vpop.f32.mrb[0].mxu0
        %v1317 = vpop.f32.mrb[0].mxu0
        %v1318 = vadd.f32 0.0, %v1317
        %v1319 = vpop.f32.mrb[0].mxu0
        %1320 = vmatprep.mubr.bf16.mxu0 0
        %1321 = vmatmul.mubr.bf16.gmra.mrb[0].mxu0 %v1260
        %v1322 = vpop.f32.mrb[0].mxu0
        %v1323 = vadd.f32 0.0, %v1322
        %v1324 = vpop.f32.mrb[0].mxu0
        %v1325 = vpop.f32.mrb[0].mxu0
        %v1326 = vadd.f32 0.0, %v1325
        %v1327 = vpop.f32.mrb[0].mxu0
        %1328 = vmatprep.mubr.bf16.mxu0 0
        %1329 = vmatmul.mubr.bf16.gmra.mrb[0].mxu0 %v1263
        %v1330 = vpop.f32.mrb[0].mxu0
        %v1331 = vadd.f32 0.0, %v1330
        %v1332 = vpop.f32.mrb[0].mxu0
        %v1333 = vpop.f32.mrb[0].mxu0
        %v1334 = vadd.f32 0.0, %v1333
        %v1335 = vpop.f32.mrb[0].mxu0
        %1336 = vmatprep.mubr.bf16.mxu0 0
        %1337 = vmatmul.mubr.bf16.gmra.mrb[0].mxu0 %v1266
        %v1338 = vpop.f32.mrb[0].mxu0
        %v1339 = vadd.f32 0.0, %v1338
        %v1340 = vpop.f32.mrb[0].mxu0
        %v1341 = vpop.f32.mrb[0].mxu0
        %v1342 = vadd.f32 0.0, %v1341
        %v1343 = vpop.f32.mrb[0].mxu0
        %1344 = vdwg.mxu0
        %v1345 = vmul.f32 %v1315, 0.35355338
        %v1346 = vmul.f32 %v1318, 0.35355338
        %v1347 = vmul.f32 %v1323, 0.35355338
        %v1348 = vmul.f32 %v1326, 0.35355338
        %v1349 = vmul.f32 %v1331, 0.35355338
        %v1350 = vmul.f32 %v1334, 0.35355338
        %v1351 = vmul.f32 %v1339, 0.35355338
        %v1352 = vmul.f32 %v1342, 0.35355338
        %v1353 = vsel %vm760, %v1345, -inf
        %1354 = vmax.xlane.f32.xlu0 %v1353
        %v1355 = vpop.xlane.xlu0 %1354
        %v1356 = vsel %vm760, %v1346, -inf
        %1357 = vmax.xlane.f32.xlu0 %v1356
        %v1358 = vpop.xlane.xlu0 %1357
        %v1359 = vsel %vm760, %v1347, -inf
        %1360 = vmax.xlane.f32.xlu0 %v1359
        %v1361 = vpop.xlane.xlu0 %1360
        %v1362 = vsel %vm760, %v1348, -inf
        %1363 = vmax.xlane.f32.xlu0 %v1362
        %v1364 = vpop.xlane.xlu0 %1363
        %v1365 = vsel %vm760, %v1349, -inf
        %1366 = vmax.xlane.f32.xlu0 %v1365
        %v1367 = vpop.xlane.xlu0 %1366
        %v1368 = vsel %vm760, %v1350, -inf
        %1369 = vmax.xlane.f32.xlu0 %v1368
        %v1370 = vpop.xlane.xlu0 %1369
        %v1371 = vsel %vm760, %v1351, -inf
        %1372 = vmax.xlane.f32.xlu0 %v1371
        %v1373 = vpop.xlane.xlu0 %1372
        %v1374 = vsel %vm760, %v1352, -inf
        %1375 = vmax.xlane.f32.xlu0 %v1374
        %v1376 = vpop.xlane.xlu0 %1375
        %v1377 = vsub.f32 %v1345, %v1355
        %v1378 = vsub.f32 %v1346, %v1358
        %v1379 = vsub.f32 %v1347, %v1361
        %v1380 = vsub.f32 %v1348, %v1364
        %v1381 = vsub.f32 %v1349, %v1367
        %v1382 = vsub.f32 %v1350, %v1370
        %v1383 = vsub.f32 %v1351, %v1373
        %v1384 = vsub.f32 %v1352, %v1376
        %v1385 = vmul.f32 %v1377, 1.442695
        %v1386 = vpow.pop %v1385
        %v1387 = vmul.f32 %v1378, 1.442695
        %v1388 = vpow.pop %v1387
        %v1389 = vmul.f32 %v1379, 1.442695
        %v1390 = vpow.pop %v1389
        %v1391 = vmul.f32 %v1380, 1.442695
        %v1392 = vpow.pop %v1391
        %v1393 = vmul.f32 %v1381, 1.442695
        %v1394 = vpow.pop %v1393
        %v1395 = vmul.f32 %v1382, 1.442695
        %v1396 = vpow.pop %v1395
        %v1397 = vmul.f32 %v1383, 1.442695
        %v1398 = vpow.pop %v1397
        %v1399 = vmul.f32 %v1384, 1.442695
        %v1400 = vpow.pop %v1399
        %v1401 = vsel %vm760, %v1386, 0.0
        %1402 = vadd.xlane.f32.xlu0 %v1401
        %v1403 = vpop.xlane.xlu0 %1402
        %v1404 = vsel %vm760, %v1388, 0.0
        %1405 = vadd.xlane.f32.xlu0 %v1404
        %v1406 = vpop.xlane.xlu0 %1405
        %v1407 = vsel %vm760, %v1390, 0.0
        %1408 = vadd.xlane.f32.xlu0 %v1407
        %v1409 = vpop.xlane.xlu0 %1408
        %v1410 = vsel %vm760, %v1392, 0.0
        %1411 = vadd.xlane.f32.xlu0 %v1410
        %v1412 = vpop.xlane.xlu0 %1411
        %v1413 = vsel %vm760, %v1394, 0.0
        %1414 = vadd.xlane.f32.xlu0 %v1413
        %v1415 = vpop.xlane.xlu0 %1414
        %v1416 = vsel %vm760, %v1396, 0.0
        %1417 = vadd.xlane.f32.xlu0 %v1416
        %v1418 = vpop.xlane.xlu0 %1417
        %v1419 = vsel %vm760, %v1398, 0.0
        %1420 = vadd.xlane.f32.xlu0 %v1419
        %v1421 = vpop.xlane.xlu0 %1420
        %v1422 = vsel %vm760, %v1400, 0.0
        %1423 = vadd.xlane.f32.xlu0 %v1422
        %v1424 = vpop.xlane.xlu0 %1423
        %v1425 = vrcp.pop %v1403
        %v1426 = vrcp.pop %v1406
        %v1427 = vrcp.pop %v1409
        %v1428 = vrcp.pop %v1412
        %v1429 = vrcp.pop %v1415
        %v1430 = vrcp.pop %v1418
        %v1431 = vrcp.pop %v1421
        %v1432 = vrcp.pop %v1424
        %v1433 = vmul.f32 %v1386, %v1425
        %v1434 = vmul.f32 %v1388, %v1426
        %v1435 = vmul.f32 %v1390, %v1427
        %v1436 = vmul.f32 %v1392, %v1428
        %v1437 = vmul.f32 %v1394, %v1429
        %v1438 = vmul.f32 %v1396, %v1430
        %v1439 = vmul.f32 %v1398, %v1431
        %v1440 = vmul.f32 %v1400, %v1432
        %v1441 = vpack.c.bf16 %v1434, %v1433
        %v1442 = vpack.c.bf16 %v1436, %v1435
        %v1443 = vpack.c.bf16 %v1438, %v1437
        %v1444 = vpack.c.bf16 %v1440, %v1439
        %1445 = vrot.lane.b32.xlu0 %v646, 48
        %v1446 = vpop.permute.xlu0 %1445
        %1447 = vrot.lane.b32.xlu0 %v647, 48
        %v1448 = vpop.permute.xlu0 %1447
        %1449 = vrot.lane.b32.xlu0 %v648, 48
        %v1450 = vpop.permute.xlu0 %1449
        %1451 = vrot.lane.b32.xlu0 %v649, 48
        %v1452 = vpop.permute.xlu0 %1451
        %v1458 = vsel %vm760, %v1441, 0
        %v1461 = vsel %vm760, %v1442, 0
        %v1464 = vsel %vm760, %v1443, 0
        %v1467 = vsel %vm760, %v1444, 0
        %1469 = vmatprep.subr.bf16.mxu0 0
        %1470 = vmatpush1.bf16.msra.mxu0 %v1446
        %1471 = vmatprep.subr.bf16.mxu0 0
        %1472 = vmatpush1.bf16.msra.mxu0 %v1448
        %1473 = vmatprep.subr.bf16.mxu0 0
        %1474 = vmatpush1.bf16.msra.mxu0 %v1450
        %1475 = vmatprep.subr.bf16.mxu0 0
        %1476 = vmatpush1.bf16.msra.mxu0 %v1452
        %1477 = vmatprep.subr.bf16.mxu0 0
        %1478 = vmatpush1.bf16.msra.mxu0 0
        %1479 = vmatprep.subr.bf16.mxu0 0
        %1480 = vmatpush1.bf16.msra.mxu0 0
        %1481 = vmatprep.subr.bf16.mxu0 0
        %1482 = vmatpush1.bf16.msra.mxu0 0
        %1483 = vmatprep.subr.bf16.mxu0 0
        %1484 = vmatpush1.bf16.msra.mxu0 0
        %1485 = vmatprep.subr.bf16.mxu0 0
        %1486 = vmatpush1.bf16.msra.mxu0 0
        %1487 = vmatprep.subr.bf16.mxu0 0
        %1488 = vmatpush1.bf16.msra.mxu0 0
        %1489 = vmatprep.subr.bf16.mxu0 0
        %1490 = vmatpush1.bf16.msra.mxu0 0
        %1491 = vmatprep.subr.bf16.mxu0 0
        %1492 = vmatpush1.bf16.msra.mxu0 0
        %1493 = vmatprep.subr.bf16.mxu0 0
        %1494 = vmatpush1.bf16.msra.mxu0 0
        %1495 = vmatprep.subr.bf16.mxu0 0
        %1496 = vmatpush1.bf16.msra.mxu0 0
        %1497 = vmatprep.subr.bf16.mxu0 0
        %1498 = vmatpush1.bf16.msra.mxu0 0
        %1499 = vmatprep.subr.bf16.mxu0 0
        %1500 = vmatpush1.bf16.msra.mxu0 0
        %1501 = vmatprep.mubr.bf16.mxu0 0
        %1502 = vmatmul.mubr.bf16.gmra.mrb[0].mxu0 %v1458
        %v1503 = vpop.f32.mrb[0].mxu0
        %v1504 = vadd.f32 0.0, %v1503
        %v1505 = vpop.f32.mrb[0].mxu0
        %v1506 = vpop.f32.mrb[0].mxu0
        %v1507 = vadd.f32 0.0, %v1506
        %v1508 = vpop.f32.mrb[0].mxu0
        %1509 = vmatprep.mubr.bf16.mxu0 0
        %1510 = vmatmul.mubr.bf16.gmra.mrb[0].mxu0 %v1461
        %v1511 = vpop.f32.mrb[0].mxu0
        %v1512 = vadd.f32 0.0, %v1511
        %v1513 = vpop.f32.mrb[0].mxu0
        %v1514 = vpop.f32.mrb[0].mxu0
        %v1515 = vadd.f32 0.0, %v1514
        %v1516 = vpop.f32.mrb[0].mxu0
        %1517 = vmatprep.mubr.bf16.mxu0 0
        %1518 = vmatmul.mubr.bf16.gmra.mrb[0].mxu0 %v1464
        %v1519 = vpop.f32.mrb[0].mxu0
        %v1520 = vadd.f32 0.0, %v1519
        %v1521 = vpop.f32.mrb[0].mxu0
        %v1522 = vpop.f32.mrb[0].mxu0
        %v1523 = vadd.f32 0.0, %v1522
        %v1524 = vpop.f32.mrb[0].mxu0
        %1525 = vmatprep.mubr.bf16.mxu0 0
        %1526 = vmatmul.mubr.bf16.gmra.mrb[0].mxu0 %v1467
        %v1527 = vpop.f32.mrb[0].mxu0
        %v1528 = vadd.f32 0.0, %v1527
        %v1529 = vpop.f32.mrb[0].mxu0
        %v1530 = vpop.f32.mrb[0].mxu0
        %v1531 = vadd.f32 0.0, %v1530
        %v1532 = vpop.f32.mrb[0].mxu0
        %1533 = vdwg.mxu0
        %1534 = vrot.lane.b32.xlu0 %v642, 104
        %v1535 = vpop.permute.xlu0 %1534
        %1536 = vrot.lane.b32.xlu0 %v643, 104
        %v1537 = vpop.permute.xlu0 %1536
        %1538 = vrot.lane.b32.xlu0 %v644, 104
        %v1539 = vpop.permute.xlu0 %1538
        %1540 = vrot.lane.b32.xlu0 %v645, 104
        %v1541 = vpop.permute.xlu0 %1540
        %1542 = vrot.lane.b32.xlu0 %v646, 72
        %v1543 = vpop.permute.xlu0 %1542
        %1544 = vrot.lane.b32.xlu0 %v647, 72
        %v1545 = vpop.permute.xlu0 %1544
        %1546 = vrot.lane.b32.xlu0 %v648, 72
        %v1547 = vpop.permute.xlu0 %1546
        %1548 = vrot.lane.b32.xlu0 %v649, 72
        %v1549 = vpop.permute.xlu0 %1548
        %v1551 = vsel %vm662, %v1535, 0
        %v1554 = vsel %vm662, %v1537, 0
        %v1557 = vsel %vm662, %v1539, 0
        %v1560 = vsel %vm662, %v1541, 0
        %v1563 = vsel %vm662, %v1543, 0
        %v1566 = vsel %vm662, %v1545, 0
        %v1569 = vsel %vm662, %v1547, 0
        %v1572 = vsel %vm662, %v1549, 0
        %1574 = vmatprep.subr.bf16.mxu0 0
        %1575 = vmatpush1.bf16.xpose.msra.mxu0 %v1563
        %1576 = vmatprep.subr.bf16.mxu0 0
        %1577 = vmatpush1.bf16.xpose.msra.mxu0 %v1566
        %1578 = vmatprep.subr.bf16.mxu0 0
        %1579 = vmatpush1.bf16.xpose.msra.mxu0 %v1569
        %1580 = vmatprep.subr.bf16.mxu0 0
        %1581 = vmatpush1.bf16.xpose.msra.mxu0 %v1572
        %1582 = vmatprep.subr.bf16.mxu0 0
        %1583 = vmatpush1.bf16.xpose.msra.mxu0 0
        %1584 = vmatprep.subr.bf16.mxu0 0
        %1585 = vmatpush1.bf16.xpose.msra.mxu0 0
        %1586 = vmatprep.subr.bf16.mxu0 0
        %1587 = vmatpush1.bf16.xpose.msra.mxu0 0
        %1588 = vmatprep.subr.bf16.mxu0 0
        %1589 = vmatpush1.bf16.xpose.msra.mxu0 0
        %1590 = vmatprep.subr.bf16.mxu0 0
        %1591 = vmatpush1.bf16.xpose.msra.mxu0 0
        %1592 = vmatprep.subr.bf16.mxu0 0
        %1593 = vmatpush1.bf16.xpose.msra.mxu0 0
        %1594 = vmatprep.subr.bf16.mxu0 0
        %1595 = vmatpush1.bf16.xpose.msra.mxu0 0
        %1596 = vmatprep.subr.bf16.mxu0 0
        %1597 = vmatpush1.bf16.xpose.msra.mxu0 0
        %1598 = vmatprep.subr.bf16.mxu0 0
        %1599 = vmatpush1.bf16.xpose.msra.mxu0 0
        %1600 = vmatprep.subr.bf16.mxu0 0
        %1601 = vmatpush1.bf16.xpose.msra.mxu0 0
        %1602 = vmatprep.subr.bf16.mxu0 0
        %1603 = vmatpush1.bf16.xpose.msra.mxu0 0
        %1604 = vmatprep.subr.bf16.mxu0 0
        %1605 = vmatpush1.bf16.xpose.msra.mxu0 0
        %1606 = vmatprep.mubr.bf16.mxu0 0
        %1607 = vmatmul.mubr.bf16.gmra.mrb[0].mxu0 %v1551
        %v1608 = vpop.f32.mrb[0].mxu0
        %v1609 = vadd.f32 0.0, %v1608
        %v1610 = vpop.f32.mrb[0].mxu0
        %v1611 = vpop.f32.mrb[0].mxu0
        %v1612 = vadd.f32 0.0, %v1611
        %v1613 = vpop.f32.mrb[0].mxu0
        %1614 = vmatprep.mubr.bf16.mxu0 0
        %1615 = vmatmul.mubr.bf16.gmra.mrb[0].mxu0 %v1554
        %v1616 = vpop.f32.mrb[0].mxu0
        %v1617 = vadd.f32 0.0, %v1616
        %v1618 = vpop.f32.mrb[0].mxu0
        %v1619 = vpop.f32.mrb[0].mxu0
        %v1620 = vadd.f32 0.0, %v1619
        %v1621 = vpop.f32.mrb[0].mxu0
        %1622 = vmatprep.mubr.bf16.mxu0 0
        %1623 = vmatmul.mubr.bf16.gmra.mrb[0].mxu0 %v1557
        %v1624 = vpop.f32.mrb[0].mxu0
        %v1625 = vadd.f32 0.0, %v1624
        %v1626 = vpop.f32.mrb[0].mxu0
        %v1627 = vpop.f32.mrb[0].mxu0
        %v1628 = vadd.f32 0.0, %v1627
        %v1629 = vpop.f32.mrb[0].mxu0
        %1630 = vmatprep.mubr.bf16.mxu0 0
        %1631 = vmatmul.mubr.bf16.gmra.mrb[0].mxu0 %v1560
        %v1632 = vpop.f32.mrb[0].mxu0
        %v1633 = vadd.f32 0.0, %v1632
        %v1634 = vpop.f32.mrb[0].mxu0
        %v1635 = vpop.f32.mrb[0].mxu0
        %v1636 = vadd.f32 0.0, %v1635
        %v1637 = vpop.f32.mrb[0].mxu0
        %1638 = vdwg.mxu0
        %v1639 = vmul.f32 %v1609, 0.35355338
        %v1640 = vmul.f32 %v1612, 0.35355338
        %v1641 = vmul.f32 %v1617, 0.35355338
        %v1642 = vmul.f32 %v1620, 0.35355338
        %v1643 = vmul.f32 %v1625, 0.35355338
        %v1644 = vmul.f32 %v1628, 0.35355338
        %v1645 = vmul.f32 %v1633, 0.35355338
        %v1646 = vmul.f32 %v1636, 0.35355338
        %v1647 = vsel %vm760, %v1639, -inf
        %1648 = vmax.xlane.f32.xlu0 %v1647
        %v1649 = vpop.xlane.xlu0 %1648
        %v1650 = vsel %vm760, %v1640, -inf
        %1651 = vmax.xlane.f32.xlu0 %v1650
        %v1652 = vpop.xlane.xlu0 %1651
        %v1653 = vsel %vm760, %v1641, -inf
        %1654 = vmax.xlane.f32.xlu0 %v1653
        %v1655 = vpop.xlane.xlu0 %1654
        %v1656 = vsel %vm760, %v1642, -inf
        %1657 = vmax.xlane.f32.xlu0 %v1656
        %v1658 = vpop.xlane.xlu0 %1657
        %v1659 = vsel %vm760, %v1643, -inf
        %1660 = vmax.xlane.f32.xlu0 %v1659
        %v1661 = vpop.xlane.xlu0 %1660
        %v1662 = vsel %vm760, %v1644, -inf
        %1663 = vmax.xlane.f32.xlu0 %v1662
        %v1664 = vpop.xlane.xlu0 %1663
        %v1665 = vsel %vm760, %v1645, -inf
        %1666 = vmax.xlane.f32.xlu0 %v1665
        %v1667 = vpop.xlane.xlu0 %1666
        %v1668 = vsel %vm760, %v1646, -inf
        %1669 = vmax.xlane.f32.xlu0 %v1668
        %v1670 = vpop.xlane.xlu0 %1669
        %v1671 = vsub.f32 %v1639, %v1649
        %v1672 = vsub.f32 %v1640, %v1652
        %v1673 = vsub.f32 %v1641, %v1655
        %v1674 = vsub.f32 %v1642, %v1658
        %v1675 = vsub.f32 %v1643, %v1661
        %v1676 = vsub.f32 %v1644, %v1664
        %v1677 = vsub.f32 %v1645, %v1667
        %v1678 = vsub.f32 %v1646, %v1670
        %v1679 = vmul.f32 %v1671, 1.442695
        %v1680 = vpow.pop %v1679
        %v1681 = vmul.f32 %v1672, 1.442695
        %v1682 = vpow.pop %v1681
        %v1683 = vmul.f32 %v1673, 1.442695
        %v1684 = vpow.pop %v1683
        %v1685 = vmul.f32 %v1674, 1.442695
        %v1686 = vpow.pop %v1685
        %v1687 = vmul.f32 %v1675, 1.442695
        %v1688 = vpow.pop %v1687
        %v1689 = vmul.f32 %v1676, 1.442695
        %v1690 = vpow.pop %v1689
        %v1691 = vmul.f32 %v1677, 1.442695
        %v1692 = vpow.pop %v1691
        %v1693 = vmul.f32 %v1678, 1.442695
        %v1694 = vpow.pop %v1693
        %v1695 = vsel %vm760, %v1680, 0.0
        %1696 = vadd.xlane.f32.xlu0 %v1695
        %v1697 = vpop.xlane.xlu0 %1696
        %v1698 = vsel %vm760, %v1682, 0.0
        %1699 = vadd.xlane.f32.xlu0 %v1698
        %v1700 = vpop.xlane.xlu0 %1699
        %v1701 = vsel %vm760, %v1684, 0.0
        %1702 = vadd.xlane.f32.xlu0 %v1701
        %v1703 = vpop.xlane.xlu0 %1702
        %v1704 = vsel %vm760, %v1686, 0.0
        %1705 = vadd.xlane.f32.xlu0 %v1704
        %v1706 = vpop.xlane.xlu0 %1705
        %v1707 = vsel %vm760, %v1688, 0.0
        %1708 = vadd.xlane.f32.xlu0 %v1707
        %v1709 = vpop.xlane.xlu0 %1708
        %v1710 = vsel %vm760, %v1690, 0.0
        %1711 = vadd.xlane.f32.xlu0 %v1710
        %v1712 = vpop.xlane.xlu0 %1711
        %v1713 = vsel %vm760, %v1692, 0.0
        %1714 = vadd.xlane.f32.xlu0 %v1713
        %v1715 = vpop.xlane.xlu0 %1714
        %v1716 = vsel %vm760, %v1694, 0.0
        %1717 = vadd.xlane.f32.xlu0 %v1716
        %v1718 = vpop.xlane.xlu0 %1717
        %v1719 = vrcp.pop %v1697
        %v1720 = vrcp.pop %v1700
        %v1721 = vrcp.pop %v1703
        %v1722 = vrcp.pop %v1706
        %v1723 = vrcp.pop %v1709
        %v1724 = vrcp.pop %v1712
        %v1725 = vrcp.pop %v1715
        %v1726 = vrcp.pop %v1718
        %v1727 = vmul.f32 %v1680, %v1719
        %v1728 = vmul.f32 %v1682, %v1720
        %v1729 = vmul.f32 %v1684, %v1721
        %v1730 = vmul.f32 %v1686, %v1722
        %v1731 = vmul.f32 %v1688, %v1723
        %v1732 = vmul.f32 %v1690, %v1724
        %v1733 = vmul.f32 %v1692, %v1725
        %v1734 = vmul.f32 %v1694, %v1726
        %v1735 = vpack.c.bf16 %v1728, %v1727
        %v1736 = vpack.c.bf16 %v1730, %v1729
        %v1737 = vpack.c.bf16 %v1732, %v1731
        %v1738 = vpack.c.bf16 %v1734, %v1733
        %1739 = vrot.lane.b32.xlu0 %v646, 40
        %v1740 = vpop.permute.xlu0 %1739
        %1741 = vrot.lane.b32.xlu0 %v647, 40
        %v1742 = vpop.permute.xlu0 %1741
        %1743 = vrot.lane.b32.xlu0 %v648, 40
        %v1744 = vpop.permute.xlu0 %1743
        %1745 = vrot.lane.b32.xlu0 %v649, 40
        %v1746 = vpop.permute.xlu0 %1745
        %v1752 = vsel %vm760, %v1735, 0
        %v1755 = vsel %vm760, %v1736, 0
        %v1758 = vsel %vm760, %v1737, 0
        %v1761 = vsel %vm760, %v1738, 0
        %1763 = vmatprep.subr.bf16.mxu0 0
        %1764 = vmatpush1.bf16.msra.mxu0 %v1740
        %1765 = vmatprep.subr.bf16.mxu0 0
        %1766 = vmatpush1.bf16.msra.mxu0 %v1742
        %1767 = vmatprep.subr.bf16.mxu0 0
        %1768 = vmatpush1.bf16.msra.mxu0 %v1744
        %1769 = vmatprep.subr.bf16.mxu0 0
        %1770 = vmatpush1.bf16.msra.mxu0 %v1746
        %1771 = vmatprep.subr.bf16.mxu0 0
        %1772 = vmatpush1.bf16.msra.mxu0 0
        %1773 = vmatprep.subr.bf16.mxu0 0
        %1774 = vmatpush1.bf16.msra.mxu0 0
        %1775 = vmatprep.subr.bf16.mxu0 0
        %1776 = vmatpush1.bf16.msra.mxu0 0
        %1777 = vmatprep.subr.bf16.mxu0 0
        %1778 = vmatpush1.bf16.msra.mxu0 0
        %1779 = vmatprep.subr.bf16.mxu0 0
        %1780 = vmatpush1.bf16.msra.mxu0 0
        %1781 = vmatprep.subr.bf16.mxu0 0
        %1782 = vmatpush1.bf16.msra.mxu0 0
        %1783 = vmatprep.subr.bf16.mxu0 0
        %1784 = vmatpush1.bf16.msra.mxu0 0
        %1785 = vmatprep.subr.bf16.mxu0 0
        %1786 = vmatpush1.bf16.msra.mxu0 0
        %1787 = vmatprep.subr.bf16.mxu0 0
        %1788 = vmatpush1.bf16.msra.mxu0 0
        %1789 = vmatprep.subr.bf16.mxu0 0
        %1790 = vmatpush1.bf16.msra.mxu0 0
        %1791 = vmatprep.subr.bf16.mxu0 0
        %1792 = vmatpush1.bf16.msra.mxu0 0
        %1793 = vmatprep.subr.bf16.mxu0 0
        %1794 = vmatpush1.bf16.msra.mxu0 0
        %1795 = vmatprep.mubr.bf16.mxu0 0
        %1796 = vmatmul.mubr.bf16.gmra.mrb[0].mxu0 %v1752
        %v1797 = vpop.f32.mrb[0].mxu0
        %v1798 = vadd.f32 0.0, %v1797
        %v1799 = vpop.f32.mrb[0].mxu0
        %v1800 = vpop.f32.mrb[0].mxu0
        %v1801 = vadd.f32 0.0, %v1800
        %v1802 = vpop.f32.mrb[0].mxu0
        %1803 = vmatprep.mubr.bf16.mxu0 0
        %1804 = vmatmul.mubr.bf16.gmra.mrb[0].mxu0 %v1755
        %v1805 = vpop.f32.mrb[0].mxu0
        %v1806 = vadd.f32 0.0, %v1805
        %v1807 = vpop.f32.mrb[0].mxu0
        %v1808 = vpop.f32.mrb[0].mxu0
        %v1809 = vadd.f32 0.0, %v1808
        %v1810 = vpop.f32.mrb[0].mxu0
        %1811 = vmatprep.mubr.bf16.mxu0 0
        %1812 = vmatmul.mubr.bf16.gmra.mrb[0].mxu0 %v1758
        %v1813 = vpop.f32.mrb[0].mxu0
        %v1814 = vadd.f32 0.0, %v1813
        %v1815 = vpop.f32.mrb[0].mxu0
        %v1816 = vpop.f32.mrb[0].mxu0
        %v1817 = vadd.f32 0.0, %v1816
        %v1818 = vpop.f32.mrb[0].mxu0
        %1819 = vmatprep.mubr.bf16.mxu0 0
        %1820 = vmatmul.mubr.bf16.gmra.mrb[0].mxu0 %v1761
        %v1821 = vpop.f32.mrb[0].mxu0
        %v1822 = vadd.f32 0.0, %v1821
        %v1823 = vpop.f32.mrb[0].mxu0
        %v1824 = vpop.f32.mrb[0].mxu0
        %v1825 = vadd.f32 0.0, %v1824
        %v1826 = vpop.f32.mrb[0].mxu0
        %1827 = vdwg.mxu0
        %1836 = vrot.lane.b32.xlu0 %v1139, 64
        %v1837 = vpop.permute.xlu0 %1836
        %1838 = vrot.lane.b32.xlu0 %v1140, 64
        %v1839 = vpop.permute.xlu0 %1838
        %1840 = vrot.lane.b32.xlu0 %v1141, 64
        %v1841 = vpop.permute.xlu0 %1840
        %1842 = vrot.lane.b32.xlu0 %v1142, 64
        %v1843 = vpop.permute.xlu0 %1842
        %1844 = vrot.lane.b32.xlu0 %v1143, 64
        %v1845 = vpop.permute.xlu0 %1844
        %1846 = vrot.lane.b32.xlu0 %v1144, 64
        %v1847 = vpop.permute.xlu0 %1846
        %1848 = vrot.lane.b32.xlu0 %v1145, 64
        %v1849 = vpop.permute.xlu0 %1848
        %1850 = vrot.lane.b32.xlu0 %v1146, 64
        %v1851 = vpop.permute.xlu0 %1850
        %1868 = vrot.lane.b32.xlu0 %v1727, 64
        %v1869 = vpop.permute.xlu0 %1868
        %1870 = vrot.lane.b32.xlu0 %v1728, 64
        %v1871 = vpop.permute.xlu0 %1870
        %1872 = vrot.lane.b32.xlu0 %v1729, 64
        %v1873 = vpop.permute.xlu0 %1872
        %1874 = vrot.lane.b32.xlu0 %v1730, 64
        %v1875 = vpop.permute.xlu0 %1874
        %1876 = vrot.lane.b32.xlu0 %v1731, 64
        %v1877 = vpop.permute.xlu0 %1876
        %1878 = vrot.lane.b32.xlu0 %v1732, 64
        %v1879 = vpop.permute.xlu0 %1878
        %1880 = vrot.lane.b32.xlu0 %v1733, 64
        %v1881 = vpop.permute.xlu0 %1880
        %1882 = vrot.lane.b32.xlu0 %v1734, 64
        %v1883 = vpop.permute.xlu0 %1882
        %v1892 = vsel %vm760, %v841, %v1837
        %v1893 = vsel %vm760, %v842, %v1839
        %v1894 = vsel %vm760, %v843, %v1841
        %v1895 = vsel %vm760, %v844, %v1843
        %v1896 = vsel %vm760, %v845, %v1845
        %v1897 = vsel %vm760, %v846, %v1847
        %v1898 = vsel %vm760, %v847, %v1849
        %v1899 = vsel %vm760, %v848, %v1851
        %v1900 = vsel %vm760, %v1433, %v1869
        %v1901 = vsel %vm760, %v1434, %v1871
        %v1902 = vsel %vm760, %v1435, %v1873
        %v1903 = vsel %vm760, %v1436, %v1875
        %v1904 = vsel %vm760, %v1437, %v1877
        %v1905 = vsel %vm760, %v1438, %v1879
        %v1906 = vsel %vm760, %v1439, %v1881
        %v1907 = vsel %vm760, %v1440, %v1883
        %1908 = vst [vmem:[%s358] sm:$0xff] %v1892
        %1909 = vst [vmem:[%s358 + $0x8] sm:$0xff] %v1900
        %1910 = vst [vmem:[%s358 + $0x10] sm:$0xff] %v1893
        %1911 = vst [vmem:[%s358 + $0x18] sm:$0xff] %v1901
        %1912 = vst [vmem:[%s358 + $0x20] sm:$0xff] %v1894
        %1913 = vst [vmem:[%s358 + $0x28] sm:$0xff] %v1902
        %1914 = vst [vmem:[%s358 + $0x30] sm:$0xff] %v1895
        %1915 = vst [vmem:[%s358 + $0x38] sm:$0xff] %v1903
        %1916 = vst [vmem:[%s358 + $0x40] sm:$0xff] %v1896
        %1917 = vst [vmem:[%s358 + $0x48] sm:$0xff] %v1904
        %1918 = vst [vmem:[%s358 + $0x50] sm:$0xff] %v1897
        %1919 = vst [vmem:[%s358 + $0x58] sm:$0xff] %v1905
        %1920 = vst [vmem:[%s358 + $0x60] sm:$0xff] %v1898
        %1921 = vst [vmem:[%s358 + $0x68] sm:$0xff] %v1906
        %1922 = vst [vmem:[%s358 + $0x70] sm:$0xff] %v1899
        %1923 = vst [vmem:[%s358 + $0x78] sm:$0xff] %v1907
        %1932 = vrot.lane.b32.xlu0 %v1210, 8
        %v1933 = vpop.permute.xlu0 %1932
        %1934 = vrot.lane.b32.xlu0 %v1213, 8
        %v1935 = vpop.permute.xlu0 %1934
        %1936 = vrot.lane.b32.xlu0 %v1218, 8
        %v1937 = vpop.permute.xlu0 %1936
        %1938 = vrot.lane.b32.xlu0 %v1221, 8
        %v1939 = vpop.permute.xlu0 %1938
        %1940 = vrot.lane.b32.xlu0 %v1226, 8
        %v1941 = vpop.permute.xlu0 %1940
        %1942 = vrot.lane.b32.xlu0 %v1229, 8
        %v1943 = vpop.permute.xlu0 %1942
        %1944 = vrot.lane.b32.xlu0 %v1234, 8
        %v1945 = vpop.permute.xlu0 %1944
        %1946 = vrot.lane.b32.xlu0 %v1237, 8
        %v1947 = vpop.permute.xlu0 %1946
        %1964 = vrot.lane.b32.xlu0 %v1504, 16
        %v1965 = vpop.permute.xlu0 %1964
        %1966 = vrot.lane.b32.xlu0 %v1507, 16
        %v1967 = vpop.permute.xlu0 %1966
        %1968 = vrot.lane.b32.xlu0 %v1512, 16
        %v1969 = vpop.permute.xlu0 %1968
        %1970 = vrot.lane.b32.xlu0 %v1515, 16
        %v1971 = vpop.permute.xlu0 %1970
        %1972 = vrot.lane.b32.xlu0 %v1520, 16
        %v1973 = vpop.permute.xlu0 %1972
        %1974 = vrot.lane.b32.xlu0 %v1523, 16
        %v1975 = vpop.permute.xlu0 %1974
        %1976 = vrot.lane.b32.xlu0 %v1528, 16
        %v1977 = vpop.permute.xlu0 %1976
        %1978 = vrot.lane.b32.xlu0 %v1531, 16
        %v1979 = vpop.permute.xlu0 %1978
        %1996 = vrot.lane.b32.xlu0 %v1798, 24
        %v1997 = vpop.permute.xlu0 %1996
        %1998 = vrot.lane.b32.xlu0 %v1801, 24
        %v1999 = vpop.permute.xlu0 %1998
        %2000 = vrot.lane.b32.xlu0 %v1806, 24
        %v2001 = vpop.permute.xlu0 %2000
        %2002 = vrot.lane.b32.xlu0 %v1809, 24
        %v2003 = vpop.permute.xlu0 %2002
        %2004 = vrot.lane.b32.xlu0 %v1814, 24
        %v2005 = vpop.permute.xlu0 %2004
        %2006 = vrot.lane.b32.xlu0 %v1817, 24
        %v2007 = vpop.permute.xlu0 %2006
        %2008 = vrot.lane.b32.xlu0 %v1822, 24
        %v2009 = vpop.permute.xlu0 %2008
        %2010 = vrot.lane.b32.xlu0 %v1825, 24
        %v2011 = vpop.permute.xlu0 %2010
        %v2020 = vsel %vm662, %v912, %v1933
        %v2021 = vsel %vm662, %v915, %v1935
        %v2022 = vsel %vm662, %v920, %v1937
        %v2023 = vsel %vm662, %v923, %v1939
        %v2024 = vsel %vm662, %v928, %v1941
        %v2025 = vsel %vm662, %v931, %v1943
        %v2026 = vsel %vm662, %v936, %v1945
        %v2027 = vsel %vm662, %v939, %v1947
        %v2028 = vsel %vm479, %v2020, %v1965
        %v2029 = vsel %vm479, %v2021, %v1967
        %v2030 = vsel %vm479, %v2022, %v1969
        %v2031 = vsel %vm479, %v2023, %v1971
        %v2032 = vsel %vm479, %v2024, %v1973
        %v2033 = vsel %vm479, %v2025, %v1975
        %v2034 = vsel %vm479, %v2026, %v1977
        %v2035 = vsel %vm479, %v2027, %v1979
        %vm2036 = vcmask 195584
        %v2037 = vsel %vm2036, %v2028, %v1997
        %v2038 = vsel %vm2036, %v2029, %v1999
        %v2039 = vsel %vm2036, %v2030, %v2001
        %v2040 = vsel %vm2036, %v2031, %v2003
        %v2041 = vsel %vm2036, %v2032, %v2005
        %v2042 = vsel %vm2036, %v2033, %v2007
        %v2043 = vsel %vm2036, %v2034, %v2009
        %v2044 = vsel %vm2036, %v2035, %v2011
        %v2045 = vpack.c.bf16 %v2038, %v2037
        %v2046 = vpack.c.bf16 %v2040, %v2039
        %v2047 = vpack.c.bf16 %v2042, %v2041
        %v2048 = vpack.c.bf16 %v2044, %v2043
        %v2049 = vld [vmem:[%s3] sm:$0xf]
        %v2050 = vld [vmem:[%s3 + $0x4] sm:$0xf]
        %v2051 = vld [vmem:[%s3 + $0x8] sm:$0xf]
        %v2052 = vld [vmem:[%s3 + $0xc] sm:$0xf]
        %v2053 = vlaneseq
        %v2054 = vshrl.u32 %v2053, 7
        %v2055 = vsub.s32 0, %v2054
        %v2056 = vrot.slane %v530, %v2055
        %v2061 = vunpack.c.l.b16 %v2049
        %v2062 = vunpack.c.l.b16 %v2050
        %v2063 = vunpack.c.l.b16 %v2051
        %v2064 = vunpack.c.l.b16 %v2052
        %v2065 = vpack.c.b16 %v2062, %v2061
        %v2066 = vpack.c.b16 %v2064, %v2063
        %v2070 = vsel %vm382, %v2045, 0
        %v2073 = vsel %vm382, %v2046, 0
        %v2076 = vsel %vm382, %v2047, 0
        %v2079 = vsel %vm382, %v2048, 0
        %2081 = vmatprep.subr.bf16.mxu0 0
        %2082 = vmatpush1.bf16.msra.mxu0 %v2065
        %2083 = vmatprep.subr.bf16.mxu0 0
        %2084 = vmatpush1.bf16.msra.mxu0 %v2066
        %2085 = vmatprep.subr.bf16.mxu0 0
        %2086 = vmatpush1.bf16.msra.mxu0 0
        %2087 = vmatprep.subr.bf16.mxu0 0
        %2088 = vmatpush1.bf16.msra.mxu0 0
        %2089 = vmatprep.subr.bf16.mxu0 0
        %2090 = vmatpush1.bf16.msra.mxu0 0
        %2091 = vmatprep.subr.bf16.mxu0 0
        %2092 = vmatpush1.bf16.msra.mxu0 0
        %2093 = vmatprep.subr.bf16.mxu0 0
        %2094 = vmatpush1.bf16.msra.mxu0 0
        %2095 = vmatprep.subr.bf16.mxu0 0
        %2096 = vmatpush1.bf16.msra.mxu0 0
        %2097 = vmatprep.subr.bf16.mxu0 0
        %2098 = vmatpush1.bf16.msra.mxu0 0
        %2099 = vmatprep.subr.bf16.mxu0 0
        %2100 = vmatpush1.bf16.msra.mxu0 0
        %2101 = vmatprep.subr.bf16.mxu0 0
        %2102 = vmatpush1.bf16.msra.mxu0 0
        %2103 = vmatprep.subr.bf16.mxu0 0
        %2104 = vmatpush1.bf16.msra.mxu0 0
        %2105 = vmatprep.subr.bf16.mxu0 0
        %2106 = vmatpush1.bf16.msra.mxu0 0
        %2107 = vmatprep.subr.bf16.mxu0 0
        %2108 = vmatpush1.bf16.msra.mxu0 0
        %2109 = vmatprep.subr.bf16.mxu0 0
        %2110 = vmatpush1.bf16.msra.mxu0 0
        %2111 = vmatprep.subr.bf16.mxu0 0
        %2112 = vmatpush1.bf16.msra.mxu0 0
        %2113 = vmatprep.mubr.bf16.mxu0 0
        %2114 = vmatmul.mubr.bf16.gmra.mrb[0].mxu0 %v2070
        %v2115 = vpop.f32.mrb[0].mxu0
        %v2116 = vadd.f32 %v2056, %v2115
        %v2117 = vpop.f32.mrb[0].mxu0
        %v2118 = vpop.f32.mrb[0].mxu0
        %v2119 = vadd.f32 %v2056, %v2118
        %v2120 = vpop.f32.mrb[0].mxu0
        %2121 = vmatprep.mubr.bf16.mxu0 0
        %2122 = vmatmul.mubr.bf16.gmra.mrb[0].mxu0 %v2073
        %v2123 = vpop.f32.mrb[0].mxu0
        %v2124 = vadd.f32 %v2056, %v2123
        %v2125 = vpop.f32.mrb[0].mxu0
        %v2126 = vpop.f32.mrb[0].mxu0
        %v2127 = vadd.f32 %v2056, %v2126
        %v2128 = vpop.f32.mrb[0].mxu0
        %2129 = vmatprep.mubr.bf16.mxu0 0
        %2130 = vmatmul.mubr.bf16.gmra.mrb[0].mxu0 %v2076
        %v2131 = vpop.f32.mrb[0].mxu0
        %v2132 = vadd.f32 %v2056, %v2131
        %v2133 = vpop.f32.mrb[0].mxu0
        %v2134 = vpop.f32.mrb[0].mxu0
        %v2135 = vadd.f32 %v2056, %v2134
        %v2136 = vpop.f32.mrb[0].mxu0
        %2137 = vmatprep.mubr.bf16.mxu0 0
        %2138 = vmatmul.mubr.bf16.gmra.mrb[0].mxu0 %v2079
        %v2139 = vpop.f32.mrb[0].mxu0
        %v2140 = vadd.f32 %v2056, %v2139
        %v2141 = vpop.f32.mrb[0].mxu0
        %v2142 = vpop.f32.mrb[0].mxu0
        %v2143 = vadd.f32 %v2056, %v2142
        %v2144 = vpop.f32.mrb[0].mxu0
        %2145 = vdwg.mxu0
        %v2146 = vstv %s531
        %v2147 = vmul.f32 %v2146, %v2116
        %v2148 = vmul.f32 %v2146, %v2119
        %v2149 = vmul.f32 %v2146, %v2124
        %v2150 = vmul.f32 %v2146, %v2127
        %v2151 = vmul.f32 %v2146, %v2132
        %v2152 = vmul.f32 %v2146, %v2135
        %v2153 = vmul.f32 %v2146, %v2140
        %v2154 = vmul.f32 %v2146, %v2143
        %v2155 = vadd.f32 %v446, %v2147
        %v2156 = vadd.f32 %v447, %v2148
        %v2157 = vadd.f32 %v448, %v2149
        %v2158 = vadd.f32 %v449, %v2150
        %v2159 = vadd.f32 %v450, %v2151
        %v2160 = vadd.f32 %v451, %v2152
        %v2161 = vadd.f32 %v452, %v2153
        %v2162 = vadd.f32 %v453, %v2154
        %v2163 = vpack.c.bf16 %v2156, %v2155
        %v2164 = vpack.c.bf16 %v2158, %v2157
        %v2165 = vpack.c.bf16 %v2160, %v2159
        %v2166 = vpack.c.bf16 %v2162, %v2161
        %s2167 = scalar_lea.vmem %s2, 16
        %v2168 = vld [vmem:[%s2167] sm:$0xf]
        %v2169 = vld [vmem:[%s2167 + $0x4] sm:$0xf]
        %v2170 = vld [vmem:[%s2167 + $0x8] sm:$0xf]
        %v2171 = vld [vmem:[%s2167 + $0xc] sm:$0xf]
        %v2176 = vunpack.c.l.b16 %v2168
        %v2177 = vunpack.c.l.b16 %v2169
        %v2178 = vunpack.c.l.b16 %v2170
        %v2179 = vunpack.c.l.b16 %v2171
        %v2180 = vpack.c.b16 %v2177, %v2176
        %v2181 = vpack.c.b16 %v2179, %v2178
        %v2185 = vsel %vm382, %v2163, 0
        %v2188 = vsel %vm382, %v2164, 0
        %v2191 = vsel %vm382, %v2165, 0
        %v2194 = vsel %vm382, %v2166, 0
        %2196 = vmatprep.subr.bf16.mxu0 0
        %2197 = vmatpush1.bf16.msra.mxu0 %v2180
        %2198 = vmatprep.subr.bf16.mxu0 0
        %2199 = vmatpush1.bf16.msra.mxu0 %v2181
        %2200 = vmatprep.subr.bf16.mxu0 0
        %2201 = vmatpush1.bf16.msra.mxu0 0
        %2202 = vmatprep.subr.bf16.mxu0 0
        %2203 = vmatpush1.bf16.msra.mxu0 0
        %2204 = vmatprep.subr.bf16.mxu0 0
        %2205 = vmatpush1.bf16.msra.mxu0 0
        %2206 = vmatprep.subr.bf16.mxu0 0
        %2207 = vmatpush1.bf16.msra.mxu0 0
        %2208 = vmatprep.subr.bf16.mxu0 0
        %2209 = vmatpush1.bf16.msra.mxu0 0
        %2210 = vmatprep.subr.bf16.mxu0 0
        %2211 = vmatpush1.bf16.msra.mxu0 0
        %2212 = vmatprep.subr.bf16.mxu0 0
        %2213 = vmatpush1.bf16.msra.mxu0 0
        %2214 = vmatprep.subr.bf16.mxu0 0
        %2215 = vmatpush1.bf16.msra.mxu0 0
        %2216 = vmatprep.subr.bf16.mxu0 0
        %2217 = vmatpush1.bf16.msra.mxu0 0
        %2218 = vmatprep.subr.bf16.mxu0 0
        %2219 = vmatpush1.bf16.msra.mxu0 0
        %2220 = vmatprep.subr.bf16.mxu0 0
        %2221 = vmatpush1.bf16.msra.mxu0 0
        %2222 = vmatprep.subr.bf16.mxu0 0
        %2223 = vmatpush1.bf16.msra.mxu0 0
        %2224 = vmatprep.subr.bf16.mxu0 0
        %2225 = vmatpush1.bf16.msra.mxu0 0
        %2226 = vmatprep.subr.bf16.mxu0 0
        %2227 = vmatpush1.bf16.msra.mxu0 0
        %2228 = vmatprep.mubr.bf16.mxu0 0
        %2229 = vmatmul.mubr.bf16.gmra.mrb[0].mxu0 %v2185
        %v2230 = vpop.f32.mrb[0].mxu0
        %v2231 = vadd.f32 0.0, %v2230
        %v2232 = vpop.f32.mrb[0].mxu0
        %v2233 = vpop.f32.mrb[0].mxu0
        %v2234 = vadd.f32 0.0, %v2233
        %v2235 = vpop.f32.mrb[0].mxu0
        %2236 = vmatprep.mubr.bf16.mxu0 0
        %2237 = vmatmul.mubr.bf16.gmra.mrb[0].mxu0 %v2188
        %v2238 = vpop.f32.mrb[0].mxu0
        %v2239 = vadd.f32 0.0, %v2238
        %v2240 = vpop.f32.mrb[0].mxu0
        %v2241 = vpop.f32.mrb[0].mxu0
        %v2242 = vadd.f32 0.0, %v2241
        %v2243 = vpop.f32.mrb[0].mxu0
        %2244 = vmatprep.mubr.bf16.mxu0 0
        %2245 = vmatmul.mubr.bf16.gmra.mrb[0].mxu0 %v2191
        %v2246 = vpop.f32.mrb[0].mxu0
        %v2247 = vadd.f32 0.0, %v2246
        %v2248 = vpop.f32.mrb[0].mxu0
        %v2249 = vpop.f32.mrb[0].mxu0
        %v2250 = vadd.f32 0.0, %v2249
        %v2251 = vpop.f32.mrb[0].mxu0
        %2252 = vmatprep.mubr.bf16.mxu0 0
        %2253 = vmatmul.mubr.bf16.gmra.mrb[0].mxu0 %v2194
        %v2254 = vpop.f32.mrb[0].mxu0
        %v2255 = vadd.f32 0.0, %v2254
        %v2256 = vpop.f32.mrb[0].mxu0
        %v2257 = vpop.f32.mrb[0].mxu0
        %v2258 = vadd.f32 0.0, %v2257
        %v2259 = vpop.f32.mrb[0].mxu0
        %2260 = vdwg.mxu0
        %2262 = vrot.lane.b32.xlu0 %v633, 96
        %v2263 = vpop.permute.xlu0 %2262
        %v2265 = vadd.f32 %v2231, %v2263
        %v2266 = vadd.f32 %v2234, %v2263
        %v2267 = vadd.f32 %v2239, %v2263
        %v2268 = vadd.f32 %v2242, %v2263
        %v2269 = vadd.f32 %v2247, %v2263
        %v2270 = vadd.f32 %v2250, %v2263
        %v2271 = vadd.f32 %v2255, %v2263
        %v2272 = vadd.f32 %v2258, %v2263
        %v2273 = vpack.c.bf16 %v2266, %v2265
        %v2274 = vpack.c.bf16 %v2268, %v2267
        %v2275 = vpack.c.bf16 %v2270, %v2269
        %v2276 = vpack.c.bf16 %v2272, %v2271
        %v2277 = vpack.c.bf16 %v2234, %v2231
        %v2278 = vpack.c.bf16 %v2242, %v2239
        %v2279 = vpack.c.bf16 %v2250, %v2247
        %v2280 = vpack.c.bf16 %v2258, %v2255
        %2285 = vrot.lane.b32.xlu0 %v2277, 96
        %v2286 = vpop.permute.xlu0 %2285
        %2287 = vrot.lane.b32.xlu0 %v2278, 96
        %v2288 = vpop.permute.xlu0 %2287
        %2289 = vrot.lane.b32.xlu0 %v2279, 96
        %v2290 = vpop.permute.xlu0 %2289
        %2291 = vrot.lane.b32.xlu0 %v2280, 96
        %v2292 = vpop.permute.xlu0 %2291
        %v2294 = vsel %vm662, %v2273, 0
        %v2297 = vsel %vm662, %v2274, 0
        %v2300 = vsel %vm662, %v2275, 0
        %v2303 = vsel %vm662, %v2276, 0
        %v2306 = vsel %vm662, %v2286, 0
        %v2309 = vsel %vm662, %v2288, 0
        %v2312 = vsel %vm662, %v2290, 0
        %v2315 = vsel %vm662, %v2292, 0
        %2317 = vmatprep.subr.bf16.mxu0 0
        %2318 = vmatpush1.bf16.xpose.msra.mxu0 %v2306
        %2319 = vmatprep.subr.bf16.mxu0 0
        %2320 = vmatpush1.bf16.xpose.msra.mxu0 %v2309
        %2321 = vmatprep.subr.bf16.mxu0 0
        %2322 = vmatpush1.bf16.xpose.msra.mxu0 %v2312
        %2323 = vmatprep.subr.bf16.mxu0 0
        %2324 = vmatpush1.bf16.xpose.msra.mxu0 %v2315
        %2325 = vmatprep.subr.bf16.mxu0 0
        %2326 = vmatpush1.bf16.xpose.msra.mxu0 0
        %2327 = vmatprep.subr.bf16.mxu0 0
        %2328 = vmatpush1.bf16.xpose.msra.mxu0 0
        %2329 = vmatprep.subr.bf16.mxu0 0
        %2330 = vmatpush1.bf16.xpose.msra.mxu0 0
        %2331 = vmatprep.subr.bf16.mxu0 0
        %2332 = vmatpush1.bf16.xpose.msra.mxu0 0
        %2333 = vmatprep.subr.bf16.mxu0 0
        %2334 = vmatpush1.bf16.xpose.msra.mxu0 0
        %2335 = vmatprep.subr.bf16.mxu0 0
        %2336 = vmatpush1.bf16.xpose.msra.mxu0 0
        %2337 = vmatprep.subr.bf16.mxu0 0
        %2338 = vmatpush1.bf16.xpose.msra.mxu0 0
        %2339 = vmatprep.subr.bf16.mxu0 0
        %2340 = vmatpush1.bf16.xpose.msra.mxu0 0
        %2341 = vmatprep.subr.bf16.mxu0 0
        %2342 = vmatpush1.bf16.xpose.msra.mxu0 0
        %2343 = vmatprep.subr.bf16.mxu0 0
        %2344 = vmatpush1.bf16.xpose.msra.mxu0 0
        %2345 = vmatprep.subr.bf16.mxu0 0
        %2346 = vmatpush1.bf16.xpose.msra.mxu0 0
        %2347 = vmatprep.subr.bf16.mxu0 0
        %2348 = vmatpush1.bf16.xpose.msra.mxu0 0
        %2349 = vmatprep.mubr.bf16.mxu0 0
        %2350 = vmatmul.mubr.bf16.gmra.mrb[0].mxu0 %v2294
        %v2351 = vpop.f32.mrb[0].mxu0
        %v2352 = vadd.f32 0.0, %v2351
        %v2353 = vpop.f32.mrb[0].mxu0
        %v2354 = vpop.f32.mrb[0].mxu0
        %v2355 = vadd.f32 0.0, %v2354
        %v2356 = vpop.f32.mrb[0].mxu0
        %2357 = vmatprep.mubr.bf16.mxu0 0
        %2358 = vmatmul.mubr.bf16.gmra.mrb[0].mxu0 %v2297
        %v2359 = vpop.f32.mrb[0].mxu0
        %v2360 = vadd.f32 0.0, %v2359
        %v2361 = vpop.f32.mrb[0].mxu0
        %v2362 = vpop.f32.mrb[0].mxu0
        %v2363 = vadd.f32 0.0, %v2362
        %v2364 = vpop.f32.mrb[0].mxu0
        %2365 = vmatprep.mubr.bf16.mxu0 0
        %2366 = vmatmul.mubr.bf16.gmra.mrb[0].mxu0 %v2300
        %v2367 = vpop.f32.mrb[0].mxu0
        %v2368 = vadd.f32 0.0, %v2367
        %v2369 = vpop.f32.mrb[0].mxu0
        %v2370 = vpop.f32.mrb[0].mxu0
        %v2371 = vadd.f32 0.0, %v2370
        %v2372 = vpop.f32.mrb[0].mxu0
        %2373 = vmatprep.mubr.bf16.mxu0 0
        %2374 = vmatmul.mubr.bf16.gmra.mrb[0].mxu0 %v2303
        %v2375 = vpop.f32.mrb[0].mxu0
        %v2376 = vadd.f32 0.0, %v2375
        %v2377 = vpop.f32.mrb[0].mxu0
        %v2378 = vpop.f32.mrb[0].mxu0
        %v2379 = vadd.f32 0.0, %v2378
        %v2380 = vpop.f32.mrb[0].mxu0
        %2381 = vdwg.mxu0
        %v2382 = vmul.f32 %v2352, 0.35355338
        %v2383 = vmul.f32 %v2355, 0.35355338
        %v2384 = vmul.f32 %v2360, 0.35355338
        %v2385 = vmul.f32 %v2363, 0.35355338
        %v2386 = vmul.f32 %v2368, 0.35355338
        %v2387 = vmul.f32 %v2371, 0.35355338
        %v2388 = vmul.f32 %v2376, 0.35355338
        %v2389 = vmul.f32 %v2379, 0.35355338
        %v2390 = vsel %vm760, %v2382, -inf
        %2391 = vmax.xlane.f32.xlu0 %v2390
        %v2392 = vpop.xlane.xlu0 %2391
        %v2393 = vsel %vm760, %v2383, -inf
        %2394 = vmax.xlane.f32.xlu0 %v2393
        %v2395 = vpop.xlane.xlu0 %2394
        %v2396 = vsel %vm760, %v2384, -inf
        %2397 = vmax.xlane.f32.xlu0 %v2396
        %v2398 = vpop.xlane.xlu0 %2397
        %v2399 = vsel %vm760, %v2385, -inf
        %2400 = vmax.xlane.f32.xlu0 %v2399
        %v2401 = vpop.xlane.xlu0 %2400
        %v2402 = vsel %vm760, %v2386, -inf
        %2403 = vmax.xlane.f32.xlu0 %v2402
        %v2404 = vpop.xlane.xlu0 %2403
        %v2405 = vsel %vm760, %v2387, -inf
        %2406 = vmax.xlane.f32.xlu0 %v2405
        %v2407 = vpop.xlane.xlu0 %2406
        %v2408 = vsel %vm760, %v2388, -inf
        %2409 = vmax.xlane.f32.xlu0 %v2408
        %v2410 = vpop.xlane.xlu0 %2409
        %v2411 = vsel %vm760, %v2389, -inf
        %2412 = vmax.xlane.f32.xlu0 %v2411
        %v2413 = vpop.xlane.xlu0 %2412
        %v2414 = vsub.f32 %v2382, %v2392
        %v2415 = vsub.f32 %v2383, %v2395
        %v2416 = vsub.f32 %v2384, %v2398
        %v2417 = vsub.f32 %v2385, %v2401
        %v2418 = vsub.f32 %v2386, %v2404
        %v2419 = vsub.f32 %v2387, %v2407
        %v2420 = vsub.f32 %v2388, %v2410
        %v2421 = vsub.f32 %v2389, %v2413
        %v2422 = vmul.f32 %v2414, 1.442695
        %v2423 = vpow.pop %v2422
        %v2424 = vmul.f32 %v2415, 1.442695
        %v2425 = vpow.pop %v2424
        %v2426 = vmul.f32 %v2416, 1.442695
        %v2427 = vpow.pop %v2426
        %v2428 = vmul.f32 %v2417, 1.442695
        %v2429 = vpow.pop %v2428
        %v2430 = vmul.f32 %v2418, 1.442695
        %v2431 = vpow.pop %v2430
        %v2432 = vmul.f32 %v2419, 1.442695
        %v2433 = vpow.pop %v2432
        %v2434 = vmul.f32 %v2420, 1.442695
        %v2435 = vpow.pop %v2434
        %v2436 = vmul.f32 %v2421, 1.442695
        %v2437 = vpow.pop %v2436
        %v2438 = vsel %vm760, %v2423, 0.0
        %2439 = vadd.xlane.f32.xlu0 %v2438
        %v2440 = vpop.xlane.xlu0 %2439
        %v2441 = vsel %vm760, %v2425, 0.0
        %2442 = vadd.xlane.f32.xlu0 %v2441
        %v2443 = vpop.xlane.xlu0 %2442
        %v2444 = vsel %vm760, %v2427, 0.0
        %2445 = vadd.xlane.f32.xlu0 %v2444
        %v2446 = vpop.xlane.xlu0 %2445
        %v2447 = vsel %vm760, %v2429, 0.0
        %2448 = vadd.xlane.f32.xlu0 %v2447
        %v2449 = vpop.xlane.xlu0 %2448
        %v2450 = vsel %vm760, %v2431, 0.0
        %2451 = vadd.xlane.f32.xlu0 %v2450
        %v2452 = vpop.xlane.xlu0 %2451
        %v2453 = vsel %vm760, %v2433, 0.0
        %2454 = vadd.xlane.f32.xlu0 %v2453
        %v2455 = vpop.xlane.xlu0 %2454
        %v2456 = vsel %vm760, %v2435, 0.0
        %2457 = vadd.xlane.f32.xlu0 %v2456
        %v2458 = vpop.xlane.xlu0 %2457
        %v2459 = vsel %vm760, %v2437, 0.0
        %2460 = vadd.xlane.f32.xlu0 %v2459
        %v2461 = vpop.xlane.xlu0 %2460
        %v2462 = vrcp.pop %v2440
        %v2463 = vrcp.pop %v2443
        %v2464 = vrcp.pop %v2446
        %v2465 = vrcp.pop %v2449
        %v2466 = vrcp.pop %v2452
        %v2467 = vrcp.pop %v2455
        %v2468 = vrcp.pop %v2458
        %v2469 = vrcp.pop %v2461
        %v2470 = vmul.f32 %v2423, %v2462
        %v2471 = vmul.f32 %v2425, %v2463
        %v2472 = vmul.f32 %v2427, %v2464
        %v2473 = vmul.f32 %v2429, %v2465
        %v2474 = vmul.f32 %v2431, %v2466
        %v2475 = vmul.f32 %v2433, %v2467
        %v2476 = vmul.f32 %v2435, %v2468
        %v2477 = vmul.f32 %v2437, %v2469
        %v2478 = vpack.c.bf16 %v2471, %v2470
        %v2479 = vpack.c.bf16 %v2473, %v2472
        %v2480 = vpack.c.bf16 %v2475, %v2474
        %v2481 = vpack.c.bf16 %v2477, %v2476
        %2482 = vrot.lane.b32.xlu0 %v2277, 64
        %v2483 = vpop.permute.xlu0 %2482
        %2484 = vrot.lane.b32.xlu0 %v2278, 64
        %v2485 = vpop.permute.xlu0 %2484
        %2486 = vrot.lane.b32.xlu0 %v2279, 64
        %v2487 = vpop.permute.xlu0 %2486
        %2488 = vrot.lane.b32.xlu0 %v2280, 64
        %v2489 = vpop.permute.xlu0 %2488
        %v2495 = vsel %vm760, %v2478, 0
        %v2498 = vsel %vm760, %v2479, 0
        %v2501 = vsel %vm760, %v2480, 0
        %v2504 = vsel %vm760, %v2481, 0
        %2506 = vmatprep.subr.bf16.mxu0 0
        %2507 = vmatpush1.bf16.msra.mxu0 %v2483
        %2508 = vmatprep.subr.bf16.mxu0 0
        %2509 = vmatpush1.bf16.msra.mxu0 %v2485
        %2510 = vmatprep.subr.bf16.mxu0 0
        %2511 = vmatpush1.bf16.msra.mxu0 %v2487
        %2512 = vmatprep.subr.bf16.mxu0 0
        %2513 = vmatpush1.bf16.msra.mxu0 %v2489
        %2514 = vmatprep.subr.bf16.mxu0 0
        %2515 = vmatpush1.bf16.msra.mxu0 0
        %2516 = vmatprep.subr.bf16.mxu0 0
        %2517 = vmatpush1.bf16.msra.mxu0 0
        %2518 = vmatprep.subr.bf16.mxu0 0
        %2519 = vmatpush1.bf16.msra.mxu0 0
        %2520 = vmatprep.subr.bf16.mxu0 0
        %2521 = vmatpush1.bf16.msra.mxu0 0
        %2522 = vmatprep.subr.bf16.mxu0 0
        %2523 = vmatpush1.bf16.msra.mxu0 0
        %2524 = vmatprep.subr.bf16.mxu0 0
        %2525 = vmatpush1.bf16.msra.mxu0 0
        %2526 = vmatprep.subr.bf16.mxu0 0
        %2527 = vmatpush1.bf16.msra.mxu0 0
        %2528 = vmatprep.subr.bf16.mxu0 0
        %2529 = vmatpush1.bf16.msra.mxu0 0
        %2530 = vmatprep.subr.bf16.mxu0 0
        %2531 = vmatpush1.bf16.msra.mxu0 0
        %2532 = vmatprep.subr.bf16.mxu0 0
        %2533 = vmatpush1.bf16.msra.mxu0 0
        %2534 = vmatprep.subr.bf16.mxu0 0
        %2535 = vmatpush1.bf16.msra.mxu0 0
        %2536 = vmatprep.subr.bf16.mxu0 0
        %2537 = vmatpush1.bf16.msra.mxu0 0
        %2538 = vmatprep.mubr.bf16.mxu0 0
        %2539 = vmatmul.mubr.bf16.gmra.mrb[0].mxu0 %v2495
        %v2540 = vpop.f32.mrb[0].mxu0
        %v2541 = vadd.f32 0.0, %v2540
        %v2542 = vpop.f32.mrb[0].mxu0
        %v2543 = vpop.f32.mrb[0].mxu0
        %v2544 = vadd.f32 0.0, %v2543
        %v2545 = vpop.f32.mrb[0].mxu0
        %2546 = vmatprep.mubr.bf16.mxu0 0
        %2547 = vmatmul.mubr.bf16.gmra.mrb[0].mxu0 %v2498
        %v2548 = vpop.f32.mrb[0].mxu0
        %v2549 = vadd.f32 0.0, %v2548
        %v2550 = vpop.f32.mrb[0].mxu0
        %v2551 = vpop.f32.mrb[0].mxu0
        %v2552 = vadd.f32 0.0, %v2551
        %v2553 = vpop.f32.mrb[0].mxu0
        %2554 = vmatprep.mubr.bf16.mxu0 0
        %2555 = vmatmul.mubr.bf16.gmra.mrb[0].mxu0 %v2501
        %v2556 = vpop.f32.mrb[0].mxu0
        %v2557 = vadd.f32 0.0, %v2556
        %v2558 = vpop.f32.mrb[0].mxu0
        %v2559 = vpop.f32.mrb[0].mxu0
        %v2560 = vadd.f32 0.0, %v2559
        %v2561 = vpop.f32.mrb[0].mxu0
        %2562 = vmatprep.mubr.bf16.mxu0 0
        %2563 = vmatmul.mubr.bf16.gmra.mrb[0].mxu0 %v2504
        %v2564 = vpop.f32.mrb[0].mxu0
        %v2565 = vadd.f32 0.0, %v2564
        %v2566 = vpop.f32.mrb[0].mxu0
        %v2567 = vpop.f32.mrb[0].mxu0
        %v2568 = vadd.f32 0.0, %v2567
        %v2569 = vpop.f32.mrb[0].mxu0
        %2570 = vdwg.mxu0
        %2575 = vrot.lane.b32.xlu0 %v2273, 120
        %v2576 = vpop.permute.xlu0 %2575
        %2577 = vrot.lane.b32.xlu0 %v2274, 120
        %v2578 = vpop.permute.xlu0 %2577
        %2579 = vrot.lane.b32.xlu0 %v2275, 120
        %v2580 = vpop.permute.xlu0 %2579
        %2581 = vrot.lane.b32.xlu0 %v2276, 120
        %v2582 = vpop.permute.xlu0 %2581
        %2583 = vrot.lane.b32.xlu0 %v2277, 88
        %v2584 = vpop.permute.xlu0 %2583
        %2585 = vrot.lane.b32.xlu0 %v2278, 88
        %v2586 = vpop.permute.xlu0 %2585
        %2587 = vrot.lane.b32.xlu0 %v2279, 88
        %v2588 = vpop.permute.xlu0 %2587
        %2589 = vrot.lane.b32.xlu0 %v2280, 88
        %v2590 = vpop.permute.xlu0 %2589
        %v2592 = vsel %vm662, %v2576, 0
        %v2595 = vsel %vm662, %v2578, 0
        %v2598 = vsel %vm662, %v2580, 0
        %v2601 = vsel %vm662, %v2582, 0
        %v2604 = vsel %vm662, %v2584, 0
        %v2607 = vsel %vm662, %v2586, 0
        %v2610 = vsel %vm662, %v2588, 0
        %v2613 = vsel %vm662, %v2590, 0
        %2615 = vmatprep.subr.bf16.mxu0 0
        %2616 = vmatpush1.bf16.xpose.msra.mxu0 %v2604
        %2617 = vmatprep.subr.bf16.mxu0 0
        %2618 = vmatpush1.bf16.xpose.msra.mxu0 %v2607
        %2619 = vmatprep.subr.bf16.mxu0 0
        %2620 = vmatpush1.bf16.xpose.msra.mxu0 %v2610
        %2621 = vmatprep.subr.bf16.mxu0 0
        %2622 = vmatpush1.bf16.xpose.msra.mxu0 %v2613
        %2623 = vmatprep.subr.bf16.mxu0 0
        %2624 = vmatpush1.bf16.xpose.msra.mxu0 0
        %2625 = vmatprep.subr.bf16.mxu0 0
        %2626 = vmatpush1.bf16.xpose.msra.mxu0 0
        %2627 = vmatprep.subr.bf16.mxu0 0
        %2628 = vmatpush1.bf16.xpose.msra.mxu0 0
        %2629 = vmatprep.subr.bf16.mxu0 0
        %2630 = vmatpush1.bf16.xpose.msra.mxu0 0
        %2631 = vmatprep.subr.bf16.mxu0 0
        %2632 = vmatpush1.bf16.xpose.msra.mxu0 0
        %2633 = vmatprep.subr.bf16.mxu0 0
        %2634 = vmatpush1.bf16.xpose.msra.mxu0 0
        %2635 = vmatprep.subr.bf16.mxu0 0
        %2636 = vmatpush1.bf16.xpose.msra.mxu0 0
        %2637 = vmatprep.subr.bf16.mxu0 0
        %2638 = vmatpush1.bf16.xpose.msra.mxu0 0
        %2639 = vmatprep.subr.bf16.mxu0 0
        %2640 = vmatpush1.bf16.xpose.msra.mxu0 0
        %2641 = vmatprep.subr.bf16.mxu0 0
        %2642 = vmatpush1.bf16.xpose.msra.mxu0 0
        %2643 = vmatprep.subr.bf16.mxu0 0
        %2644 = vmatpush1.bf16.xpose.msra.mxu0 0
        %2645 = vmatprep.subr.bf16.mxu0 0
        %2646 = vmatpush1.bf16.xpose.msra.mxu0 0
        %2647 = vmatprep.mubr.bf16.mxu0 0
        %2648 = vmatmul.mubr.bf16.gmra.mrb[0].mxu0 %v2592
        %v2649 = vpop.f32.mrb[0].mxu0
        %v2650 = vadd.f32 0.0, %v2649
        %v2651 = vpop.f32.mrb[0].mxu0
        %v2652 = vpop.f32.mrb[0].mxu0
        %v2653 = vadd.f32 0.0, %v2652
        %v2654 = vpop.f32.mrb[0].mxu0
        %2655 = vmatprep.mubr.bf16.mxu0 0
        %2656 = vmatmul.mubr.bf16.gmra.mrb[0].mxu0 %v2595
        %v2657 = vpop.f32.mrb[0].mxu0
        %v2658 = vadd.f32 0.0, %v2657
        %v2659 = vpop.f32.mrb[0].mxu0
        %v2660 = vpop.f32.mrb[0].mxu0
        %v2661 = vadd.f32 0.0, %v2660
        %v2662 = vpop.f32.mrb[0].mxu0
        %2663 = vmatprep.mubr.bf16.mxu0 0
        %2664 = vmatmul.mubr.bf16.gmra.mrb[0].mxu0 %v2598
        %v2665 = vpop.f32.mrb[0].mxu0
        %v2666 = vadd.f32 0.0, %v2665
        %v2667 = vpop.f32.mrb[0].mxu0
        %v2668 = vpop.f32.mrb[0].mxu0
        %v2669 = vadd.f32 0.0, %v2668
        %v2670 = vpop.f32.mrb[0].mxu0
        %2671 = vmatprep.mubr.bf16.mxu0 0
        %2672 = vmatmul.mubr.bf16.gmra.mrb[0].mxu0 %v2601
        %v2673 = vpop.f32.mrb[0].mxu0
        %v2674 = vadd.f32 0.0, %v2673
        %v2675 = vpop.f32.mrb[0].mxu0
        %v2676 = vpop.f32.mrb[0].mxu0
        %v2677 = vadd.f32 0.0, %v2676
        %v2678 = vpop.f32.mrb[0].mxu0
        %2679 = vdwg.mxu0
        %v2680 = vmul.f32 %v2650, 0.35355338
        %v2681 = vmul.f32 %v2653, 0.35355338
        %v2682 = vmul.f32 %v2658, 0.35355338
        %v2683 = vmul.f32 %v2661, 0.35355338
        %v2684 = vmul.f32 %v2666, 0.35355338
        %v2685 = vmul.f32 %v2669, 0.35355338
        %v2686 = vmul.f32 %v2674, 0.35355338
        %v2687 = vmul.f32 %v2677, 0.35355338
        %v2688 = vsel %vm760, %v2680, -inf
        %2689 = vmax.xlane.f32.xlu0 %v2688
        %v2690 = vpop.xlane.xlu0 %2689
        %v2691 = vsel %vm760, %v2681, -inf
        %2692 = vmax.xlane.f32.xlu0 %v2691
        %v2693 = vpop.xlane.xlu0 %2692
        %v2694 = vsel %vm760, %v2682, -inf
        %2695 = vmax.xlane.f32.xlu0 %v2694
        %v2696 = vpop.xlane.xlu0 %2695
        %v2697 = vsel %vm760, %v2683, -inf
        %2698 = vmax.xlane.f32.xlu0 %v2697
        %v2699 = vpop.xlane.xlu0 %2698
        %v2700 = vsel %vm760, %v2684, -inf
        %2701 = vmax.xlane.f32.xlu0 %v2700
        %v2702 = vpop.xlane.xlu0 %2701
        %v2703 = vsel %vm760, %v2685, -inf
        %2704 = vmax.xlane.f32.xlu0 %v2703
        %v2705 = vpop.xlane.xlu0 %2704
        %v2706 = vsel %vm760, %v2686, -inf
        %2707 = vmax.xlane.f32.xlu0 %v2706
        %v2708 = vpop.xlane.xlu0 %2707
        %v2709 = vsel %vm760, %v2687, -inf
        %2710 = vmax.xlane.f32.xlu0 %v2709
        %v2711 = vpop.xlane.xlu0 %2710
        %v2712 = vsub.f32 %v2680, %v2690
        %v2713 = vsub.f32 %v2681, %v2693
        %v2714 = vsub.f32 %v2682, %v2696
        %v2715 = vsub.f32 %v2683, %v2699
        %v2716 = vsub.f32 %v2684, %v2702
        %v2717 = vsub.f32 %v2685, %v2705
        %v2718 = vsub.f32 %v2686, %v2708
        %v2719 = vsub.f32 %v2687, %v2711
        %v2720 = vmul.f32 %v2712, 1.442695
        %v2721 = vpow.pop %v2720
        %v2722 = vmul.f32 %v2713, 1.442695
        %v2723 = vpow.pop %v2722
        %v2724 = vmul.f32 %v2714, 1.442695
        %v2725 = vpow.pop %v2724
        %v2726 = vmul.f32 %v2715, 1.442695
        %v2727 = vpow.pop %v2726
        %v2728 = vmul.f32 %v2716, 1.442695
        %v2729 = vpow.pop %v2728
        %v2730 = vmul.f32 %v2717, 1.442695
        %v2731 = vpow.pop %v2730
        %v2732 = vmul.f32 %v2718, 1.442695
        %v2733 = vpow.pop %v2732
        %v2734 = vmul.f32 %v2719, 1.442695
        %v2735 = vpow.pop %v2734
        %v2736 = vsel %vm760, %v2721, 0.0
        %2737 = vadd.xlane.f32.xlu0 %v2736
        %v2738 = vpop.xlane.xlu0 %2737
        %v2739 = vsel %vm760, %v2723, 0.0
        %2740 = vadd.xlane.f32.xlu0 %v2739
        %v2741 = vpop.xlane.xlu0 %2740
        %v2742 = vsel %vm760, %v2725, 0.0
        %2743 = vadd.xlane.f32.xlu0 %v2742
        %v2744 = vpop.xlane.xlu0 %2743
        %v2745 = vsel %vm760, %v2727, 0.0
        %2746 = vadd.xlane.f32.xlu0 %v2745
        %v2747 = vpop.xlane.xlu0 %2746
        %v2748 = vsel %vm760, %v2729, 0.0
        %2749 = vadd.xlane.f32.xlu0 %v2748
        %v2750 = vpop.xlane.xlu0 %2749
        %v2751 = vsel %vm760, %v2731, 0.0
        %2752 = vadd.xlane.f32.xlu0 %v2751
        %v2753 = vpop.xlane.xlu0 %2752
        %v2754 = vsel %vm760, %v2733, 0.0
        %2755 = vadd.xlane.f32.xlu0 %v2754
        %v2756 = vpop.xlane.xlu0 %2755
        %v2757 = vsel %vm760, %v2735, 0.0
        %2758 = vadd.xlane.f32.xlu0 %v2757
        %v2759 = vpop.xlane.xlu0 %2758
        %v2760 = vrcp.pop %v2738
        %v2761 = vrcp.pop %v2741
        %v2762 = vrcp.pop %v2744
        %v2763 = vrcp.pop %v2747
        %v2764 = vrcp.pop %v2750
        %v2765 = vrcp.pop %v2753
        %v2766 = vrcp.pop %v2756
        %v2767 = vrcp.pop %v2759
        %v2768 = vmul.f32 %v2721, %v2760
        %v2769 = vmul.f32 %v2723, %v2761
        %v2770 = vmul.f32 %v2725, %v2762
        %v2771 = vmul.f32 %v2727, %v2763
        %v2772 = vmul.f32 %v2729, %v2764
        %v2773 = vmul.f32 %v2731, %v2765
        %v2774 = vmul.f32 %v2733, %v2766
        %v2775 = vmul.f32 %v2735, %v2767
        %v2776 = vpack.c.bf16 %v2769, %v2768
        %v2777 = vpack.c.bf16 %v2771, %v2770
        %v2778 = vpack.c.bf16 %v2773, %v2772
        %v2779 = vpack.c.bf16 %v2775, %v2774
        %2780 = vrot.lane.b32.xlu0 %v2277, 56
        %v2781 = vpop.permute.xlu0 %2780
        %2782 = vrot.lane.b32.xlu0 %v2278, 56
        %v2783 = vpop.permute.xlu0 %2782
        %2784 = vrot.lane.b32.xlu0 %v2279, 56
        %v2785 = vpop.permute.xlu0 %2784
        %2786 = vrot.lane.b32.xlu0 %v2280, 56
        %v2787 = vpop.permute.xlu0 %2786
        %v2793 = vsel %vm760, %v2776, 0
        %v2796 = vsel %vm760, %v2777, 0
        %v2799 = vsel %vm760, %v2778, 0
        %v2802 = vsel %vm760, %v2779, 0
        %2804 = vmatprep.subr.bf16.mxu0 0
        %2805 = vmatpush1.bf16.msra.mxu0 %v2781
        %2806 = vmatprep.subr.bf16.mxu0 0
        %2807 = vmatpush1.bf16.msra.mxu0 %v2783
        %2808 = vmatprep.subr.bf16.mxu0 0
        %2809 = vmatpush1.bf16.msra.mxu0 %v2785
        %2810 = vmatprep.subr.bf16.mxu0 0
        %2811 = vmatpush1.bf16.msra.mxu0 %v2787
        %2812 = vmatprep.subr.bf16.mxu0 0
        %2813 = vmatpush1.bf16.msra.mxu0 0
        %2814 = vmatprep.subr.bf16.mxu0 0
        %2815 = vmatpush1.bf16.msra.mxu0 0
        %2816 = vmatprep.subr.bf16.mxu0 0
        %2817 = vmatpush1.bf16.msra.mxu0 0
        %2818 = vmatprep.subr.bf16.mxu0 0
        %2819 = vmatpush1.bf16.msra.mxu0 0
        %2820 = vmatprep.subr.bf16.mxu0 0
        %2821 = vmatpush1.bf16.msra.mxu0 0
        %2822 = vmatprep.subr.bf16.mxu0 0
        %2823 = vmatpush1.bf16.msra.mxu0 0
        %2824 = vmatprep.subr.bf16.mxu0 0
        %2825 = vmatpush1.bf16.msra.mxu0 0
        %2826 = vmatprep.subr.bf16.mxu0 0
        %2827 = vmatpush1.bf16.msra.mxu0 0
        %2828 = vmatprep.subr.bf16.mxu0 0
        %2829 = vmatpush1.bf16.msra.mxu0 0
        %2830 = vmatprep.subr.bf16.mxu0 0
        %2831 = vmatpush1.bf16.msra.mxu0 0
        %2832 = vmatprep.subr.bf16.mxu0 0
        %2833 = vmatpush1.bf16.msra.mxu0 0
        %2834 = vmatprep.subr.bf16.mxu0 0
        %2835 = vmatpush1.bf16.msra.mxu0 0
        %2836 = vmatprep.mubr.bf16.mxu0 0
        %2837 = vmatmul.mubr.bf16.gmra.mrb[0].mxu0 %v2793
        %v2838 = vpop.f32.mrb[0].mxu0
        %v2839 = vadd.f32 0.0, %v2838
        %v2840 = vpop.f32.mrb[0].mxu0
        %v2841 = vpop.f32.mrb[0].mxu0
        %v2842 = vadd.f32 0.0, %v2841
        %v2843 = vpop.f32.mrb[0].mxu0
        %2844 = vmatprep.mubr.bf16.mxu0 0
        %2845 = vmatmul.mubr.bf16.gmra.mrb[0].mxu0 %v2796
        %v2846 = vpop.f32.mrb[0].mxu0
        %v2847 = vadd.f32 0.0, %v2846
        %v2848 = vpop.f32.mrb[0].mxu0
        %v2849 = vpop.f32.mrb[0].mxu0
        %v2850 = vadd.f32 0.0, %v2849
        %v2851 = vpop.f32.mrb[0].mxu0
        %2852 = vmatprep.mubr.bf16.mxu0 0
        %2853 = vmatmul.mubr.bf16.gmra.mrb[0].mxu0 %v2799
        %v2854 = vpop.f32.mrb[0].mxu0
        %v2855 = vadd.f32 0.0, %v2854
        %v2856 = vpop.f32.mrb[0].mxu0
        %v2857 = vpop.f32.mrb[0].mxu0
        %v2858 = vadd.f32 0.0, %v2857
        %v2859 = vpop.f32.mrb[0].mxu0
        %2860 = vmatprep.mubr.bf16.mxu0 0
        %2861 = vmatmul.mubr.bf16.gmra.mrb[0].mxu0 %v2802
        %v2862 = vpop.f32.mrb[0].mxu0
        %v2863 = vadd.f32 0.0, %v2862
        %v2864 = vpop.f32.mrb[0].mxu0
        %v2865 = vpop.f32.mrb[0].mxu0
        %v2866 = vadd.f32 0.0, %v2865
        %v2867 = vpop.f32.mrb[0].mxu0
        %2868 = vdwg.mxu0
        %2869 = vrot.lane.b32.xlu0 %v2273, 112
        %v2870 = vpop.permute.xlu0 %2869
        %2871 = vrot.lane.b32.xlu0 %v2274, 112
        %v2872 = vpop.permute.xlu0 %2871
        %2873 = vrot.lane.b32.xlu0 %v2275, 112
        %v2874 = vpop.permute.xlu0 %2873
        %2875 = vrot.lane.b32.xlu0 %v2276, 112
        %v2876 = vpop.permute.xlu0 %2875
        %2877 = vrot.lane.b32.xlu0 %v2277, 80
        %v2878 = vpop.permute.xlu0 %2877
        %2879 = vrot.lane.b32.xlu0 %v2278, 80
        %v2880 = vpop.permute.xlu0 %2879
        %2881 = vrot.lane.b32.xlu0 %v2279, 80
        %v2882 = vpop.permute.xlu0 %2881
        %2883 = vrot.lane.b32.xlu0 %v2280, 80
        %v2884 = vpop.permute.xlu0 %2883
        %v2886 = vsel %vm662, %v2870, 0
        %v2889 = vsel %vm662, %v2872, 0
        %v2892 = vsel %vm662, %v2874, 0
        %v2895 = vsel %vm662, %v2876, 0
        %v2898 = vsel %vm662, %v2878, 0
        %v2901 = vsel %vm662, %v2880, 0
        %v2904 = vsel %vm662, %v2882, 0
        %v2907 = vsel %vm662, %v2884, 0
        %2909 = vmatprep.subr.bf16.mxu0 0
        %2910 = vmatpush1.bf16.xpose.msra.mxu0 %v2898
        %2911 = vmatprep.subr.bf16.mxu0 0
        %2912 = vmatpush1.bf16.xpose.msra.mxu0 %v2901
        %2913 = vmatprep.subr.bf16.mxu0 0
        %2914 = vmatpush1.bf16.xpose.msra.mxu0 %v2904
        %2915 = vmatprep.subr.bf16.mxu0 0
        %2916 = vmatpush1.bf16.xpose.msra.mxu0 %v2907
        %2917 = vmatprep.subr.bf16.mxu0 0
        %2918 = vmatpush1.bf16.xpose.msra.mxu0 0
        %2919 = vmatprep.subr.bf16.mxu0 0
        %2920 = vmatpush1.bf16.xpose.msra.mxu0 0
        %2921 = vmatprep.subr.bf16.mxu0 0
        %2922 = vmatpush1.bf16.xpose.msra.mxu0 0
        %2923 = vmatprep.subr.bf16.mxu0 0
        %2924 = vmatpush1.bf16.xpose.msra.mxu0 0
        %2925 = vmatprep.subr.bf16.mxu0 0
        %2926 = vmatpush1.bf16.xpose.msra.mxu0 0
        %2927 = vmatprep.subr.bf16.mxu0 0
        %2928 = vmatpush1.bf16.xpose.msra.mxu0 0
        %2929 = vmatprep.subr.bf16.mxu0 0
        %2930 = vmatpush1.bf16.xpose.msra.mxu0 0
        %2931 = vmatprep.subr.bf16.mxu0 0
        %2932 = vmatpush1.bf16.xpose.msra.mxu0 0
        %2933 = vmatprep.subr.bf16.mxu0 0
        %2934 = vmatpush1.bf16.xpose.msra.mxu0 0
        %2935 = vmatprep.subr.bf16.mxu0 0
        %2936 = vmatpush1.bf16.xpose.msra.mxu0 0
        %2937 = vmatprep.subr.bf16.mxu0 0
        %2938 = vmatpush1.bf16.xpose.msra.mxu0 0
        %2939 = vmatprep.subr.bf16.mxu0 0
        %2940 = vmatpush1.bf16.xpose.msra.mxu0 0
        %2941 = vmatprep.mubr.bf16.mxu0 0
        %2942 = vmatmul.mubr.bf16.gmra.mrb[0].mxu0 %v2886
        %v2943 = vpop.f32.mrb[0].mxu0
        %v2944 = vadd.f32 0.0, %v2943
        %v2945 = vpop.f32.mrb[0].mxu0
        %v2946 = vpop.f32.mrb[0].mxu0
        %v2947 = vadd.f32 0.0, %v2946
        %v2948 = vpop.f32.mrb[0].mxu0
        %2949 = vmatprep.mubr.bf16.mxu0 0
        %2950 = vmatmul.mubr.bf16.gmra.mrb[0].mxu0 %v2889
        %v2951 = vpop.f32.mrb[0].mxu0
        %v2952 = vadd.f32 0.0, %v2951
        %v2953 = vpop.f32.mrb[0].mxu0
        %v2954 = vpop.f32.mrb[0].mxu0
        %v2955 = vadd.f32 0.0, %v2954
        %v2956 = vpop.f32.mrb[0].mxu0
        %2957 = vmatprep.mubr.bf16.mxu0 0
        %2958 = vmatmul.mubr.bf16.gmra.mrb[0].mxu0 %v2892
        %v2959 = vpop.f32.mrb[0].mxu0
        %v2960 = vadd.f32 0.0, %v2959
        %v2961 = vpop.f32.mrb[0].mxu0
        %v2962 = vpop.f32.mrb[0].mxu0
        %v2963 = vadd.f32 0.0, %v2962
        %v2964 = vpop.f32.mrb[0].mxu0
        %2965 = vmatprep.mubr.bf16.mxu0 0
        %2966 = vmatmul.mubr.bf16.gmra.mrb[0].mxu0 %v2895
        %v2967 = vpop.f32.mrb[0].mxu0
        %v2968 = vadd.f32 0.0, %v2967
        %v2969 = vpop.f32.mrb[0].mxu0
        %v2970 = vpop.f32.mrb[0].mxu0
        %v2971 = vadd.f32 0.0, %v2970
        %v2972 = vpop.f32.mrb[0].mxu0
        %2973 = vdwg.mxu0
        %v2974 = vmul.f32 %v2944, 0.35355338
        %v2975 = vmul.f32 %v2947, 0.35355338
        %v2976 = vmul.f32 %v2952, 0.35355338
        %v2977 = vmul.f32 %v2955, 0.35355338
        %v2978 = vmul.f32 %v2960, 0.35355338
        %v2979 = vmul.f32 %v2963, 0.35355338
        %v2980 = vmul.f32 %v2968, 0.35355338
        %v2981 = vmul.f32 %v2971, 0.35355338
        %v2982 = vsel %vm760, %v2974, -inf
        %2983 = vmax.xlane.f32.xlu0 %v2982
        %v2984 = vpop.xlane.xlu0 %2983
        %v2985 = vsel %vm760, %v2975, -inf
        %2986 = vmax.xlane.f32.xlu0 %v2985
        %v2987 = vpop.xlane.xlu0 %2986
        %v2988 = vsel %vm760, %v2976, -inf
        %2989 = vmax.xlane.f32.xlu0 %v2988
        %v2990 = vpop.xlane.xlu0 %2989
        %v2991 = vsel %vm760, %v2977, -inf
        %2992 = vmax.xlane.f32.xlu0 %v2991
        %v2993 = vpop.xlane.xlu0 %2992
        %v2994 = vsel %vm760, %v2978, -inf
        %2995 = vmax.xlane.f32.xlu0 %v2994
        %v2996 = vpop.xlane.xlu0 %2995
        %v2997 = vsel %vm760, %v2979, -inf
        %2998 = vmax.xlane.f32.xlu0 %v2997
        %v2999 = vpop.xlane.xlu0 %2998
        %v3000 = vsel %vm760, %v2980, -inf
        %3001 = vmax.xlane.f32.xlu0 %v3000
        %v3002 = vpop.xlane.xlu0 %3001
        %v3003 = vsel %vm760, %v2981, -inf
        %3004 = vmax.xlane.f32.xlu0 %v3003
        %v3005 = vpop.xlane.xlu0 %3004
        %v3006 = vsub.f32 %v2974, %v2984
        %v3007 = vsub.f32 %v2975, %v2987
        %v3008 = vsub.f32 %v2976, %v2990
        %v3009 = vsub.f32 %v2977, %v2993
        %v3010 = vsub.f32 %v2978, %v2996
        %v3011 = vsub.f32 %v2979, %v2999
        %v3012 = vsub.f32 %v2980, %v3002
        %v3013 = vsub.f32 %v2981, %v3005
        %v3014 = vmul.f32 %v3006, 1.442695
        %v3015 = vpow.pop %v3014
        %v3016 = vmul.f32 %v3007, 1.442695
        %v3017 = vpow.pop %v3016
        %v3018 = vmul.f32 %v3008, 1.442695
        %v3019 = vpow.pop %v3018
        %v3020 = vmul.f32 %v3009, 1.442695
        %v3021 = vpow.pop %v3020
        %v3022 = vmul.f32 %v3010, 1.442695
        %v3023 = vpow.pop %v3022
        %v3024 = vmul.f32 %v3011, 1.442695
        %v3025 = vpow.pop %v3024
        %v3026 = vmul.f32 %v3012, 1.442695
        %v3027 = vpow.pop %v3026
        %v3028 = vmul.f32 %v3013, 1.442695
        %v3029 = vpow.pop %v3028
        %v3030 = vsel %vm760, %v3015, 0.0
        %3031 = vadd.xlane.f32.xlu0 %v3030
        %v3032 = vpop.xlane.xlu0 %3031
        %v3033 = vsel %vm760, %v3017, 0.0
        %3034 = vadd.xlane.f32.xlu0 %v3033
        %v3035 = vpop.xlane.xlu0 %3034
        %v3036 = vsel %vm760, %v3019, 0.0
        %3037 = vadd.xlane.f32.xlu0 %v3036
        %v3038 = vpop.xlane.xlu0 %3037
        %v3039 = vsel %vm760, %v3021, 0.0
        %3040 = vadd.xlane.f32.xlu0 %v3039
        %v3041 = vpop.xlane.xlu0 %3040
        %v3042 = vsel %vm760, %v3023, 0.0
        %3043 = vadd.xlane.f32.xlu0 %v3042
        %v3044 = vpop.xlane.xlu0 %3043
        %v3045 = vsel %vm760, %v3025, 0.0
        %3046 = vadd.xlane.f32.xlu0 %v3045
        %v3047 = vpop.xlane.xlu0 %3046
        %v3048 = vsel %vm760, %v3027, 0.0
        %3049 = vadd.xlane.f32.xlu0 %v3048
        %v3050 = vpop.xlane.xlu0 %3049
        %v3051 = vsel %vm760, %v3029, 0.0
        %3052 = vadd.xlane.f32.xlu0 %v3051
        %v3053 = vpop.xlane.xlu0 %3052
        %v3054 = vrcp.pop %v3032
        %v3055 = vrcp.pop %v3035
        %v3056 = vrcp.pop %v3038
        %v3057 = vrcp.pop %v3041
        %v3058 = vrcp.pop %v3044
        %v3059 = vrcp.pop %v3047
        %v3060 = vrcp.pop %v3050
        %v3061 = vrcp.pop %v3053
        %v3062 = vmul.f32 %v3015, %v3054
        %v3063 = vmul.f32 %v3017, %v3055
        %v3064 = vmul.f32 %v3019, %v3056
        %v3065 = vmul.f32 %v3021, %v3057
        %v3066 = vmul.f32 %v3023, %v3058
        %v3067 = vmul.f32 %v3025, %v3059
        %v3068 = vmul.f32 %v3027, %v3060
        %v3069 = vmul.f32 %v3029, %v3061
        %v3070 = vpack.c.bf16 %v3063, %v3062
        %v3071 = vpack.c.bf16 %v3065, %v3064
        %v3072 = vpack.c.bf16 %v3067, %v3066
        %v3073 = vpack.c.bf16 %v3069, %v3068
        %3074 = vrot.lane.b32.xlu0 %v2277, 48
        %v3075 = vpop.permute.xlu0 %3074
        %3076 = vrot.lane.b32.xlu0 %v2278, 48
        %v3077 = vpop.permute.xlu0 %3076
        %3078 = vrot.lane.b32.xlu0 %v2279, 48
        %v3079 = vpop.permute.xlu0 %3078
        %3080 = vrot.lane.b32.xlu0 %v2280, 48
        %v3081 = vpop.permute.xlu0 %3080
        %v3087 = vsel %vm760, %v3070, 0
        %v3090 = vsel %vm760, %v3071, 0
        %v3093 = vsel %vm760, %v3072, 0
        %v3096 = vsel %vm760, %v3073, 0
        %3098 = vmatprep.subr.bf16.mxu0 0
        %3099 = vmatpush1.bf16.msra.mxu0 %v3075
        %3100 = vmatprep.subr.bf16.mxu0 0
        %3101 = vmatpush1.bf16.msra.mxu0 %v3077
        %3102 = vmatprep.subr.bf16.mxu0 0
        %3103 = vmatpush1.bf16.msra.mxu0 %v3079
        %3104 = vmatprep.subr.bf16.mxu0 0
        %3105 = vmatpush1.bf16.msra.mxu0 %v3081
        %3106 = vmatprep.subr.bf16.mxu0 0
        %3107 = vmatpush1.bf16.msra.mxu0 0
        %3108 = vmatprep.subr.bf16.mxu0 0
        %3109 = vmatpush1.bf16.msra.mxu0 0
        %3110 = vmatprep.subr.bf16.mxu0 0
        %3111 = vmatpush1.bf16.msra.mxu0 0
        %3112 = vmatprep.subr.bf16.mxu0 0
        %3113 = vmatpush1.bf16.msra.mxu0 0
        %3114 = vmatprep.subr.bf16.mxu0 0
        %3115 = vmatpush1.bf16.msra.mxu0 0
        %3116 = vmatprep.subr.bf16.mxu0 0
        %3117 = vmatpush1.bf16.msra.mxu0 0
        %3118 = vmatprep.subr.bf16.mxu0 0
        %3119 = vmatpush1.bf16.msra.mxu0 0
        %3120 = vmatprep.subr.bf16.mxu0 0
        %3121 = vmatpush1.bf16.msra.mxu0 0
        %3122 = vmatprep.subr.bf16.mxu0 0
        %3123 = vmatpush1.bf16.msra.mxu0 0
        %3124 = vmatprep.subr.bf16.mxu0 0
        %3125 = vmatpush1.bf16.msra.mxu0 0
        %3126 = vmatprep.subr.bf16.mxu0 0
        %3127 = vmatpush1.bf16.msra.mxu0 0
        %3128 = vmatprep.subr.bf16.mxu0 0
        %3129 = vmatpush1.bf16.msra.mxu0 0
        %3130 = vmatprep.mubr.bf16.mxu0 0
        %3131 = vmatmul.mubr.bf16.gmra.mrb[0].mxu0 %v3087
        %v3132 = vpop.f32.mrb[0].mxu0
        %v3133 = vadd.f32 0.0, %v3132
        %v3134 = vpop.f32.mrb[0].mxu0
        %v3135 = vpop.f32.mrb[0].mxu0
        %v3136 = vadd.f32 0.0, %v3135
        %v3137 = vpop.f32.mrb[0].mxu0
        %3138 = vmatprep.mubr.bf16.mxu0 0
        %3139 = vmatmul.mubr.bf16.gmra.mrb[0].mxu0 %v3090
        %v3140 = vpop.f32.mrb[0].mxu0
        %v3141 = vadd.f32 0.0, %v3140
        %v3142 = vpop.f32.mrb[0].mxu0
        %v3143 = vpop.f32.mrb[0].mxu0
        %v3144 = vadd.f32 0.0, %v3143
        %v3145 = vpop.f32.mrb[0].mxu0
        %3146 = vmatprep.mubr.bf16.mxu0 0
        %3147 = vmatmul.mubr.bf16.gmra.mrb[0].mxu0 %v3093
        %v3148 = vpop.f32.mrb[0].mxu0
        %v3149 = vadd.f32 0.0, %v3148
        %v3150 = vpop.f32.mrb[0].mxu0
        %v3151 = vpop.f32.mrb[0].mxu0
        %v3152 = vadd.f32 0.0, %v3151
        %v3153 = vpop.f32.mrb[0].mxu0
        %3154 = vmatprep.mubr.bf16.mxu0 0
        %3155 = vmatmul.mubr.bf16.gmra.mrb[0].mxu0 %v3096
        %v3156 = vpop.f32.mrb[0].mxu0
        %v3157 = vadd.f32 0.0, %v3156
        %v3158 = vpop.f32.mrb[0].mxu0
        %v3159 = vpop.f32.mrb[0].mxu0
        %v3160 = vadd.f32 0.0, %v3159
        %v3161 = vpop.f32.mrb[0].mxu0
        %3162 = vdwg.mxu0
        %3163 = vrot.lane.b32.xlu0 %v2273, 104
        %v3164 = vpop.permute.xlu0 %3163
        %3165 = vrot.lane.b32.xlu0 %v2274, 104
        %v3166 = vpop.permute.xlu0 %3165
        %3167 = vrot.lane.b32.xlu0 %v2275, 104
        %v3168 = vpop.permute.xlu0 %3167
        %3169 = vrot.lane.b32.xlu0 %v2276, 104
        %v3170 = vpop.permute.xlu0 %3169
        %3171 = vrot.lane.b32.xlu0 %v2277, 72
        %v3172 = vpop.permute.xlu0 %3171
        %3173 = vrot.lane.b32.xlu0 %v2278, 72
        %v3174 = vpop.permute.xlu0 %3173
        %3175 = vrot.lane.b32.xlu0 %v2279, 72
        %v3176 = vpop.permute.xlu0 %3175
        %3177 = vrot.lane.b32.xlu0 %v2280, 72
        %v3178 = vpop.permute.xlu0 %3177
        %v3180 = vsel %vm662, %v3164, 0
        %v3183 = vsel %vm662, %v3166, 0
        %v3186 = vsel %vm662, %v3168, 0
        %v3189 = vsel %vm662, %v3170, 0
        %v3192 = vsel %vm662, %v3172, 0
        %v3195 = vsel %vm662, %v3174, 0
        %v3198 = vsel %vm662, %v3176, 0
        %v3201 = vsel %vm662, %v3178, 0
        %3203 = vmatprep.subr.bf16.mxu0 0
        %3204 = vmatpush1.bf16.xpose.msra.mxu0 %v3192
        %3205 = vmatprep.subr.bf16.mxu0 0
        %3206 = vmatpush1.bf16.xpose.msra.mxu0 %v3195
        %3207 = vmatprep.subr.bf16.mxu0 0
        %3208 = vmatpush1.bf16.xpose.msra.mxu0 %v3198
        %3209 = vmatprep.subr.bf16.mxu0 0
        %3210 = vmatpush1.bf16.xpose.msra.mxu0 %v3201
        %3211 = vmatprep.subr.bf16.mxu0 0
        %3212 = vmatpush1.bf16.xpose.msra.mxu0 0
        %3213 = vmatprep.subr.bf16.mxu0 0
        %3214 = vmatpush1.bf16.xpose.msra.mxu0 0
        %3215 = vmatprep.subr.bf16.mxu0 0
        %3216 = vmatpush1.bf16.xpose.msra.mxu0 0
        %3217 = vmatprep.subr.bf16.mxu0 0
        %3218 = vmatpush1.bf16.xpose.msra.mxu0 0
        %3219 = vmatprep.subr.bf16.mxu0 0
        %3220 = vmatpush1.bf16.xpose.msra.mxu0 0
        %3221 = vmatprep.subr.bf16.mxu0 0
        %3222 = vmatpush1.bf16.xpose.msra.mxu0 0
        %3223 = vmatprep.subr.bf16.mxu0 0
        %3224 = vmatpush1.bf16.xpose.msra.mxu0 0
        %3225 = vmatprep.subr.bf16.mxu0 0
        %3226 = vmatpush1.bf16.xpose.msra.mxu0 0
        %3227 = vmatprep.subr.bf16.mxu0 0
        %3228 = vmatpush1.bf16.xpose.msra.mxu0 0
        %3229 = vmatprep.subr.bf16.mxu0 0
        %3230 = vmatpush1.bf16.xpose.msra.mxu0 0
        %3231 = vmatprep.subr.bf16.mxu0 0
        %3232 = vmatpush1.bf16.xpose.msra.mxu0 0
        %3233 = vmatprep.subr.bf16.mxu0 0
        %3234 = vmatpush1.bf16.xpose.msra.mxu0 0
        %3235 = vmatprep.mubr.bf16.mxu0 0
        %3236 = vmatmul.mubr.bf16.gmra.mrb[0].mxu0 %v3180
        %v3237 = vpop.f32.mrb[0].mxu0
        %v3238 = vadd.f32 0.0, %v3237
        %v3239 = vpop.f32.mrb[0].mxu0
        %v3240 = vpop.f32.mrb[0].mxu0
        %v3241 = vadd.f32 0.0, %v3240
        %v3242 = vpop.f32.mrb[0].mxu0
        %3243 = vmatprep.mubr.bf16.mxu0 0
        %3244 = vmatmul.mubr.bf16.gmra.mrb[0].mxu0 %v3183
        %v3245 = vpop.f32.mrb[0].mxu0
        %v3246 = vadd.f32 0.0, %v3245
        %v3247 = vpop.f32.mrb[0].mxu0
        %v3248 = vpop.f32.mrb[0].mxu0
        %v3249 = vadd.f32 0.0, %v3248
        %v3250 = vpop.f32.mrb[0].mxu0
        %3251 = vmatprep.mubr.bf16.mxu0 0
        %3252 = vmatmul.mubr.bf16.gmra.mrb[0].mxu0 %v3186
        %v3253 = vpop.f32.mrb[0].mxu0
        %v3254 = vadd.f32 0.0, %v3253
        %v3255 = vpop.f32.mrb[0].mxu0
        %v3256 = vpop.f32.mrb[0].mxu0
        %v3257 = vadd.f32 0.0, %v3256
        %v3258 = vpop.f32.mrb[0].mxu0
        %3259 = vmatprep.mubr.bf16.mxu0 0
        %3260 = vmatmul.mubr.bf16.gmra.mrb[0].mxu0 %v3189
        %v3261 = vpop.f32.mrb[0].mxu0
        %v3262 = vadd.f32 0.0, %v3261
        %v3263 = vpop.f32.mrb[0].mxu0
        %v3264 = vpop.f32.mrb[0].mxu0
        %v3265 = vadd.f32 0.0, %v3264
        %v3266 = vpop.f32.mrb[0].mxu0
        %3267 = vdwg.mxu0
        %v3268 = vmul.f32 %v3238, 0.35355338
        %v3269 = vmul.f32 %v3241, 0.35355338
        %v3270 = vmul.f32 %v3246, 0.35355338
        %v3271 = vmul.f32 %v3249, 0.35355338
        %v3272 = vmul.f32 %v3254, 0.35355338
        %v3273 = vmul.f32 %v3257, 0.35355338
        %v3274 = vmul.f32 %v3262, 0.35355338
        %v3275 = vmul.f32 %v3265, 0.35355338
        %v3276 = vsel %vm760, %v3268, -inf
        %3277 = vmax.xlane.f32.xlu0 %v3276
        %v3278 = vpop.xlane.xlu0 %3277
        %v3279 = vsel %vm760, %v3269, -inf
        %3280 = vmax.xlane.f32.xlu0 %v3279
        %v3281 = vpop.xlane.xlu0 %3280
        %v3282 = vsel %vm760, %v3270, -inf
        %3283 = vmax.xlane.f32.xlu0 %v3282
        %v3284 = vpop.xlane.xlu0 %3283
        %v3285 = vsel %vm760, %v3271, -inf
        %3286 = vmax.xlane.f32.xlu0 %v3285
        %v3287 = vpop.xlane.xlu0 %3286
        %v3288 = vsel %vm760, %v3272, -inf
        %3289 = vmax.xlane.f32.xlu0 %v3288
        %v3290 = vpop.xlane.xlu0 %3289
        %v3291 = vsel %vm760, %v3273, -inf
        %3292 = vmax.xlane.f32.xlu0 %v3291
        %v3293 = vpop.xlane.xlu0 %3292
        %v3294 = vsel %vm760, %v3274, -inf
        %3295 = vmax.xlane.f32.xlu0 %v3294
        %v3296 = vpop.xlane.xlu0 %3295
        %v3297 = vsel %vm760, %v3275, -inf
        %3298 = vmax.xlane.f32.xlu0 %v3297
        %v3299 = vpop.xlane.xlu0 %3298
        %v3300 = vsub.f32 %v3268, %v3278
        %v3301 = vsub.f32 %v3269, %v3281
        %v3302 = vsub.f32 %v3270, %v3284
        %v3303 = vsub.f32 %v3271, %v3287
        %v3304 = vsub.f32 %v3272, %v3290
        %v3305 = vsub.f32 %v3273, %v3293
        %v3306 = vsub.f32 %v3274, %v3296
        %v3307 = vsub.f32 %v3275, %v3299
        %v3308 = vmul.f32 %v3300, 1.442695
        %v3309 = vpow.pop %v3308
        %v3310 = vmul.f32 %v3301, 1.442695
        %v3311 = vpow.pop %v3310
        %v3312 = vmul.f32 %v3302, 1.442695
        %v3313 = vpow.pop %v3312
        %v3314 = vmul.f32 %v3303, 1.442695
        %v3315 = vpow.pop %v3314
        %v3316 = vmul.f32 %v3304, 1.442695
        %v3317 = vpow.pop %v3316
        %v3318 = vmul.f32 %v3305, 1.442695
        %v3319 = vpow.pop %v3318
        %v3320 = vmul.f32 %v3306, 1.442695
        %v3321 = vpow.pop %v3320
        %v3322 = vmul.f32 %v3307, 1.442695
        %v3323 = vpow.pop %v3322
        %v3324 = vsel %vm760, %v3309, 0.0
        %3325 = vadd.xlane.f32.xlu0 %v3324
        %v3326 = vpop.xlane.xlu0 %3325
        %v3327 = vsel %vm760, %v3311, 0.0
        %3328 = vadd.xlane.f32.xlu0 %v3327
        %v3329 = vpop.xlane.xlu0 %3328
        %v3330 = vsel %vm760, %v3313, 0.0
        %3331 = vadd.xlane.f32.xlu0 %v3330
        %v3332 = vpop.xlane.xlu0 %3331
        %v3333 = vsel %vm760, %v3315, 0.0
        %3334 = vadd.xlane.f32.xlu0 %v3333
        %v3335 = vpop.xlane.xlu0 %3334
        %v3336 = vsel %vm760, %v3317, 0.0
        %3337 = vadd.xlane.f32.xlu0 %v3336
        %v3338 = vpop.xlane.xlu0 %3337
        %v3339 = vsel %vm760, %v3319, 0.0
        %3340 = vadd.xlane.f32.xlu0 %v3339
        %v3341 = vpop.xlane.xlu0 %3340
        %v3342 = vsel %vm760, %v3321, 0.0
        %3343 = vadd.xlane.f32.xlu0 %v3342
        %v3344 = vpop.xlane.xlu0 %3343
        %v3345 = vsel %vm760, %v3323, 0.0
        %3346 = vadd.xlane.f32.xlu0 %v3345
        %v3347 = vpop.xlane.xlu0 %3346
        %v3348 = vrcp.pop %v3326
        %v3349 = vrcp.pop %v3329
        %v3350 = vrcp.pop %v3332
        %v3351 = vrcp.pop %v3335
        %v3352 = vrcp.pop %v3338
        %v3353 = vrcp.pop %v3341
        %v3354 = vrcp.pop %v3344
        %v3355 = vrcp.pop %v3347
        %v3356 = vmul.f32 %v3309, %v3348
        %v3357 = vmul.f32 %v3311, %v3349
        %v3358 = vmul.f32 %v3313, %v3350
        %v3359 = vmul.f32 %v3315, %v3351
        %v3360 = vmul.f32 %v3317, %v3352
        %v3361 = vmul.f32 %v3319, %v3353
        %v3362 = vmul.f32 %v3321, %v3354
        %v3363 = vmul.f32 %v3323, %v3355
        %v3364 = vpack.c.bf16 %v3357, %v3356
        %v3365 = vpack.c.bf16 %v3359, %v3358
        %v3366 = vpack.c.bf16 %v3361, %v3360
        %v3367 = vpack.c.bf16 %v3363, %v3362
        %3368 = vrot.lane.b32.xlu0 %v2277, 40
        %v3369 = vpop.permute.xlu0 %3368
        %3370 = vrot.lane.b32.xlu0 %v2278, 40
        %v3371 = vpop.permute.xlu0 %3370
        %3372 = vrot.lane.b32.xlu0 %v2279, 40
        %v3373 = vpop.permute.xlu0 %3372
        %3374 = vrot.lane.b32.xlu0 %v2280, 40
        %v3375 = vpop.permute.xlu0 %3374
        %v3381 = vsel %vm760, %v3364, 0
        %v3384 = vsel %vm760, %v3365, 0
        %v3387 = vsel %vm760, %v3366, 0
        %v3390 = vsel %vm760, %v3367, 0
        %3392 = vmatprep.subr.bf16.mxu0 0
        %3393 = vmatpush1.bf16.msra.mxu0 %v3369
        %3394 = vmatprep.subr.bf16.mxu0 0
        %3395 = vmatpush1.bf16.msra.mxu0 %v3371
        %3396 = vmatprep.subr.bf16.mxu0 0
        %3397 = vmatpush1.bf16.msra.mxu0 %v3373
        %3398 = vmatprep.subr.bf16.mxu0 0
        %3399 = vmatpush1.bf16.msra.mxu0 %v3375
        %3400 = vmatprep.subr.bf16.mxu0 0
        %3401 = vmatpush1.bf16.msra.mxu0 0
        %3402 = vmatprep.subr.bf16.mxu0 0
        %3403 = vmatpush1.bf16.msra.mxu0 0
        %3404 = vmatprep.subr.bf16.mxu0 0
        %3405 = vmatpush1.bf16.msra.mxu0 0
        %3406 = vmatprep.subr.bf16.mxu0 0
        %3407 = vmatpush1.bf16.msra.mxu0 0
        %3408 = vmatprep.subr.bf16.mxu0 0
        %3409 = vmatpush1.bf16.msra.mxu0 0
        %3410 = vmatprep.subr.bf16.mxu0 0
        %3411 = vmatpush1.bf16.msra.mxu0 0
        %3412 = vmatprep.subr.bf16.mxu0 0
        %3413 = vmatpush1.bf16.msra.mxu0 0
        %3414 = vmatprep.subr.bf16.mxu0 0
        %3415 = vmatpush1.bf16.msra.mxu0 0
        %3416 = vmatprep.subr.bf16.mxu0 0
        %3417 = vmatpush1.bf16.msra.mxu0 0
        %3418 = vmatprep.subr.bf16.mxu0 0
        %3419 = vmatpush1.bf16.msra.mxu0 0
        %3420 = vmatprep.subr.bf16.mxu0 0
        %3421 = vmatpush1.bf16.msra.mxu0 0
        %3422 = vmatprep.subr.bf16.mxu0 0
        %3423 = vmatpush1.bf16.msra.mxu0 0
        %3424 = vmatprep.mubr.bf16.mxu0 0
        %3425 = vmatmul.mubr.bf16.gmra.mrb[0].mxu0 %v3381
        %v3426 = vpop.f32.mrb[0].mxu0
        %v3427 = vadd.f32 0.0, %v3426
        %v3428 = vpop.f32.mrb[0].mxu0
        %v3429 = vpop.f32.mrb[0].mxu0
        %v3430 = vadd.f32 0.0, %v3429
        %v3431 = vpop.f32.mrb[0].mxu0
        %3432 = vmatprep.mubr.bf16.mxu0 0
        %3433 = vmatmul.mubr.bf16.gmra.mrb[0].mxu0 %v3384
        %v3434 = vpop.f32.mrb[0].mxu0
        %v3435 = vadd.f32 0.0, %v3434
        %v3436 = vpop.f32.mrb[0].mxu0
        %v3437 = vpop.f32.mrb[0].mxu0
        %v3438 = vadd.f32 0.0, %v3437
        %v3439 = vpop.f32.mrb[0].mxu0
        %3440 = vmatprep.mubr.bf16.mxu0 0
        %3441 = vmatmul.mubr.bf16.gmra.mrb[0].mxu0 %v3387
        %v3442 = vpop.f32.mrb[0].mxu0
        %v3443 = vadd.f32 0.0, %v3442
        %v3444 = vpop.f32.mrb[0].mxu0
        %v3445 = vpop.f32.mrb[0].mxu0
        %v3446 = vadd.f32 0.0, %v3445
        %v3447 = vpop.f32.mrb[0].mxu0
        %3448 = vmatprep.mubr.bf16.mxu0 0
        %3449 = vmatmul.mubr.bf16.gmra.mrb[0].mxu0 %v3390
        %v3450 = vpop.f32.mrb[0].mxu0
        %v3451 = vadd.f32 0.0, %v3450
        %v3452 = vpop.f32.mrb[0].mxu0
        %v3453 = vpop.f32.mrb[0].mxu0
        %v3454 = vadd.f32 0.0, %v3453
        %v3455 = vpop.f32.mrb[0].mxu0
        %3456 = vdwg.mxu0
        %3465 = vrot.lane.b32.xlu0 %v2839, 8
        %v3466 = vpop.permute.xlu0 %3465
        %3467 = vrot.lane.b32.xlu0 %v2842, 8
        %v3468 = vpop.permute.xlu0 %3467
        %3469 = vrot.lane.b32.xlu0 %v2847, 8
        %v3470 = vpop.permute.xlu0 %3469
        %3471 = vrot.lane.b32.xlu0 %v2850, 8
        %v3472 = vpop.permute.xlu0 %3471
        %3473 = vrot.lane.b32.xlu0 %v2855, 8
        %v3474 = vpop.permute.xlu0 %3473
        %3475 = vrot.lane.b32.xlu0 %v2858, 8
        %v3476 = vpop.permute.xlu0 %3475
        %3477 = vrot.lane.b32.xlu0 %v2863, 8
        %v3478 = vpop.permute.xlu0 %3477
        %3479 = vrot.lane.b32.xlu0 %v2866, 8
        %v3480 = vpop.permute.xlu0 %3479
        %3497 = vrot.lane.b32.xlu0 %v3133, 16
        %v3498 = vpop.permute.xlu0 %3497
        %3499 = vrot.lane.b32.xlu0 %v3136, 16
        %v3500 = vpop.permute.xlu0 %3499
        %3501 = vrot.lane.b32.xlu0 %v3141, 16
        %v3502 = vpop.permute.xlu0 %3501
        %3503 = vrot.lane.b32.xlu0 %v3144, 16
        %v3504 = vpop.permute.xlu0 %3503
        %3505 = vrot.lane.b32.xlu0 %v3149, 16
        %v3506 = vpop.permute.xlu0 %3505
        %3507 = vrot.lane.b32.xlu0 %v3152, 16
        %v3508 = vpop.permute.xlu0 %3507
        %3509 = vrot.lane.b32.xlu0 %v3157, 16
        %v3510 = vpop.permute.xlu0 %3509
        %3511 = vrot.lane.b32.xlu0 %v3160, 16
        %v3512 = vpop.permute.xlu0 %3511
        %3529 = vrot.lane.b32.xlu0 %v3427, 24
        %v3530 = vpop.permute.xlu0 %3529
        %3531 = vrot.lane.b32.xlu0 %v3430, 24
        %v3532 = vpop.permute.xlu0 %3531
        %3533 = vrot.lane.b32.xlu0 %v3435, 24
        %v3534 = vpop.permute.xlu0 %3533
        %3535 = vrot.lane.b32.xlu0 %v3438, 24
        %v3536 = vpop.permute.xlu0 %3535
        %3537 = vrot.lane.b32.xlu0 %v3443, 24
        %v3538 = vpop.permute.xlu0 %3537
        %3539 = vrot.lane.b32.xlu0 %v3446, 24
        %v3540 = vpop.permute.xlu0 %3539
        %3541 = vrot.lane.b32.xlu0 %v3451, 24
        %v3542 = vpop.permute.xlu0 %3541
        %3543 = vrot.lane.b32.xlu0 %v3454, 24
        %v3544 = vpop.permute.xlu0 %3543
        %v3553 = vsel %vm662, %v2541, %v3466
        %v3554 = vsel %vm662, %v2544, %v3468
        %v3555 = vsel %vm662, %v2549, %v3470
        %v3556 = vsel %vm662, %v2552, %v3472
        %v3557 = vsel %vm662, %v2557, %v3474
        %v3558 = vsel %vm662, %v2560, %v3476
        %v3559 = vsel %vm662, %v2565, %v3478
        %v3560 = vsel %vm662, %v2568, %v3480
        %v3561 = vsel %vm479, %v3553, %v3498
        %v3562 = vsel %vm479, %v3554, %v3500
        %v3563 = vsel %vm479, %v3555, %v3502
        %v3564 = vsel %vm479, %v3556, %v3504
        %v3565 = vsel %vm479, %v3557, %v3506
        %v3566 = vsel %vm479, %v3558, %v3508
        %v3567 = vsel %vm479, %v3559, %v3510
        %v3568 = vsel %vm479, %v3560, %v3512
        %v3569 = vsel %vm2036, %v3561, %v3530
        %v3570 = vsel %vm2036, %v3562, %v3532
        %v3571 = vsel %vm2036, %v3563, %v3534
        %v3572 = vsel %vm2036, %v3564, %v3536
        %v3573 = vsel %vm2036, %v3565, %v3538
        %v3574 = vsel %vm2036, %v3566, %v3540
        %v3575 = vsel %vm2036, %v3567, %v3542
        %v3576 = vsel %vm2036, %v3568, %v3544
        %v3577 = vpack.c.bf16 %v3570, %v3569
        %v3578 = vpack.c.bf16 %v3572, %v3571
        %v3579 = vpack.c.bf16 %v3574, %v3573
        %v3580 = vpack.c.bf16 %v3576, %v3575
        %s3581 = scalar_lea.vmem %s3, 16
        %v3582 = vld [vmem:[%s3581] sm:$0xf]
        %v3583 = vld [vmem:[%s3581 + $0x4] sm:$0xf]
        %v3584 = vld [vmem:[%s3581 + $0x8] sm:$0xf]
        %v3585 = vld [vmem:[%s3581 + $0xc] sm:$0xf]
        %v3586 = vlaneseq
        %v3587 = vshrl.u32 %v3586, 7
        %v3588 = vsub.s32 1, %v3587
        %v3589 = vrot.slane %v530, %v3588
        %v3594 = vunpack.c.l.b16 %v3582
        %v3595 = vunpack.c.l.b16 %v3583
        %v3596 = vunpack.c.l.b16 %v3584
        %v3597 = vunpack.c.l.b16 %v3585
        %v3598 = vpack.c.b16 %v3595, %v3594
        %v3599 = vpack.c.b16 %v3597, %v3596
        %v3603 = vsel %vm382, %v3577, 0
        %v3606 = vsel %vm382, %v3578, 0
        %v3609 = vsel %vm382, %v3579, 0
        %v3612 = vsel %vm382, %v3580, 0
        %3614 = vmatprep.subr.bf16.mxu0 0
        %3615 = vmatpush1.bf16.msra.mxu0 %v3598
        %3616 = vmatprep.subr.bf16.mxu0 0
        %3617 = vmatpush1.bf16.msra.mxu0 %v3599
        %3618 = vmatprep.subr.bf16.mxu0 0
        %3619 = vmatpush1.bf16.msra.mxu0 0
        %3620 = vmatprep.subr.bf16.mxu0 0
        %3621 = vmatpush1.bf16.msra.mxu0 0
        %3622 = vmatprep.subr.bf16.mxu0 0
        %3623 = vmatpush1.bf16.msra.mxu0 0
        %3624 = vmatprep.subr.bf16.mxu0 0
        %3625 = vmatpush1.bf16.msra.mxu0 0
        %3626 = vmatprep.subr.bf16.mxu0 0
        %3627 = vmatpush1.bf16.msra.mxu0 0
        %3628 = vmatprep.subr.bf16.mxu0 0
        %3629 = vmatpush1.bf16.msra.mxu0 0
        %3630 = vmatprep.subr.bf16.mxu0 0
        %3631 = vmatpush1.bf16.msra.mxu0 0
        %3632 = vmatprep.subr.bf16.mxu0 0
        %3633 = vmatpush1.bf16.msra.mxu0 0
        %3634 = vmatprep.subr.bf16.mxu0 0
        %3635 = vmatpush1.bf16.msra.mxu0 0
        %3636 = vmatprep.subr.bf16.mxu0 0
        %3637 = vmatpush1.bf16.msra.mxu0 0
        %3638 = vmatprep.subr.bf16.mxu0 0
        %3639 = vmatpush1.bf16.msra.mxu0 0
        %3640 = vmatprep.subr.bf16.mxu0 0
        %3641 = vmatpush1.bf16.msra.mxu0 0
        %3642 = vmatprep.subr.bf16.mxu0 0
        %3643 = vmatpush1.bf16.msra.mxu0 0
        %3644 = vmatprep.subr.bf16.mxu0 0
        %3645 = vmatpush1.bf16.msra.mxu0 0
        %3646 = vmatprep.mubr.bf16.mxu0 0
        %3647 = vmatmul.mubr.bf16.gmra.mrb[0].mxu0 %v3603
        %v3648 = vpop.f32.mrb[0].mxu0
        %v3649 = vadd.f32 %v3589, %v3648
        %v3650 = vpop.f32.mrb[0].mxu0
        %v3651 = vpop.f32.mrb[0].mxu0
        %v3652 = vadd.f32 %v3589, %v3651
        %v3653 = vpop.f32.mrb[0].mxu0
        %3654 = vmatprep.mubr.bf16.mxu0 0
        %3655 = vmatmul.mubr.bf16.gmra.mrb[0].mxu0 %v3606
        %v3656 = vpop.f32.mrb[0].mxu0
        %v3657 = vadd.f32 %v3589, %v3656
        %v3658 = vpop.f32.mrb[0].mxu0
        %v3659 = vpop.f32.mrb[0].mxu0
        %v3660 = vadd.f32 %v3589, %v3659
        %v3661 = vpop.f32.mrb[0].mxu0
        %3662 = vmatprep.mubr.bf16.mxu0 0
        %3663 = vmatmul.mubr.bf16.gmra.mrb[0].mxu0 %v3609
        %v3664 = vpop.f32.mrb[0].mxu0
        %v3665 = vadd.f32 %v3589, %v3664
        %v3666 = vpop.f32.mrb[0].mxu0
        %v3667 = vpop.f32.mrb[0].mxu0
        %v3668 = vadd.f32 %v3589, %v3667
        %v3669 = vpop.f32.mrb[0].mxu0
        %3670 = vmatprep.mubr.bf16.mxu0 0
        %3671 = vmatmul.mubr.bf16.gmra.mrb[0].mxu0 %v3612
        %v3672 = vpop.f32.mrb[0].mxu0
        %v3673 = vadd.f32 %v3589, %v3672
        %v3674 = vpop.f32.mrb[0].mxu0
        %v3675 = vpop.f32.mrb[0].mxu0
        %v3676 = vadd.f32 %v3589, %v3675
        %v3677 = vpop.f32.mrb[0].mxu0
        %3678 = vdwg.mxu0
        %v3679 = vstv %s532
        %v3680 = vmul.f32 %v3679, %v3649
        %v3681 = vmul.f32 %v3679, %v3652
        %v3682 = vmul.f32 %v3679, %v3657
        %v3683 = vmul.f32 %v3679, %v3660
        %v3684 = vmul.f32 %v3679, %v3665
        %v3685 = vmul.f32 %v3679, %v3668
        %v3686 = vmul.f32 %v3679, %v3673
        %v3687 = vmul.f32 %v3679, %v3676
        %v3688 = vadd.f32 %v2155, %v3680
        %v3689 = vadd.f32 %v2156, %v3681
        %v3690 = vadd.f32 %v2157, %v3682
        %v3691 = vadd.f32 %v2158, %v3683
        %v3692 = vadd.f32 %v2159, %v3684
        %v3693 = vadd.f32 %v2160, %v3685
        %v3694 = vadd.f32 %v2161, %v3686
        %v3695 = vadd.f32 %v2162, %v3687
        %v3696 = vmul.f32 %v443, 1.0158731
        %v3697 = vadd.f32 %v3696, 1e-05
        %v3698 = vrsqrt.pop %v3697
        %v3699 = vmul.f32 %v3697, %v3698
        %vm3700 = vcmp.eq.f32.partialorder %v3697, inf
        %v3701 = vsel %vm3700, %v3697, %v3699
        %vm3702 = vcmp.eq.f32.partialorder %v3697, 0.0
        %v3703 = vand.u32 %v3697, 2147483648
        %v3704 = vsel %vm3702, %v3703, %v3701
        %3706 = vrot.lane.b32.xlu0 %v3704, 64
        %v3707 = vpop.permute.xlu0 %3706
        %v3709 = vmul.f32 %v529, %v3707
        %3711 = vrot.lane.b32.xlu0 %v520, 64
        %v3712 = vpop.permute.xlu0 %3711
        %v3714 = vadd.f32 %v3709, %v3712
        %3716 = vrot.lane.b32.xlu0 %v405, 96
        %v3717 = vpop.permute.xlu0 %3716
        %v3719 = vmul.f32 %v529, %v3717
        %v3720 = vadd.f32 %v3719, %v3712
        %v3721 = vlaneseq
        %v3722 = vshrl.u32 %v3721, 7
        %v3723 = vsub.s32 0, %v3722
        %v3724 = vrot.slane %v3714, %v3723
        %3733 = vrot.lane.b32.xlu0 %v3688, 64
        %v3734 = vpop.permute.xlu0 %3733
        %3735 = vrot.lane.b32.xlu0 %v3689, 64
        %v3736 = vpop.permute.xlu0 %3735
        %3737 = vrot.lane.b32.xlu0 %v3690, 64
        %v3738 = vpop.permute.xlu0 %3737
        %3739 = vrot.lane.b32.xlu0 %v3691, 64
        %v3740 = vpop.permute.xlu0 %3739
        %3741 = vrot.lane.b32.xlu0 %v3692, 64
        %v3742 = vpop.permute.xlu0 %3741
        %3743 = vrot.lane.b32.xlu0 %v3693, 64
        %v3744 = vpop.permute.xlu0 %3743
        %3745 = vrot.lane.b32.xlu0 %v3694, 64
        %v3746 = vpop.permute.xlu0 %3745
        %3747 = vrot.lane.b32.xlu0 %v3695, 64
        %v3748 = vpop.permute.xlu0 %3747
        %v3757 = vmul.f32 %v3724, %v3734
        %v3758 = vmul.f32 %v3724, %v3736
        %v3759 = vmul.f32 %v3724, %v3738
        %v3760 = vmul.f32 %v3724, %v3740
        %v3761 = vmul.f32 %v3724, %v3742
        %v3762 = vmul.f32 %v3724, %v3744
        %v3763 = vmul.f32 %v3724, %v3746
        %v3764 = vmul.f32 %v3724, %v3748
        %v3765 = vlaneseq
        %v3766 = vshrl.u32 %v3765, 7
        %v3767 = vsub.s32 0, %v3766
        %v3768 = vrot.slane %v3720, %v3767
        %3770 = vrot.lane.b32.xlu0 %v3768, 96
        %v3771 = vpop.permute.xlu0 %3770
        %v3773 = vadd.f32 %v3757, %v3771
        %v3774 = vadd.f32 %v3758, %v3771
        %v3775 = vadd.f32 %v3759, %v3771
        %v3776 = vadd.f32 %v3760, %v3771
        %v3777 = vadd.f32 %v3761, %v3771
        %v3778 = vadd.f32 %v3762, %v3771
        %v3779 = vadd.f32 %v3763, %v3771
        %v3780 = vadd.f32 %v3764, %v3771
        %3789 = vrot.lane.b32.xlu0 %v3773, 64
        %v3790 = vpop.permute.xlu0 %3789
        %3791 = vrot.lane.b32.xlu0 %v3774, 64
        %v3792 = vpop.permute.xlu0 %3791
        %3793 = vrot.lane.b32.xlu0 %v3775, 64
        %v3794 = vpop.permute.xlu0 %3793
        %3795 = vrot.lane.b32.xlu0 %v3776, 64
        %v3796 = vpop.permute.xlu0 %3795
        %3797 = vrot.lane.b32.xlu0 %v3777, 64
        %v3798 = vpop.permute.xlu0 %3797
        %3799 = vrot.lane.b32.xlu0 %v3778, 64
        %v3800 = vpop.permute.xlu0 %3799
        %3801 = vrot.lane.b32.xlu0 %v3779, 64
        %v3802 = vpop.permute.xlu0 %3801
        %3803 = vrot.lane.b32.xlu0 %v3780, 64
        %v3804 = vpop.permute.xlu0 %3803
        %3813 = vst.msk [vmem:[%s371] sm:$0xff] %vm382, %v3790
        %3814 = vst.msk [vmem:[%s371 + $0x8] sm:$0xff] %vm382, %v3792
        %3815 = vst.msk [vmem:[%s371 + $0x10] sm:$0xff] %vm382, %v3794
        %3816 = vst.msk [vmem:[%s371 + $0x18] sm:$0xff] %vm382, %v3796
        %3817 = vst.msk [vmem:[%s371 + $0x20] sm:$0xff] %vm382, %v3798
        %3818 = vst.msk [vmem:[%s371 + $0x28] sm:$0xff] %vm382, %v3800
        %3819 = vst.msk [vmem:[%s371 + $0x30] sm:$0xff] %vm382, %v3802
        %3820 = vst.msk [vmem:[%s371 + $0x38] sm:$0xff] %vm382, %v3804
        %p3821 = scmp.lt.s32.totalorder %s25, 1
        %s3822 = scalar_select %p3821, %s25, 1
        %s3823 = smul.addr %s3822, 8
        %s3824 = smul.addr %s3823, 8
        %s3825 = scalar_lea.vmem %s8, %s3824
        %s3826 = sand.u32 %s237, 1
        %s3827 = scalar_lea.sflag [#allocation3], %s3826
        %s3828 = sand.u32 %s237, 1
        %s3829 = smul.addr %s3828, 128
        %s3830 = scalar_lea.vmem [#allocation5], %s3829
        // Predicated region
        $region57: #{tpu_custom_call.1} parent=51 // pred_check
          %p3831 = pneg %p221
        $region58: #{tpu_custom_call.1} parent=51 // pred_check_branch
          %3833 = sbr.rel (%p3831) target = $region60
        $region59: #{tpu_custom_call.1} parent=51 // pred_region
          _
        $region60: #{tpu_custom_call.1} parent=51 // pred_fallthru
          _
        // Predicated region
        $region61: #{tpu_custom_call.1} parent=51 // pred_check
          %p3834 = pneg %p247
        $region62: #{tpu_custom_call.1} parent=51 // pred_check_branch
          %3836 = sbr.rel (%p3834) target = $region64
        $region63: #{tpu_custom_call.1} parent=51 // pred_region
          %s3838 = ssub.s32 2048, 2048
          %3839 = vsyncadd %s3827, %s3838
          %s3840 = smul.addr %s25, 16
          %s3841 = smul.addr %s3840, 128
          %s3842 = scalar_lea.hbm %s9, %s3841
          %s3843 = sshll.u32 %s3830, 4
          %s3844 = int_to_ptr.vmem [resolvable:$true] %s3843
          %3849 = dma.vmem_to_hbm [thread:$0]  %s3844, 2048, %s3842, %s3827, 256, 256, 16
        $region64: #{tpu_custom_call.1} parent=51 // pred_fallthru
          _
      $region52: #{tpu_custom_call.1} parent=5 // pred_fallthru
        _
      %p3850 = scmp.le.s32.totalorder 2, %s20
      // Predicated region
      $region65: #{tpu_custom_call.1} parent=5 // pred_check
        %p3851 = pneg %p3850
      $region66: #{tpu_custom_call.1} parent=5 // pred_check_branch
        %3853 = sbr.rel (%p3851) target = $region68
      $region67: #{tpu_custom_call.1} parent=5 // pred_region
        %s3854 = ssub.s32 %s20, 2
        // Predicated region
        $region69: #{tpu_custom_call.1} parent=67 // pred_check
          %p3855 = pneg %p227
        $region70: #{tpu_custom_call.1} parent=67 // pred_check_branch
          %3857 = sbr.rel (%p3855) target = $region72
        $region71: #{tpu_custom_call.1} parent=67 // pred_region
          %p3858 = scmp.lt.s32.totalorder %s26, 1
          %s3859 = scalar_select %p3858, %s26, 1
          %s3860 = smul.addr %s3859, 8
          %s3861 = smul.addr %s3860, 8
          %s3862 = scalar_lea.vmem %s8, %s3861
        $region72: #{tpu_custom_call.1} parent=67 // pred_fallthru
          _
        // Predicated region
        $region73: #{tpu_custom_call.1} parent=67 // pred_check
          %p3863 = pneg %p253
        $region74: #{tpu_custom_call.1} parent=67 // pred_check_branch
          %3865 = sbr.rel (%p3863) target = $region76
        $region75: #{tpu_custom_call.1} parent=67 // pred_region
          %s3866 = sand.u32 %s238, 1
          %s3867 = scalar_lea.sflag [#allocation3], %s3866
          %s3868 = sand.u32 %s238, 1
          %s3869 = smul.addr %s3868, 128
          %s3870 = scalar_lea.vmem [#allocation5], %s3869
          %3871 = dma.done %s3867, 2048
        $region76: #{tpu_custom_call.1} parent=67 // pred_fallthru
          _
      $region68: #{tpu_custom_call.1} parent=5 // pred_fallthru
        _
    $region6: #{tpu_custom_call.1} parent=1 // loop_footer
      %s24 = sadd.s32 1, %s20
    $region7: #{tpu_custom_call.1} parent=1 // loop_footer_branch
      %19 = sbr.rel target = $region3
    $region8: #{tpu_custom_call.1} parent=1 // loop_exit
      _
    %3872 = vsyncpa [#allocation3], 1
    %s3873 = scalar_lea.sflag [#allocation3], 1
    %3874 = vsyncpa %s3873, 1
    %3875 = vsyncpa [#allocation4], 1
    %s3876 = scalar_lea.sflag [#allocation4], 1
    %3877 = vsyncpa %s3876, 1

</llo_original>
